<compile_context>
chip_gen: v7x
topology: tpu7x:2x2x1
jax: 0.10.0
libtpu: 0.0.40
codegen_flags: <defaults>
</compile_context>

<pallas_src>
import functools
import math

import jax
import jax.numpy as jnp
from jax.experimental import pallas as pl
from jax.experimental.pallas import tpu as pltpu

_VMEM_LIMIT = 48 * 1024 * 1024   # safe on all generations (v7x physical VMEM = 64 MiB)
_SQRT1_2 = 0.7071067811865476


def _pick_tile(dim, pref, align):
    """Largest multiple of `align` <= `pref` that divides `dim`; else the full dim."""
    if dim <= pref:
        return dim
    t = (pref // align) * align
    while t >= align:
        if dim % t == 0:
            return t
        t -= align
    return dim


def _gelu_exact(x):
    # matches torch.nn.functional.gelu default (erf-based, exact)
    return 0.5 * x * (1.0 + jax.lax.erf(x * _SQRT1_2))


# ---------------- LayerNorm ----------------

def _layernorm_kernel(x_ref, g_ref, b_ref, o_ref):
    x = x_ref[...].astype(jnp.float32)
    mu = jnp.mean(x, axis=-1, keepdims=True)
    var = jnp.mean(jnp.square(x - mu), axis=-1, keepdims=True)
    xhat = (x - mu) * jax.lax.rsqrt(var + 1e-5)
    # gamma/beta applied in f32 before the final cast (safe if I/O moves to bf16)
    y = xhat * g_ref[...].astype(jnp.float32) + b_ref[...].astype(jnp.float32)
    o_ref[...] = y.astype(o_ref.dtype)


def layernorm(x, gamma, beta, *, tm_pref=1024):
    orig = x.shape
    C = orig[-1]
    R = math.prod(orig[:-1])
    x2 = x.reshape(R, C)
    tm = _pick_tile(R, tm_pref, 8)
    out = pl.pallas_call(
        _layernorm_kernel,
        grid=(R // tm,),
        in_specs=[pl.BlockSpec((tm, C), lambda i: (i, 0)),
                  pl.BlockSpec((1, C), lambda i: (0, 0)),
                  pl.BlockSpec((1, C), lambda i: (0, 0))],
        out_specs=pl.BlockSpec((tm, C), lambda i: (i, 0)),
        out_shape=jax.ShapeDtypeStruct((R, C), x.dtype),
        compiler_params=pltpu.CompilerParams(
            dimension_semantics=("parallel",),
            vmem_limit_bytes=_VMEM_LIMIT),
    )(x2, gamma.reshape(1, C), beta.reshape(1, C))
    return out.reshape(orig)


# ---------------- tiled Linear (optional bias + fused residual add) ----------------

def _linear_kernel(*refs, has_bias, has_residual):
    it = iter(refs)
    x_ref = next(it)
    w_ref = next(it)
    b_ref = next(it) if has_bias else None
    r_ref = next(it) if has_residual else None
    o_ref = next(it)
    acc_ref = next(it)

    k = pl.program_id(2)

    @pl.when(k == 0)
    def _():
        acc_ref[...] = jnp.zeros_like(acc_ref)

    acc_ref[...] += jnp.dot(x_ref[...], w_ref[...],
                            preferred_element_type=jnp.float32)

    @pl.when(k == pl.num_programs(2) - 1)
    def _():
        y = acc_ref[...]
        if has_bias:
            y = y + b_ref[...].astype(jnp.float32)
        if has_residual:
            y = y + r_ref[...].astype(jnp.float32)
        o_ref[...] = y.astype(o_ref.dtype)


def linear(x, w, b=None, residual=None, *, tm_pref=512, tn_pref=512, tk_pref=512):
    orig = x.shape
    Din = orig[-1]
    Dout = w.shape[1]
    R = math.prod(orig[:-1])
    x2 = x.reshape(R, Din)

    tm = _pick_tile(R, tm_pref, 8)
    tn = _pick_tile(Dout, tn_pref, 128)
    tk = _pick_tile(Din, tk_pref, 128)
    grid = (R // tm, Dout // tn, Din // tk)

    in_specs = [pl.BlockSpec((tm, tk), lambda i, j, k: (i, k)),
                pl.BlockSpec((tk, tn), lambda i, j, k: (k, j))]
    args = [x2, w]
    if b is not None:
        in_specs.append(pl.BlockSpec((1, tn), lambda i, j, k: (0, j)))
        args.append(b.reshape(1, Dout))
    if residual is not None:
        in_specs.append(pl.BlockSpec((tm, tn), lambda i, j, k: (i, j)))
        args.append(residual.reshape(R, Dout))

    kern = functools.partial(_linear_kernel, has_bias=b is not None,
                             has_residual=residual is not None)
    y = pl.pallas_call(
        kern,
        grid=grid,
        in_specs=in_specs,
        out_specs=pl.BlockSpec((tm, tn), lambda i, j, k: (i, j)),
        out_shape=jax.ShapeDtypeStruct((R, Dout), x.dtype),
        scratch_shapes=[pltpu.VMEM((tm, tn), jnp.float32)],
        compiler_params=pltpu.CompilerParams(
            dimension_semantics=("parallel", "parallel", "arbitrary"),
            vmem_limit_bytes=_VMEM_LIMIT),
    )(*args)
    return y.reshape(orig[:-1] + (Dout,))


# ---------------- fused GEGLU: Linear(dim -> 2*inner) + chunk + x * gelu(gate) ----------------

def _geglu_kernel(x_ref, wa_ref, wg_ref, ba_ref, bg_ref, o_ref, acc_a, acc_g):
    k = pl.program_id(2)

    @pl.when(k == 0)
    def _():
        acc_a[...] = jnp.zeros_like(acc_a)
        acc_g[...] = jnp.zeros_like(acc_g)

    x = x_ref[...]
    acc_a[...] += jnp.dot(x, wa_ref[...], preferred_element_type=jnp.float32)
    acc_g[...] += jnp.dot(x, wg_ref[...], preferred_element_type=jnp.float32)

    @pl.when(k == pl.num_programs(2) - 1)
    def _():
        a = acc_a[...] + ba_ref[...].astype(jnp.float32)
        g = acc_g[...] + bg_ref[...].astype(jnp.float32)
        o_ref[...] = (a * _gelu_exact(g)).astype(o_ref.dtype)


def geglu(x, wa, wg, ba, bg, *, tm_pref=512, tn_pref=512, tk_pref=512):
    orig = x.shape
    Din = orig[-1]
    Dout = wa.shape[1]
    R = math.prod(orig[:-1])
    x2 = x.reshape(R, Din)

    tm = _pick_tile(R, tm_pref, 8)
    tn = _pick_tile(Dout, tn_pref, 128)
    tk = _pick_tile(Din, tk_pref, 128)
    grid = (R // tm, Dout // tn, Din // tk)

    y = pl.pallas_call(
        _geglu_kernel,
        grid=grid,
        in_specs=[pl.BlockSpec((tm, tk), lambda i, j, k: (i, k)),
                  pl.BlockSpec((tk, tn), lambda i, j, k: (k, j)),
                  pl.BlockSpec((tk, tn), lambda i, j, k: (k, j)),
                  pl.BlockSpec((1, tn), lambda i, j, k: (0, j)),
                  pl.BlockSpec((1, tn), lambda i, j, k: (0, j))],
        out_specs=pl.BlockSpec((tm, tn), lambda i, j, k: (i, j)),
        out_shape=jax.ShapeDtypeStruct((R, Dout), x.dtype),
        scratch_shapes=[pltpu.VMEM((tm, tn), jnp.float32),
                        pltpu.VMEM((tm, tn), jnp.float32)],
        compiler_params=pltpu.CompilerParams(
            dimension_semantics=("parallel", "parallel", "arbitrary"),
            vmem_limit_bytes=_VMEM_LIMIT),
    )(x2, wa, wg, ba.reshape(1, Dout), bg.reshape(1, Dout))
    return y.reshape(orig[:-1] + (Dout,))


# ---------------- flash-style attention, heads packed in the lane dim ----------------

def _flash_attn_kernel(q_ref, k_ref, v_ref, o_ref, m_sc, l_sc, acc_sc, *,
                       heads, scale):
    ki = pl.program_id(2)
    d = q_ref.shape[-1] // heads

    @pl.when(ki == 0)
    def _():
        m_sc[...] = jnp.full_like(m_sc, -jnp.inf)
        l_sc[...] = jnp.zeros_like(l_sc)
        acc_sc[...] = jnp.zeros_like(acc_sc)

    for h in range(heads):                     # heads is a compile-time constant (unrolled)
        sl = slice(h * d, (h + 1) * d)
        q = q_ref[0, :, sl].astype(jnp.float32) * scale     # (tq, d) — scale folded into q
        kk = k_ref[0, :, sl].astype(jnp.float32)            # (tk, d)
        vv = v_ref[0, :, sl].astype(jnp.float32)            # (tk, d)
        # q · kᵀ without materializing kᵀ: contract on the head dim.
        s = jax.lax.dot_general(q, kk, (((1,), (1,)), ((), ())),
                                preferred_element_type=jnp.float32)   # (tq, tk)
        m_prev = m_sc[h]
        m_new = jnp.maximum(m_prev, jnp.max(s, axis=-1, keepdims=True))
        alpha = jnp.exp(m_prev - m_new)
        p = jnp.exp(s - m_new)
        l_sc[h] = alpha * l_sc[h] + jnp.sum(p, axis=-1, keepdims=True)
        acc_sc[h] = alpha * acc_sc[h] + jnp.dot(p, vv,
                                                preferred_element_type=jnp.float32)
        m_sc[h] = m_new

    @pl.when(ki == pl.num_programs(2) - 1)
    def _():
        for h in range(heads):
            inv_l = pl.reciprocal(l_sc[h], approx=True)     # EUP slot, essentially free
            o_ref[0, :, h * d:(h + 1) * d] = (acc_sc[h] * inv_l).astype(o_ref.dtype)


def flash_attention(q, k, v, heads, *, tq_pref=512, tkv_pref=512):
    # q: (B, N, inner), k/v: (B, M, inner) with inner = heads * d_head (heads stay packed)
    B, N, inner = q.shape
    M = k.shape[1]
    d = inner // heads
    scale = float(d) ** -0.5

    tq = _pick_tile(N, tq_pref, 8)
    tkv = _pick_tile(M, tkv_pref, 8)
    grid = (B, N // tq, M // tkv)              # KV axis last + "arbitrary" (accumulator axis)

    kern = functools.partial(_flash_attn_kernel, heads=heads, scale=scale)
    return pl.pallas_call(
        kern,
        grid=grid,
        in_specs=[pl.BlockSpec((1, tq, inner), lambda b, qi, ki: (b, qi, 0)),
                  pl.BlockSpec((1, tkv, inner), lambda b, qi, ki: (b, ki, 0)),
                  pl.BlockSpec((1, tkv, inner), lambda b, qi, ki: (b, ki, 0))],
        out_specs=pl.BlockSpec((1, tq, inner), lambda b, qi, ki: (b, qi, 0)),
        out_shape=jax.ShapeDtypeStruct((B, N, inner), q.dtype),
        scratch_shapes=[pltpu.VMEM((heads, tq, 1), jnp.float32),   # m (running max)
                        pltpu.VMEM((heads, tq, 1), jnp.float32),   # l (running denom)
                        pltpu.VMEM((heads, tq, d), jnp.float32)],  # acc (running numerator)
        compiler_params=pltpu.CompilerParams(
            dimension_semantics=("parallel", "parallel", "arbitrary"),
            vmem_limit_bytes=_VMEM_LIMIT),
    )(q, k, v)


# ---------------- module-level forward ----------------

def cross_attention(x, context, p, heads, residual):
    q = linear(x, p['wq'])                 # to_q (no bias)
    k = linear(context, p['wk'])           # to_k (no bias)
    v = linear(context, p['wv'])           # to_v (no bias)
    o = flash_attention(q, k, v, heads)    # heads stay packed: no JAX-side head transposes
    # to_out = Linear(inner, dim) + Dropout(0.0); residual add fused into the projection kernel
    return linear(o, p['wo'], b=p['bo'], residual=residual)


def feed_forward(x, p, residual):
    # gated_ff=True -> GEGLU then Linear; Dropout(0.0) is identity; residual fused into FF2
    h = geglu(x, p['w1a'], p['w1g'], p['b1a'], p['b1g'])
    return linear(h, p['w2'], b=p['b2'], residual=residual)


def basic_transformer_block(x, context, params, heads):
    h = layernorm(x, params['norm1_g'], params['norm1_b'])
    x = cross_attention(h, h, params['attn1'], heads, residual=x)      # self-attn
    h = layernorm(x, params['norm2_g'], params['norm2_b'])
    ctx = context if context is not None else h
    x = cross_attention(h, ctx, params['attn2'], heads, residual=x)    # cross-attn (mask=None path)
    h = layernorm(x, params['norm3_g'], params['norm3_b'])
    x = feed_forward(h, params['ff'], residual=x)
    return x
    # TODO(synk): torch.utils.checkpoint only affects backward recomputation; forward identical.


# ---------------- deterministic parameter init ----------------

def init_params(key, dim, n_heads, d_head, context_dim):
    inner = n_heads * d_head
    ff_inner = 4 * dim
    ks = iter(jax.random.split(key, 32))

    def w(shape):
        return jax.random.normal(next(ks), shape, jnp.float32) * 0.02

    # GEGLU proj is Linear(dim, 2*ff_inner); split once into (value, gate) halves to match
    # torch's .chunk(2, dim=-1): first half = value, second half = gate.
    w1 = w((dim, 2 * ff_inner))
    b1 = w((2 * ff_inner,))
    return {
        'norm1_g': jnp.ones((dim,), jnp.float32), 'norm1_b': jnp.zeros((dim,), jnp.float32),
        'norm2_g': jnp.ones((dim,), jnp.float32), 'norm2_b': jnp.zeros((dim,), jnp.float32),
        'norm3_g': jnp.ones((dim,), jnp.float32), 'norm3_b': jnp.zeros((dim,), jnp.float32),
        'attn1': {'wq': w((dim, inner)), 'wk': w((dim, inner)), 'wv': w((dim, inner)),
                  'wo': w((inner, dim)), 'bo': w((dim,))},
        'attn2': {'wq': w((dim, inner)), 'wk': w((context_dim, inner)), 'wv': w((context_dim, inner)),
                  'wo': w((inner, dim)), 'bo': w((dim,))},
        'ff': {'w1a': w1[:, :ff_inner], 'w1g': w1[:, ff_inner:],
               'b1a': b1[:ff_inner], 'b1g': b1[ff_inner:],
               'w2': w((ff_inner, dim)), 'b2': w((dim,))},
    }


if __name__ == "__main__":
    key = jax.random.PRNGKey(0)
    B, N, dim = 2, 8, 32
    n_heads, d_head = 4, 8           # inner_dim = 32
    M, context_dim = 8, 32           # context_dim defaults to query_dim in the module

    k_x, k_ctx, k_p = jax.random.split(key, 3)
    x = jax.random.normal(k_x, (B, N, dim), jnp.float32)
    context = jax.random.normal(k_ctx, (B, M, context_dim), jnp.float32)
    params = init_params(k_p, dim, n_heads, d_head, context_dim)

    fwd = jax.jit(functools.partial(basic_transformer_block, heads=n_heads))
    out = fwd(x, context, params)
    jax.block_until_ready(out)
    assert out.shape == (B, N, dim)
    print("KERNEL_OK")
</pallas_src>

<mosaic_0001>
module attributes {stable_mosaic.version = 11 : i64} {
  func.func @_layernorm_kernel(%arg0: i32, %arg1: memref<16x32xf32, #tpu.memory_space<vmem>>, %arg2: memref<1x32xf32, #tpu.memory_space<vmem>>, %arg3: memref<1x32xf32, #tpu.memory_space<vmem>>, %arg4: memref<16x32xf32, #tpu.memory_space<vmem>>) attributes {dimension_semantics = [#tpu.dimension_semantics<parallel>], iteration_bounds = array<i64: 1>, scalar_prefetch = 0 : i64, scratch_operands = 0 : i64, tpu.core_type = #tpu.core_type<tc>, window_params = [{transform_indices = @transform_0, window_bounds = array<i64: 16, 32>}, {pipeline_mode = #tpu.pipeline_mode<synchronous>, transform_indices = @transform_1, window_bounds = array<i64: 1, 32>}, {pipeline_mode = #tpu.pipeline_mode<synchronous>, transform_indices = @transform_2, window_bounds = array<i64: 1, 32>}, {transform_indices = @transform_3, window_bounds = array<i64: 16, 32>}]} {
    %c0 = arith.constant 0 : index
    %c0_0 = arith.constant 0 : index
    %0 = vector.load %arg1[%c0, %c0_0] : memref<16x32xf32, #tpu.memory_space<vmem>>, vector<16x32xf32>
    %cst = arith.constant dense<0.000000e+00> : vector<16xf32>
    %1 = vector.multi_reduction <add>, %0, %cst [1] : vector<16x32xf32> to vector<16xf32>
    %2 = vector.shape_cast %1 : vector<16xf32> to vector<16x1xf32>
    %cst_1 = arith.constant 3.200000e+01 : f32
    %3 = vector.broadcast %cst_1 : f32 to vector<16x1xf32>
    %4 = arith.divf %2, %3 : vector<16x1xf32>
    %5 = vector.broadcast %4 : vector<16x1xf32> to vector<16x32xf32>
    %6 = arith.subf %0, %5 : vector<16x32xf32>
    %7 = arith.mulf %6, %6 : vector<16x32xf32>
    %cst_2 = arith.constant dense<0.000000e+00> : vector<16xf32>
    %8 = vector.multi_reduction <add>, %7, %cst_2 [1] : vector<16x32xf32> to vector<16xf32>
    %9 = vector.shape_cast %8 : vector<16xf32> to vector<16x1xf32>
    %cst_3 = arith.constant 3.200000e+01 : f32
    %10 = vector.broadcast %cst_3 : f32 to vector<16x1xf32>
    %11 = arith.divf %9, %10 : vector<16x1xf32>
    %12 = vector.broadcast %4 : vector<16x1xf32> to vector<16x32xf32>
    %13 = arith.subf %0, %12 : vector<16x32xf32>
    %cst_4 = arith.constant 9.99999974E-6 : f32
    %14 = vector.broadcast %cst_4 : f32 to vector<16x1xf32>
    %15 = arith.addf %11, %14 : vector<16x1xf32>
    %16 = math.rsqrt %15 : vector<16x1xf32>
    %17 = vector.broadcast %16 : vector<16x1xf32> to vector<16x32xf32>
    %18 = arith.mulf %13, %17 : vector<16x32xf32>
    %c0_5 = arith.constant 0 : index
    %c0_6 = arith.constant 0 : index
    %19 = vector.load %arg2[%c0_5, %c0_6] : memref<1x32xf32, #tpu.memory_space<vmem>>, vector<1x32xf32>
    %20 = vector.broadcast %19 : vector<1x32xf32> to vector<16x32xf32>
    %21 = arith.mulf %18, %20 : vector<16x32xf32>
    %c0_7 = arith.constant 0 : index
    %c0_8 = arith.constant 0 : index
    %22 = vector.load %arg3[%c0_7, %c0_8] : memref<1x32xf32, #tpu.memory_space<vmem>>, vector<1x32xf32>
    %23 = vector.broadcast %22 : vector<1x32xf32> to vector<16x32xf32>
    %24 = arith.addf %21, %23 : vector<16x32xf32>
    %c0_9 = arith.constant 0 : index
    %c0_10 = arith.constant 0 : index
    %25 = vector.load %arg4[%c0_9, %c0_10] : memref<16x32xf32, #tpu.memory_space<vmem>>, vector<16x32xf32>
    tpu.vector_store %arg4[%c0_9, %c0_10], %24 {strides = array<i32>} : memref<16x32xf32, #tpu.memory_space<vmem>>, vector<16x32xf32>,
    return
  }
  func.func @transform_0(%arg0: i32) -> (i32, i32) {
    %c0_i32 = arith.constant 0 : i32
    %c0_i32_0 = arith.constant 0 : i32
    return %arg0, %c0_i32 : i32, i32
  }
  func.func @transform_1(%arg0: i32) -> (i32, i32) {
    %c0_i32 = arith.constant 0 : i32
    %c0_i32_0 = arith.constant 0 : i32
    %c0_i32_1 = arith.constant 0 : i32
    return %c0_i32, %c0_i32_0 : i32, i32
  }
  func.func @transform_2(%arg0: i32) -> (i32, i32) {
    %c0_i32 = arith.constant 0 : i32
    %c0_i32_0 = arith.constant 0 : i32
    %c0_i32_1 = arith.constant 0 : i32
    return %c0_i32, %c0_i32_0 : i32, i32
  }
  func.func @transform_3(%arg0: i32) -> (i32, i32) {
    %c0_i32 = arith.constant 0 : i32
    %c0_i32_0 = arith.constant 0 : i32
    return %arg0, %c0_i32 : i32, i32
  }
}

module attributes {stable_mosaic.version = 11 : i64} {
  func.func @_flash_attn_kernel(%arg0: i32, %arg1: i32, %arg2: i32, %arg3: memref<1x8x32xf32, #tpu.memory_space<vmem>>, %arg4: memref<1x8x32xf32, #tpu.memory_space<vmem>>, %arg5: memref<1x8x32xf32, #tpu.memory_space<vmem>>, %arg6: memref<1x8x32xf32, #tpu.memory_space<vmem>>, %arg7: memref<4x8x1xf32, #tpu.memory_space<vmem>>, %arg8: memref<4x8x1xf32, #tpu.memory_space<vmem>>, %arg9: memref<4x8x8xf32, #tpu.memory_space<vmem>>) attributes {dimension_semantics = [#tpu.dimension_semantics<parallel>, #tpu.dimension_semantics<parallel>, #tpu.dimension_semantics<arbitrary>], iteration_bounds = array<i64: 2, 1, 1>, scalar_prefetch = 0 : i64, scratch_operands = 3 : i64, tpu.core_type = #tpu.core_type<tc>, window_params = [{transform_indices = @transform_0, window_bounds = array<i64: 1, 8, 32>}, {transform_indices = @transform_1, window_bounds = array<i64: 1, 8, 32>}, {transform_indices = @transform_2, window_bounds = array<i64: 1, 8, 32>}, {transform_indices = @transform_3, window_bounds = array<i64: 1, 8, 32>}]} {
    %c0_i32 = arith.constant 0 : i32
    %0 = arith.cmpi eq, %arg2, %c0_i32 : i32
    %1 = arith.extui %0 : i1 to i32
    %c0_i32_0 = arith.constant 0 : i32
    %2 = arith.cmpi ne, %1, %c0_i32_0 : i32
    scf.if %2 {
      %cst_123 = arith.constant 0xFF800000 : f32
      %166 = vector.broadcast %cst_123 : f32 to vector<4x8x1xf32>
      %c0_124 = arith.constant 0 : index
      %c0_125 = arith.constant 0 : index
      %c0_126 = arith.constant 0 : index
      %167 = vector.load %arg7[%c0_124, %c0_125, %c0_126] : memref<4x8x1xf32, #tpu.memory_space<vmem>>, vector<4x8x1xf32>
      tpu.vector_store %arg7[%c0_124, %c0_125, %c0_126], %166 {strides = array<i32>} : memref<4x8x1xf32, #tpu.memory_space<vmem>>, vector<4x8x1xf32>,
      %cst_127 = arith.constant 0.000000e+00 : f32
      %168 = vector.broadcast %cst_127 : f32 to vector<4x8x1xf32>
      %c0_128 = arith.constant 0 : index
      %c0_129 = arith.constant 0 : index
      %c0_130 = arith.constant 0 : index
      %169 = vector.load %arg8[%c0_128, %c0_129, %c0_130] : memref<4x8x1xf32, #tpu.memory_space<vmem>>, vector<4x8x1xf32>
      tpu.vector_store %arg8[%c0_128, %c0_129, %c0_130], %168 {strides = array<i32>} : memref<4x8x1xf32, #tpu.memory_space<vmem>>, vector<4x8x1xf32>,
      %cst_131 = arith.constant 0.000000e+00 : f32
      %170 = vector.broadcast %cst_131 : f32 to vector<4x8x8xf32>
      %c0_132 = arith.constant 0 : index
      %c0_133 = arith.constant 0 : index
      %c0_134 = arith.constant 0 : index
      %171 = vector.load %arg9[%c0_132, %c0_133, %c0_134] : memref<4x8x8xf32, #tpu.memory_space<vmem>>, vector<4x8x8xf32>
      tpu.vector_store %arg9[%c0_132, %c0_133, %c0_134], %170 {strides = array<i32>} : memref<4x8x8xf32, #tpu.memory_space<vmem>>, vector<4x8x8xf32>,
    } else {
    }
    %c0 = arith.constant 0 : index
    %c0_1 = arith.constant 0 : index
    %c0_2 = arith.constant 0 : index
    %3 = vector.load %arg3[%c0, %c0_1, %c0_2] : memref<1x8x32xf32, #tpu.memory_space<vmem>>, vector<1x8x8xf32>
    %4 = vector.shape_cast %3 : vector<1x8x8xf32> to vector<8x8xf32>
    %cst = arith.constant 0.353553385 : f32
    %5 = vector.broadcast %cst : f32 to vector<8x8xf32>
    %6 = arith.mulf %4, %5 : vector<8x8xf32>
    %c0_3 = arith.constant 0 : index
    %c0_4 = arith.constant 0 : index
    %c0_5 = arith.constant 0 : index
    %7 = vector.load %arg4[%c0_3, %c0_4, %c0_5] : memref<1x8x32xf32, #tpu.memory_space<vmem>>, vector<1x8x8xf32>
    %8 = vector.shape_cast %7 : vector<1x8x8xf32> to vector<8x8xf32>
    %c0_6 = arith.constant 0 : index
    %c0_7 = arith.constant 0 : index
    %c0_8 = arith.constant 0 : index
    %9 = vector.load %arg5[%c0_6, %c0_7, %c0_8] : memref<1x8x32xf32, #tpu.memory_space<vmem>>, vector<1x8x8xf32>
    %10 = vector.shape_cast %9 : vector<1x8x8xf32> to vector<8x8xf32>
    %cst_9 = arith.constant dense<0.000000e+00> : vector<8x8xf32>
    %11 = tpu.matmul %6, %8, %cst_9 {dimension_numbers = #tpu.dot_dimension_numbers<[1], [1], [0], [0], [0, 0, 1, 0], [], []>} : vector<8x8xf32>, vector<8x8xf32>, vector<8x8xf32> -> vector<8x8xf32>
    %c0_10 = arith.constant 0 : index
    %c0_11 = arith.constant 0 : index
    %c0_12 = arith.constant 0 : index
    %12 = vector.load %arg7[%c0_10, %c0_11, %c0_12] : memref<4x8x1xf32, #tpu.memory_space<vmem>>, vector<1x8x1xf32>
    %13 = vector.shape_cast %12 : vector<1x8x1xf32> to vector<8x1xf32>
    %cst_13 = arith.constant dense<0xFF800000> : vector<8xf32>
    %14 = vector.multi_reduction <maximumf>, %11, %cst_13 [1] : vector<8x8xf32> to vector<8xf32>
    %15 = vector.shape_cast %14 : vector<8xf32> to vector<8x1xf32>
    %16 = arith.maximumf %13, %15 : vector<8x1xf32>
    %17 = arith.subf %13, %16 : vector<8x1xf32>
    %18 = math.exp %17 : vector<8x1xf32>
    %19 = vector.broadcast %16 : vector<8x1xf32> to vector<8x8xf32>
    %20 = arith.subf %11, %19 : vector<8x8xf32>
    %21 = math.exp %20 : vector<8x8xf32>
    %c0_14 = arith.constant 0 : index
    %c0_15 = arith.constant 0 : index
    %c0_16 = arith.constant 0 : index
    %22 = vector.load %arg8[%c0_14, %c0_15, %c0_16] : memref<4x8x1xf32, #tpu.memory_space<vmem>>, vector<1x8x1xf32>
    %23 = vector.shape_cast %22 : vector<1x8x1xf32> to vector<8x1xf32>
    %24 = arith.mulf %18, %23 : vector<8x1xf32>
    %cst_17 = arith.constant dense<0.000000e+00> : vector<8xf32>
    %25 = vector.multi_reduction <add>, %21, %cst_17 [1] : vector<8x8xf32> to vector<8xf32>
    %26 = vector.shape_cast %25 : vector<8xf32> to vector<8x1xf32>
    %27 = arith.addf %24, %26 : vector<8x1xf32>
    %c0_18 = arith.constant 0 : index
    %c0_19 = arith.constant 0 : index
    %c0_20 = arith.constant 0 : index
    %28 = vector.load %arg8[%c0_18, %c0_19, %c0_20] : memref<4x8x1xf32, #tpu.memory_space<vmem>>, vector<1x8x1xf32>
    %29 = vector.shape_cast %28 : vector<1x8x1xf32> to vector<8x1xf32>
    %30 = vector.shape_cast %27 : vector<8x1xf32> to vector<1x8x1xf32>
    tpu.vector_store %arg8[%c0_18, %c0_19, %c0_20], %30 {strides = array<i32>} : memref<4x8x1xf32, #tpu.memory_space<vmem>>, vector<1x8x1xf32>,
    %c0_21 = arith.constant 0 : index
    %c0_22 = arith.constant 0 : index
    %c0_23 = arith.constant 0 : index
    %31 = vector.load %arg9[%c0_21, %c0_22, %c0_23] : memref<4x8x8xf32, #tpu.memory_space<vmem>>, vector<1x8x8xf32>
    %32 = vector.shape_cast %31 : vector<1x8x8xf32> to vector<8x8xf32>
    %33 = vector.broadcast %18 : vector<8x1xf32> to vector<8x8xf32>
    %34 = arith.mulf %33, %32 : vector<8x8xf32>
    %cst_24 = arith.constant dense<0.000000e+00> : vector<8x8xf32>
    %35 = tpu.matmul %21, %10, %cst_24 {dimension_numbers = #tpu.dot_dimension_numbers<[1], [0], [0], [1], [0, 0, 1, 1], [], []>} : vector<8x8xf32>, vector<8x8xf32>, vector<8x8xf32> -> vector<8x8xf32>
    %36 = arith.addf %34, %35 : vector<8x8xf32>
    %c0_25 = arith.constant 0 : index
    %c0_26 = arith.constant 0 : index
    %c0_27 = arith.constant 0 : index
    %37 = vector.load %arg9[%c0_25, %c0_26, %c0_27] : memref<4x8x8xf32, #tpu.memory_space<vmem>>, vector<1x8x8xf32>
    %38 = vector.shape_cast %37 : vector<1x8x8xf32> to vector<8x8xf32>
    %39 = vector.shape_cast %36 : vector<8x8xf32> to vector<1x8x8xf32>
    tpu.vector_store %arg9[%c0_25, %c0_26, %c0_27], %39 {strides = array<i32>} : memref<4x8x8xf32, #tpu.memory_space<vmem>>, vector<1x8x8xf32>,
    %c0_28 = arith.constant 0 : index
    %c0_29 = arith.constant 0 : index
    %c0_30 = arith.constant 0 : index
    %40 = vector.load %arg7[%c0_28, %c0_29, %c0_30] : memref<4x8x1xf32, #tpu.memory_space<vmem>>, vector<1x8x1xf32>
    %41 = vector.shape_cast %40 : vector<1x8x1xf32> to vector<8x1xf32>
    %42 = vector.shape_cast %16 : vector<8x1xf32> to vector<1x8x1xf32>
    tpu.vector_store %arg7[%c0_28, %c0_29, %c0_30], %42 {strides = array<i32>} : memref<4x8x1xf32, #tpu.memory_space<vmem>>, vector<1x8x1xf32>,
    %c0_31 = arith.constant 0 : index
    %c0_32 = arith.constant 0 : index
    %c8 = arith.constant 8 : index
    %43 = vector.load %arg3[%c0_31, %c0_32, %c8] : memref<1x8x32xf32, #tpu.memory_space<vmem>>, vector<1x8x8xf32>
    %44 = vector.shape_cast %43 : vector<1x8x8xf32> to vector<8x8xf32>
    %cst_33 = arith.constant 0.353553385 : f32
    %45 = vector.broadcast %cst_33 : f32 to vector<8x8xf32>
    %46 = arith.mulf %44, %45 : vector<8x8xf32>
    %c0_34 = arith.constant 0 : index
    %c0_35 = arith.constant 0 : index
    %c8_36 = arith.constant 8 : index
    %47 = vector.load %arg4[%c0_34, %c0_35, %c8_36] : memref<1x8x32xf32, #tpu.memory_space<vmem>>, vector<1x8x8xf32>
    %48 = vector.shape_cast %47 : vector<1x8x8xf32> to vector<8x8xf32>
    %c0_37 = arith.constant 0 : index
    %c0_38 = arith.constant 0 : index
    %c8_39 = arith.constant 8 : index
    %49 = vector.load %arg5[%c0_37, %c0_38, %c8_39] : memref<1x8x32xf32, #tpu.memory_space<vmem>>, vector<1x8x8xf32>
    %50 = vector.shape_cast %49 : vector<1x8x8xf32> to vector<8x8xf32>
    %cst_40 = arith.constant dense<0.000000e+00> : vector<8x8xf32>
    %51 = tpu.matmul %46, %48, %cst_40 {dimension_numbers = #tpu.dot_dimension_numbers<[1], [1], [0], [0], [0, 0, 1, 0], [], []>} : vector<8x8xf32>, vector<8x8xf32>, vector<8x8xf32> -> vector<8x8xf32>
    %c1 = arith.constant 1 : index
    %c0_41 = arith.constant 0 : index
    %c0_42 = arith.constant 0 : index
    %52 = vector.load %arg7[%c1, %c0_41, %c0_42] : memref<4x8x1xf32, #tpu.memory_space<vmem>>, vector<1x8x1xf32>
    %53 = vector.shape_cast %52 : vector<1x8x1xf32> to vector<8x1xf32>
    %cst_43 = arith.constant dense<0xFF800000> : vector<8xf32>
    %54 = vector.multi_reduction <maximumf>, %51, %cst_43 [1] : vector<8x8xf32> to vector<8xf32>
    %55 = vector.shape_cast %54 : vector<8xf32> to vector<8x1xf32>
    %56 = arith.maximumf %53, %55 : vector<8x1xf32>
    %57 = arith.subf %53, %56 : vector<8x1xf32>
    %58 = math.exp %57 : vector<8x1xf32>
    %59 = vector.broadcast %56 : vector<8x1xf32> to vector<8x8xf32>
    %60 = arith.subf %51, %59 : vector<8x8xf32>
    %61 = math.exp %60 : vector<8x8xf32>
    %c1_44 = arith.constant 1 : index
    %c0_45 = arith.constant 0 : index
    %c0_46 = arith.constant 0 : index
    %62 = vector.load %arg8[%c1_44, %c0_45, %c0_46] : memref<4x8x1xf32, #tpu.memory_space<vmem>>, vector<1x8x1xf32>
    %63 = vector.shape_cast %62 : vector<1x8x1xf32> to vector<8x1xf32>
    %64 = arith.mulf %58, %63 : vector<8x1xf32>
    %cst_47 = arith.constant dense<0.000000e+00> : vector<8xf32>
    %65 = vector.multi_reduction <add>, %61, %cst_47 [1] : vector<8x8xf32> to vector<8xf32>
    %66 = vector.shape_cast %65 : vector<8xf32> to vector<8x1xf32>
    %67 = arith.addf %64, %66 : vector<8x1xf32>
    %c1_48 = arith.constant 1 : index
    %c0_49 = arith.constant 0 : index
    %c0_50 = arith.constant 0 : index
    %68 = vector.load %arg8[%c1_48, %c0_49, %c0_50] : memref<4x8x1xf32, #tpu.memory_space<vmem>>, vector<1x8x1xf32>
    %69 = vector.shape_cast %68 : vector<1x8x1xf32> to vector<8x1xf32>
    %70 = vector.shape_cast %67 : vector<8x1xf32> to vector<1x8x1xf32>
    tpu.vector_store %arg8[%c1_48, %c0_49, %c0_50], %70 {strides = array<i32>} : memref<4x8x1xf32, #tpu.memory_space<vmem>>, vector<1x8x1xf32>,
    %c1_51 = arith.constant 1 : index
    %c0_52 = arith.constant 0 : index
    %c0_53 = arith.constant 0 : index
    %71 = vector.load %arg9[%c1_51, %c0_52, %c0_53] : memref<4x8x8xf32, #tpu.memory_space<vmem>>, vector<1x8x8xf32>
    %72 = vector.shape_cast %71 : vector<1x8x8xf32> to vector<8x8xf32>
    %73 = vector.broadcast %58 : vector<8x1xf32> to vector<8x8xf32>
    %74 = arith.mulf %73, %72 : vector<8x8xf32>
    %cst_54 = arith.constant dense<0.000000e+00> : vector<8x8xf32>
    %75 = tpu.matmul %61, %50, %cst_54 {dimension_numbers = #tpu.dot_dimension_numbers<[1], [0], [0], [1], [0, 0, 1, 1], [], []>} : vector<8x8xf32>, vector<8x8xf32>, vector<8x8xf32> -> vector<8x8xf32>
    %76 = arith.addf %74, %75 : vector<8x8xf32>
    %c1_55 = arith.constant 1 : index
    %c0_56 = arith.constant 0 : index
    %c0_57 = arith.constant 0 : index
    %77 = vector.load %arg9[%c1_55, %c0_56, %c0_57] : memref<4x8x8xf32, #tpu.memory_space<vmem>>, vector<1x8x8xf32>
    %78 = vector.shape_cast %77 : vector<1x8x8xf32> to vector<8x8xf32>
    %79 = vector.shape_cast %76 : vector<8x8xf32> to vector<1x8x8xf32>
    tpu.vector_store %arg9[%c1_55, %c0_56, %c0_57], %79 {strides = array<i32>} : memref<4x8x8xf32, #tpu.memory_space<vmem>>, vector<1x8x8xf32>,
    %c1_58 = arith.constant 1 : index
    %c0_59 = arith.constant 0 : index
    %c0_60 = arith.constant 0 : index
    %80 = vector.load %arg7[%c1_58, %c0_59, %c0_60] : memref<4x8x1xf32, #tpu.memory_space<vmem>>, vector<1x8x1xf32>
    %81 = vector.shape_cast %80 : vector<1x8x1xf32> to vector<8x1xf32>
    %82 = vector.shape_cast %56 : vector<8x1xf32> to vector<1x8x1xf32>
    tpu.vector_store %arg7[%c1_58, %c0_59, %c0_60], %82 {strides = array<i32>} : memref<4x8x1xf32, #tpu.memory_space<vmem>>, vector<1x8x1xf32>,
    %c0_61 = arith.constant 0 : index
    %c0_62 = arith.constant 0 : index
    %c16 = arith.constant 16 : index
    %83 = vector.load %arg3[%c0_61, %c0_62, %c16] : memref<1x8x32xf32, #tpu.memory_space<vmem>>, vector<1x8x8xf32>
    %84 = vector.shape_cast %83 : vector<1x8x8xf32> to vector<8x8xf32>
    %cst_63 = arith.constant 0.353553385 : f32
    %85 = vector.broadcast %cst_63 : f32 to vector<8x8xf32>
    %86 = arith.mulf %84, %85 : vector<8x8xf32>
    %c0_64 = arith.constant 0 : index
    %c0_65 = arith.constant 0 : index
    %c16_66 = arith.constant 16 : index
    %87 = vector.load %arg4[%c0_64, %c0_65, %c16_66] : memref<1x8x32xf32, #tpu.memory_space<vmem>>, vector<1x8x8xf32>
    %88 = vector.shape_cast %87 : vector<1x8x8xf32> to vector<8x8xf32>
    %c0_67 = arith.constant 0 : index
    %c0_68 = arith.constant 0 : index
    %c16_69 = arith.constant 16 : index
    %89 = vector.load %arg5[%c0_67, %c0_68, %c16_69] : memref<1x8x32xf32, #tpu.memory_space<vmem>>, vector<1x8x8xf32>
    %90 = vector.shape_cast %89 : vector<1x8x8xf32> to vector<8x8xf32>
    %cst_70 = arith.constant dense<0.000000e+00> : vector<8x8xf32>
    %91 = tpu.matmul %86, %88, %cst_70 {dimension_numbers = #tpu.dot_dimension_numbers<[1], [1], [0], [0], [0, 0, 1, 0], [], []>} : vector<8x8xf32>, vector<8x8xf32>, vector<8x8xf32> -> vector<8x8xf32>
    %c2 = arith.constant 2 : index
    %c0_71 = arith.constant 0 : index
    %c0_72 = arith.constant 0 : index
    %92 = vector.load %arg7[%c2, %c0_71, %c0_72] : memref<4x8x1xf32, #tpu.memory_space<vmem>>, vector<1x8x1xf32>
    %93 = vector.shape_cast %92 : vector<1x8x1xf32> to vector<8x1xf32>
    %cst_73 = arith.constant dense<0xFF800000> : vector<8xf32>
    %94 = vector.multi_reduction <maximumf>, %91, %cst_73 [1] : vector<8x8xf32> to vector<8xf32>
    %95 = vector.shape_cast %94 : vector<8xf32> to vector<8x1xf32>
    %96 = arith.maximumf %93, %95 : vector<8x1xf32>
    %97 = arith.subf %93, %96 : vector<8x1xf32>
    %98 = math.exp %97 : vector<8x1xf32>
    %99 = vector.broadcast %96 : vector<8x1xf32> to vector<8x8xf32>
    %100 = arith.subf %91, %99 : vector<8x8xf32>
    %101 = math.exp %100 : vector<8x8xf32>
    %c2_74 = arith.constant 2 : index
    %c0_75 = arith.constant 0 : index
    %c0_76 = arith.constant 0 : index
    %102 = vector.load %arg8[%c2_74, %c0_75, %c0_76] : memref<4x8x1xf32, #tpu.memory_space<vmem>>, vector<1x8x1xf32>
    %103 = vector.shape_cast %102 : vector<1x8x1xf32> to vector<8x1xf32>
    %104 = arith.mulf %98, %103 : vector<8x1xf32>
    %cst_77 = arith.constant dense<0.000000e+00> : vector<8xf32>
    %105 = vector.multi_reduction <add>, %101, %cst_77 [1] : vector<8x8xf32> to vector<8xf32>
    %106 = vector.shape_cast %105 : vector<8xf32> to vector<8x1xf32>
    %107 = arith.addf %104, %106 : vector<8x1xf32>
    %c2_78 = arith.constant 2 : index
    %c0_79 = arith.constant 0 : index
    %c0_80 = arith.constant 0 : index
    %108 = vector.load %arg8[%c2_78, %c0_79, %c0_80] : memref<4x8x1xf32, #tpu.memory_space<vmem>>, vector<1x8x1xf32>
    %109 = vector.shape_cast %108 : vector<1x8x1xf32> to vector<8x1xf32>
    %110 = vector.shape_cast %107 : vector<8x1xf32> to vector<1x8x1xf32>
    tpu.vector_store %arg8[%c2_78, %c0_79, %c0_80], %110 {strides = array<i32>} : memref<4x8x1xf32, #tpu.memory_space<vmem>>, vector<1x8x1xf32>,
    %c2_81 = arith.constant 2 : index
    %c0_82 = arith.constant 0 : index
    %c0_83 = arith.constant 0 : index
    %111 = vector.load %arg9[%c2_81, %c0_82, %c0_83] : memref<4x8x8xf32, #tpu.memory_space<vmem>>, vector<1x8x8xf32>
    %112 = vector.shape_cast %111 : vector<1x8x8xf32> to vector<8x8xf32>
    %113 = vector.broadcast %98 : vector<8x1xf32> to vector<8x8xf32>
    %114 = arith.mulf %113, %112 : vector<8x8xf32>
    %cst_84 = arith.constant dense<0.000000e+00> : vector<8x8xf32>
    %115 = tpu.matmul %101, %90, %cst_84 {dimension_numbers = #tpu.dot_dimension_numbers<[1], [0], [0], [1], [0, 0, 1, 1], [], []>} : vector<8x8xf32>, vector<8x8xf32>, vector<8x8xf32> -> vector<8x8xf32>
    %116 = arith.addf %114, %115 : vector<8x8xf32>
    %c2_85 = arith.constant 2 : index
    %c0_86 = arith.constant 0 : index
    %c0_87 = arith.constant 0 : index
    %117 = vector.load %arg9[%c2_85, %c0_86, %c0_87] : memref<4x8x8xf32, #tpu.memory_space<vmem>>, vector<1x8x8xf32>
    %118 = vector.shape_cast %117 : vector<1x8x8xf32> to vector<8x8xf32>
    %119 = vector.shape_cast %116 : vector<8x8xf32> to vector<1x8x8xf32>
    tpu.vector_store %arg9[%c2_85, %c0_86, %c0_87], %119 {strides = array<i32>} : memref<4x8x8xf32, #tpu.memory_space<vmem>>, vector<1x8x8xf32>,
    %c2_88 = arith.constant 2 : index
    %c0_89 = arith.constant 0 : index
    %c0_90 = arith.constant 0 : index
    %120 = vector.load %arg7[%c2_88, %c0_89, %c0_90] : memref<4x8x1xf32, #tpu.memory_space<vmem>>, vector<1x8x1xf32>
    %121 = vector.shape_cast %120 : vector<1x8x1xf32> to vector<8x1xf32>
    %122 = vector.shape_cast %96 : vector<8x1xf32> to vector<1x8x1xf32>
    tpu.vector_store %arg7[%c2_88, %c0_89, %c0_90], %122 {strides = array<i32>} : memref<4x8x1xf32, #tpu.memory_space<vmem>>, vector<1x8x1xf32>,
    %c0_91 = arith.constant 0 : index
    %c0_92 = arith.constant 0 : index
    %c24 = arith.constant 24 : index
    %123 = vector.load %arg3[%c0_91, %c0_92, %c24] : memref<1x8x32xf32, #tpu.memory_space<vmem>>, vector<1x8x8xf32>
    %124 = vector.shape_cast %123 : vector<1x8x8xf32> to vector<8x8xf32>
    %cst_93 = arith.constant 0.353553385 : f32
    %125 = vector.broadcast %cst_93 : f32 to vector<8x8xf32>
    %126 = arith.mulf %124, %125 : vector<8x8xf32>
    %c0_94 = arith.constant 0 : index
    %c0_95 = arith.constant 0 : index
    %c24_96 = arith.constant 24 : index
    %127 = vector.load %arg4[%c0_94, %c0_95, %c24_96] : memref<1x8x32xf32, #tpu.memory_space<vmem>>, vector<1x8x8xf32>
    %128 = vector.shape_cast %127 : vector<1x8x8xf32> to vector<8x8xf32>
    %c0_97 = arith.constant 0 : index
    %c0_98 = arith.constant 0 : index
    %c24_99 = arith.constant 24 : index
    %129 = vector.load %arg5[%c0_97, %c0_98, %c24_99] : memref<1x8x32xf32, #tpu.memory_space<vmem>>, vector<1x8x8xf32>
    %130 = vector.shape_cast %129 : vector<1x8x8xf32> to vector<8x8xf32>
    %cst_100 = arith.constant dense<0.000000e+00> : vector<8x8xf32>
    %131 = tpu.matmul %126, %128, %cst_100 {dimension_numbers = #tpu.dot_dimension_numbers<[1], [1], [0], [0], [0, 0, 1, 0], [], []>} : vector<8x8xf32>, vector<8x8xf32>, vector<8x8xf32> -> vector<8x8xf32>
    %c3 = arith.constant 3 : index
    %c0_101 = arith.constant 0 : index
    %c0_102 = arith.constant 0 : index
    %132 = vector.load %arg7[%c3, %c0_101, %c0_102] : memref<4x8x1xf32, #tpu.memory_space<vmem>>, vector<1x8x1xf32>
    %133 = vector.shape_cast %132 : vector<1x8x1xf32> to vector<8x1xf32>
    %cst_103 = arith.constant dense<0xFF800000> : vector<8xf32>
    %134 = vector.multi_reduction <maximumf>, %131, %cst_103 [1] : vector<8x8xf32> to vector<8xf32>
    %135 = vector.shape_cast %134 : vector<8xf32> to vector<8x1xf32>
    %136 = arith.maximumf %133, %135 : vector<8x1xf32>
    %137 = arith.subf %133, %136 : vector<8x1xf32>
    %138 = math.exp %137 : vector<8x1xf32>
    %139 = vector.broadcast %136 : vector<8x1xf32> to vector<8x8xf32>
    %140 = arith.subf %131, %139 : vector<8x8xf32>
    %141 = math.exp %140 : vector<8x8xf32>
    %c3_104 = arith.constant 3 : index
    %c0_105 = arith.constant 0 : index
    %c0_106 = arith.constant 0 : index
    %142 = vector.load %arg8[%c3_104, %c0_105, %c0_106] : memref<4x8x1xf32, #tpu.memory_space<vmem>>, vector<1x8x1xf32>
    %143 = vector.shape_cast %142 : vector<1x8x1xf32> to vector<8x1xf32>
    %144 = arith.mulf %138, %143 : vector<8x1xf32>
    %cst_107 = arith.constant dense<0.000000e+00> : vector<8xf32>
    %145 = vector.multi_reduction <add>, %141, %cst_107 [1] : vector<8x8xf32> to vector<8xf32>
    %146 = vector.shape_cast %145 : vector<8xf32> to vector<8x1xf32>
    %147 = arith.addf %144, %146 : vector<8x1xf32>
    %c3_108 = arith.constant 3 : index
    %c0_109 = arith.constant 0 : index
    %c0_110 = arith.constant 0 : index
    %148 = vector.load %arg8[%c3_108, %c0_109, %c0_110] : memref<4x8x1xf32, #tpu.memory_space<vmem>>, vector<1x8x1xf32>
    %149 = vector.shape_cast %148 : vector<1x8x1xf32> to vector<8x1xf32>
    %150 = vector.shape_cast %147 : vector<8x1xf32> to vector<1x8x1xf32>
    tpu.vector_store %arg8[%c3_108, %c0_109, %c0_110], %150 {strides = array<i32>} : memref<4x8x1xf32, #tpu.memory_space<vmem>>, vector<1x8x1xf32>,
    %c3_111 = arith.constant 3 : index
    %c0_112 = arith.constant 0 : index
    %c0_113 = arith.constant 0 : index
    %151 = vector.load %arg9[%c3_111, %c0_112, %c0_113] : memref<4x8x8xf32, #tpu.memory_space<vmem>>, vector<1x8x8xf32>
    %152 = vector.shape_cast %151 : vector<1x8x8xf32> to vector<8x8xf32>
    %153 = vector.broadcast %138 : vector<8x1xf32> to vector<8x8xf32>
    %154 = arith.mulf %153, %152 : vector<8x8xf32>
    %cst_114 = arith.constant dense<0.000000e+00> : vector<8x8xf32>
    %155 = tpu.matmul %141, %130, %cst_114 {dimension_numbers = #tpu.dot_dimension_numbers<[1], [0], [0], [1], [0, 0, 1, 1], [], []>} : vector<8x8xf32>, vector<8x8xf32>, vector<8x8xf32> -> vector<8x8xf32>
    %156 = arith.addf %154, %155 : vector<8x8xf32>
    %c3_115 = arith.constant 3 : index
    %c0_116 = arith.constant 0 : index
    %c0_117 = arith.constant 0 : index
    %157 = vector.load %arg9[%c3_115, %c0_116, %c0_117] : memref<4x8x8xf32, #tpu.memory_space<vmem>>, vector<1x8x8xf32>
    %158 = vector.shape_cast %157 : vector<1x8x8xf32> to vector<8x8xf32>
    %159 = vector.shape_cast %156 : vector<8x8xf32> to vector<1x8x8xf32>
    tpu.vector_store %arg9[%c3_115, %c0_116, %c0_117], %159 {strides = array<i32>} : memref<4x8x8xf32, #tpu.memory_space<vmem>>, vector<1x8x8xf32>,
    %c3_118 = arith.constant 3 : index
    %c0_119 = arith.constant 0 : index
    %c0_120 = arith.constant 0 : index
    %160 = vector.load %arg7[%c3_118, %c0_119, %c0_120] : memref<4x8x1xf32, #tpu.memory_space<vmem>>, vector<1x8x1xf32>
    %161 = vector.shape_cast %160 : vector<1x8x1xf32> to vector<8x1xf32>
    %162 = vector.shape_cast %136 : vector<8x1xf32> to vector<1x8x1xf32>
    tpu.vector_store %arg7[%c3_118, %c0_119, %c0_120], %162 {strides = array<i32>} : memref<4x8x1xf32, #tpu.memory_space<vmem>>, vector<1x8x1xf32>,
    %c0_i32_121 = arith.constant 0 : i32
    %163 = arith.cmpi eq, %arg2, %c0_i32_121 : i32
    %164 = arith.extui %163 : i1 to i32
    %c0_i32_122 = arith.constant 0 : i32
    %165 = arith.cmpi ne, %164, %c0_i32_122 : i32
    scf.if %165 {
      %c0_123 = arith.constant 0 : index
      %c0_124 = arith.constant 0 : index
      %c0_125 = arith.constant 0 : index
      %166 = vector.load %arg8[%c0_123, %c0_124, %c0_125] : memref<4x8x1xf32, #tpu.memory_space<vmem>>, vector<1x8x1xf32>
      %167 = vector.shape_cast %166 : vector<1x8x1xf32> to vector<8x1xf32>
      %168 = tpu.reciprocal %167 {approx = true} : vector<8x1xf32> -> vector<8x1xf32>
      %c0_126 = arith.constant 0 : index
      %c0_127 = arith.constant 0 : index
      %c0_128 = arith.constant 0 : index
      %169 = vector.load %arg9[%c0_126, %c0_127, %c0_128] : memref<4x8x8xf32, #tpu.memory_space<vmem>>, vector<1x8x8xf32>
      %170 = vector.shape_cast %169 : vector<1x8x8xf32> to vector<8x8xf32>
      %171 = vector.broadcast %168 : vector<8x1xf32> to vector<8x8xf32>
      %172 = arith.mulf %170, %171 : vector<8x8xf32>
      %c0_129 = arith.constant 0 : index
      %c0_130 = arith.constant 0 : index
      %c0_131 = arith.constant 0 : index
      %173 = vector.load %arg6[%c0_129, %c0_130, %c0_131] : memref<1x8x32xf32, #tpu.memory_space<vmem>>, vector<1x8x8xf32>
      %174 = vector.shape_cast %173 : vector<1x8x8xf32> to vector<8x8xf32>
      %175 = vector.shape_cast %172 : vector<8x8xf32> to vector<1x8x8xf32>
      tpu.vector_store %arg6[%c0_129, %c0_130, %c0_131], %175 {strides = array<i32>} : memref<1x8x32xf32, #tpu.memory_space<vmem>>, vector<1x8x8xf32>,
      %c1_132 = arith.constant 1 : index
      %c0_133 = arith.constant 0 : index
      %c0_134 = arith.constant 0 : index
      %176 = vector.load %arg8[%c1_132, %c0_133, %c0_134] : memref<4x8x1xf32, #tpu.memory_space<vmem>>, vector<1x8x1xf32>
      %177 = vector.shape_cast %176 : vector<1x8x1xf32> to vector<8x1xf32>
      %178 = tpu.reciprocal %177 {approx = true} : vector<8x1xf32> -> vector<8x1xf32>
      %c1_135 = arith.constant 1 : index
      %c0_136 = arith.constant 0 : index
      %c0_137 = arith.constant 0 : index
      %179 = vector.load %arg9[%c1_135, %c0_136, %c0_137] : memref<4x8x8xf32, #tpu.memory_space<vmem>>, vector<1x8x8xf32>
      %180 = vector.shape_cast %179 : vector<1x8x8xf32> to vector<8x8xf32>
      %181 = vector.broadcast %178 : vector<8x1xf32> to vector<8x8xf32>
      %182 = arith.mulf %180, %181 : vector<8x8xf32>
      %c0_138 = arith.constant 0 : index
      %c0_139 = arith.constant 0 : index
      %c8_140 = arith.constant 8 : index
      %183 = vector.load %arg6[%c0_138, %c0_139, %c8_140] : memref<1x8x32xf32, #tpu.memory_space<vmem>>, vector<1x8x8xf32>
      %184 = vector.shape_cast %183 : vector<1x8x8xf32> to vector<8x8xf32>
      %185 = vector.shape_cast %182 : vector<8x8xf32> to vector<1x8x8xf32>
      tpu.vector_store %arg6[%c0_138, %c0_139, %c8_140], %185 {strides = array<i32>} : memref<1x8x32xf32, #tpu.memory_space<vmem>>, vector<1x8x8xf32>,
      %c2_141 = arith.constant 2 : index
      %c0_142 = arith.constant 0 : index
      %c0_143 = arith.constant 0 : index
      %186 = vector.load %arg8[%c2_141, %c0_142, %c0_143] : memref<4x8x1xf32, #tpu.memory_space<vmem>>, vector<1x8x1xf32>
      %187 = vector.shape_cast %186 : vector<1x8x1xf32> to vector<8x1xf32>
      %188 = tpu.reciprocal %187 {approx = true} : vector<8x1xf32> -> vector<8x1xf32>
      %c2_144 = arith.constant 2 : index
      %c0_145 = arith.constant 0 : index
      %c0_146 = arith.constant 0 : index
      %189 = vector.load %arg9[%c2_144, %c0_145, %c0_146] : memref<4x8x8xf32, #tpu.memory_space<vmem>>, vector<1x8x8xf32>
      %190 = vector.shape_cast %189 : vector<1x8x8xf32> to vector<8x8xf32>
      %191 = vector.broadcast %188 : vector<8x1xf32> to vector<8x8xf32>
      %192 = arith.mulf %190, %191 : vector<8x8xf32>
      %c0_147 = arith.constant 0 : index
      %c0_148 = arith.constant 0 : index
      %c16_149 = arith.constant 16 : index
      %193 = vector.load %arg6[%c0_147, %c0_148, %c16_149] : memref<1x8x32xf32, #tpu.memory_space<vmem>>, vector<1x8x8xf32>
      %194 = vector.shape_cast %193 : vector<1x8x8xf32> to vector<8x8xf32>
      %195 = vector.shape_cast %192 : vector<8x8xf32> to vector<1x8x8xf32>
      tpu.vector_store %arg6[%c0_147, %c0_148, %c16_149], %195 {strides = array<i32>} : memref<1x8x32xf32, #tpu.memory_space<vmem>>, vector<1x8x8xf32>,
      %c3_150 = arith.constant 3 : index
      %c0_151 = arith.constant 0 : index
      %c0_152 = arith.constant 0 : index
      %196 = vector.load %arg8[%c3_150, %c0_151, %c0_152] : memref<4x8x1xf32, #tpu.memory_space<vmem>>, vector<1x8x1xf32>
      %197 = vector.shape_cast %196 : vector<1x8x1xf32> to vector<8x1xf32>
      %198 = tpu.reciprocal %197 {approx = true} : vector<8x1xf32> -> vector<8x1xf32>
      %c3_153 = arith.constant 3 : index
      %c0_154 = arith.constant 0 : index
      %c0_155 = arith.constant 0 : index
      %199 = vector.load %arg9[%c3_153, %c0_154, %c0_155] : memref<4x8x8xf32, #tpu.memory_space<vmem>>, vector<1x8x8xf32>
      %200 = vector.shape_cast %199 : vector<1x8x8xf32> to vector<8x8xf32>
      %201 = vector.broadcast %198 : vector<8x1xf32> to vector<8x8xf32>
      %202 = arith.mulf %200, %201 : vector<8x8xf32>
      %c0_156 = arith.constant 0 : index
      %c0_157 = arith.constant 0 : index
      %c24_158 = arith.constant 24 : index
      %203 = vector.load %arg6[%c0_156, %c0_157, %c24_158] : memref<1x8x32xf32, #tpu.memory_space<vmem>>, vector<1x8x8xf32>
      %204 = vector.shape_cast %203 : vector<1x8x8xf32> to vector<8x8xf32>
      %205 = vector.shape_cast %202 : vector<8x8xf32> to vector<1x8x8xf32>
      tpu.vector_store %arg6[%c0_156, %c0_157, %c24_158], %205 {strides = array<i32>} : memref<1x8x32xf32, #tpu.memory_space<vmem>>, vector<1x8x8xf32>,
    } else {
    }
    return
  }
  func.func @transform_0(%arg0: i32, %arg1: i32, %arg2: i32) -> (i32, i32, i32) {
    %c0_i32 = arith.constant 0 : i32
    %c0_i32_0 = arith.constant 0 : i32
    return %arg0, %arg1, %c0_i32 : i32, i32, i32
  }
  func.func @transform_1(%arg0: i32, %arg1: i32, %arg2: i32) -> (i32, i32, i32) {
    %c0_i32 = arith.constant 0 : i32
    %c0_i32_0 = arith.constant 0 : i32
    return %arg0, %arg2, %c0_i32 : i32, i32, i32
  }
  func.func @transform_2(%arg0: i32, %arg1: i32, %arg2: i32) -> (i32, i32, i32) {
    %c0_i32 = arith.constant 0 : i32
    %c0_i32_0 = arith.constant 0 : i32
    return %arg0, %arg2, %c0_i32 : i32, i32, i32
  }
  func.func @transform_3(%arg0: i32, %arg1: i32, %arg2: i32) -> (i32, i32, i32) {
    %c0_i32 = arith.constant 0 : i32
    %c0_i32_0 = arith.constant 0 : i32
    return %arg0, %arg1, %c0_i32 : i32, i32, i32
  }
}

module attributes {stable_mosaic.version = 11 : i64} {
  func.func @_linear_kernel(%arg0: i32, %arg1: i32, %arg2: i32, %arg3: memref<16x32xf32, #tpu.memory_space<vmem>>, %arg4: memref<32x32xf32, #tpu.memory_space<vmem>>, %arg5: memref<16x32xf32, #tpu.memory_space<vmem>>, %arg6: memref<16x32xf32, #tpu.memory_space<vmem>>) attributes {dimension_semantics = [#tpu.dimension_semantics<parallel>, #tpu.dimension_semantics<parallel>, #tpu.dimension_semantics<arbitrary>], iteration_bounds = array<i64: 1, 1, 1>, scalar_prefetch = 0 : i64, scratch_operands = 1 : i64, tpu.core_type = #tpu.core_type<tc>, window_params = [{transform_indices = @transform_0, window_bounds = array<i64: 16, 32>}, {transform_indices = @transform_1, window_bounds = array<i64: 32, 32>}, {transform_indices = @transform_2, window_bounds = array<i64: 16, 32>}]} {
    %c0_i32 = arith.constant 0 : i32
    %0 = arith.cmpi eq, %arg2, %c0_i32 : i32
    %1 = arith.extui %0 : i1 to i32
    %c0_i32_0 = arith.constant 0 : i32
    %2 = arith.cmpi ne, %1, %c0_i32_0 : i32
    scf.if %2 {
      %cst_10 = arith.constant 0.000000e+00 : f32
      %12 = vector.broadcast %cst_10 : f32 to vector<16x32xf32>
      %c0_11 = arith.constant 0 : index
      %c0_12 = arith.constant 0 : index
      %13 = vector.load %arg6[%c0_11, %c0_12] : memref<16x32xf32, #tpu.memory_space<vmem>>, vector<16x32xf32>
      tpu.vector_store %arg6[%c0_11, %c0_12], %12 {strides = array<i32>} : memref<16x32xf32, #tpu.memory_space<vmem>>, vector<16x32xf32>,
    } else {
    }
    %c0 = arith.constant 0 : index
    %c0_1 = arith.constant 0 : index
    %3 = vector.load %arg6[%c0, %c0_1] : memref<16x32xf32, #tpu.memory_space<vmem>>, vector<16x32xf32>
    %c0_2 = arith.constant 0 : index
    %c0_3 = arith.constant 0 : index
    %4 = vector.load %arg3[%c0_2, %c0_3] : memref<16x32xf32, #tpu.memory_space<vmem>>, vector<16x32xf32>
    %c0_4 = arith.constant 0 : index
    %c0_5 = arith.constant 0 : index
    %5 = vector.load %arg4[%c0_4, %c0_5] : memref<32x32xf32, #tpu.memory_space<vmem>>, vector<32x32xf32>
    %cst = arith.constant dense<0.000000e+00> : vector<16x32xf32>
    %6 = tpu.matmul %4, %5, %cst {dimension_numbers = #tpu.dot_dimension_numbers<[1], [0], [0], [1], [0, 0, 1, 1], [], []>} : vector<16x32xf32>, vector<32x32xf32>, vector<16x32xf32> -> vector<16x32xf32>
    %7 = arith.addf %3, %6 : vector<16x32xf32>
    %c0_6 = arith.constant 0 : index
    %c0_7 = arith.constant 0 : index
    %8 = vector.load %arg6[%c0_6, %c0_7] : memref<16x32xf32, #tpu.memory_space<vmem>>, vector<16x32xf32>
    tpu.vector_store %arg6[%c0_6, %c0_7], %7 {strides = array<i32>} : memref<16x32xf32, #tpu.memory_space<vmem>>, vector<16x32xf32>,
    %c0_i32_8 = arith.constant 0 : i32
    %9 = arith.cmpi eq, %arg2, %c0_i32_8 : i32
    %10 = arith.extui %9 : i1 to i32
    %c0_i32_9 = arith.constant 0 : i32
    %11 = arith.cmpi ne, %10, %c0_i32_9 : i32
    scf.if %11 {
      %c0_10 = arith.constant 0 : index
      %c0_11 = arith.constant 0 : index
      %12 = vector.load %arg6[%c0_10, %c0_11] : memref<16x32xf32, #tpu.memory_space<vmem>>, vector<16x32xf32>
      %c0_12 = arith.constant 0 : index
      %c0_13 = arith.constant 0 : index
      %13 = vector.load %arg5[%c0_12, %c0_13] : memref<16x32xf32, #tpu.memory_space<vmem>>, vector<16x32xf32>
      tpu.vector_store %arg5[%c0_12, %c0_13], %12 {strides = array<i32>} : memref<16x32xf32, #tpu.memory_space<vmem>>, vector<16x32xf32>,
    } else {
    }
    return
  }
  func.func @transform_0(%arg0: i32, %arg1: i32, %arg2: i32) -> (i32, i32) {
    %c0_i32 = arith.constant 0 : i32
    return %arg0, %arg2 : i32, i32
  }
  func.func @transform_1(%arg0: i32, %arg1: i32, %arg2: i32) -> (i32, i32) {
    %c0_i32 = arith.constant 0 : i32
    return %arg2, %arg1 : i32, i32
  }
  func.func @transform_2(%arg0: i32, %arg1: i32, %arg2: i32) -> (i32, i32) {
    %c0_i32 = arith.constant 0 : i32
    return %arg0, %arg1 : i32, i32
  }
}

module attributes {stable_mosaic.version = 11 : i64} {
  func.func @_linear_kernel(%arg0: i32, %arg1: i32, %arg2: i32, %arg3: memref<16x32xf32, #tpu.memory_space<vmem>>, %arg4: memref<32x32xf32, #tpu.memory_space<vmem>>, %arg5: memref<1x32xf32, #tpu.memory_space<vmem>>, %arg6: memref<16x32xf32, #tpu.memory_space<vmem>>, %arg7: memref<16x32xf32, #tpu.memory_space<vmem>>, %arg8: memref<16x32xf32, #tpu.memory_space<vmem>>) attributes {dimension_semantics = [#tpu.dimension_semantics<parallel>, #tpu.dimension_semantics<parallel>, #tpu.dimension_semantics<arbitrary>], iteration_bounds = array<i64: 1, 1, 1>, scalar_prefetch = 0 : i64, scratch_operands = 1 : i64, tpu.core_type = #tpu.core_type<tc>, window_params = [{transform_indices = @transform_0, window_bounds = array<i64: 16, 32>}, {transform_indices = @transform_1, window_bounds = array<i64: 32, 32>}, {transform_indices = @transform_2, window_bounds = array<i64: 1, 32>}, {transform_indices = @transform_3, window_bounds = array<i64: 16, 32>}, {transform_indices = @transform_4, window_bounds = array<i64: 16, 32>}]} {
    %c0_i32 = arith.constant 0 : i32
    %0 = arith.cmpi eq, %arg2, %c0_i32 : i32
    %1 = arith.extui %0 : i1 to i32
    %c0_i32_0 = arith.constant 0 : i32
    %2 = arith.cmpi ne, %1, %c0_i32_0 : i32
    scf.if %2 {
      %cst_10 = arith.constant 0.000000e+00 : f32
      %12 = vector.broadcast %cst_10 : f32 to vector<16x32xf32>
      %c0_11 = arith.constant 0 : index
      %c0_12 = arith.constant 0 : index
      %13 = vector.load %arg8[%c0_11, %c0_12] : memref<16x32xf32, #tpu.memory_space<vmem>>, vector<16x32xf32>
      tpu.vector_store %arg8[%c0_11, %c0_12], %12 {strides = array<i32>} : memref<16x32xf32, #tpu.memory_space<vmem>>, vector<16x32xf32>,
    } else {
    }
    %c0 = arith.constant 0 : index
    %c0_1 = arith.constant 0 : index
    %3 = vector.load %arg8[%c0, %c0_1] : memref<16x32xf32, #tpu.memory_space<vmem>>, vector<16x32xf32>
    %c0_2 = arith.constant 0 : index
    %c0_3 = arith.constant 0 : index
    %4 = vector.load %arg3[%c0_2, %c0_3] : memref<16x32xf32, #tpu.memory_space<vmem>>, vector<16x32xf32>
    %c0_4 = arith.constant 0 : index
    %c0_5 = arith.constant 0 : index
    %5 = vector.load %arg4[%c0_4, %c0_5] : memref<32x32xf32, #tpu.memory_space<vmem>>, vector<32x32xf32>
    %cst = arith.constant dense<0.000000e+00> : vector<16x32xf32>
    %6 = tpu.matmul %4, %5, %cst {dimension_numbers = #tpu.dot_dimension_numbers<[1], [0], [0], [1], [0, 0, 1, 1], [], []>} : vector<16x32xf32>, vector<32x32xf32>, vector<16x32xf32> -> vector<16x32xf32>
    %7 = arith.addf %3, %6 : vector<16x32xf32>
    %c0_6 = arith.constant 0 : index
    %c0_7 = arith.constant 0 : index
    %8 = vector.load %arg8[%c0_6, %c0_7] : memref<16x32xf32, #tpu.memory_space<vmem>>, vector<16x32xf32>
    tpu.vector_store %arg8[%c0_6, %c0_7], %7 {strides = array<i32>} : memref<16x32xf32, #tpu.memory_space<vmem>>, vector<16x32xf32>,
    %c0_i32_8 = arith.constant 0 : i32
    %9 = arith.cmpi eq, %arg2, %c0_i32_8 : i32
    %10 = arith.extui %9 : i1 to i32
    %c0_i32_9 = arith.constant 0 : i32
    %11 = arith.cmpi ne, %10, %c0_i32_9 : i32
    scf.if %11 {
      %c0_10 = arith.constant 0 : index
      %c0_11 = arith.constant 0 : index
      %12 = vector.load %arg8[%c0_10, %c0_11] : memref<16x32xf32, #tpu.memory_space<vmem>>, vector<16x32xf32>
      %c0_12 = arith.constant 0 : index
      %c0_13 = arith.constant 0 : index
      %13 = vector.load %arg5[%c0_12, %c0_13] : memref<1x32xf32, #tpu.memory_space<vmem>>, vector<1x32xf32>
      %14 = vector.broadcast %13 : vector<1x32xf32> to vector<16x32xf32>
      %15 = arith.addf %12, %14 : vector<16x32xf32>
      %c0_14 = arith.constant 0 : index
      %c0_15 = arith.constant 0 : index
      %16 = vector.load %arg6[%c0_14, %c0_15] : memref<16x32xf32, #tpu.memory_space<vmem>>, vector<16x32xf32>
      %17 = arith.addf %15, %16 : vector<16x32xf32>
      %c0_16 = arith.constant 0 : index
      %c0_17 = arith.constant 0 : index
      %18 = vector.load %arg7[%c0_16, %c0_17] : memref<16x32xf32, #tpu.memory_space<vmem>>, vector<16x32xf32>
      tpu.vector_store %arg7[%c0_16, %c0_17], %17 {strides = array<i32>} : memref<16x32xf32, #tpu.memory_space<vmem>>, vector<16x32xf32>,
    } else {
    }
    return
  }
  func.func @transform_0(%arg0: i32, %arg1: i32, %arg2: i32) -> (i32, i32) {
    %c0_i32 = arith.constant 0 : i32
    return %arg0, %arg2 : i32, i32
  }
  func.func @transform_1(%arg0: i32, %arg1: i32, %arg2: i32) -> (i32, i32) {
    %c0_i32 = arith.constant 0 : i32
    return %arg2, %arg1 : i32, i32
  }
  func.func @transform_2(%arg0: i32, %arg1: i32, %arg2: i32) -> (i32, i32) {
    %c0_i32 = arith.constant 0 : i32
    %c0_i32_0 = arith.constant 0 : i32
    return %c0_i32, %arg1 : i32, i32
  }
  func.func @transform_3(%arg0: i32, %arg1: i32, %arg2: i32) -> (i32, i32) {
    %c0_i32 = arith.constant 0 : i32
    return %arg0, %arg1 : i32, i32
  }
  func.func @transform_4(%arg0: i32, %arg1: i32, %arg2: i32) -> (i32, i32) {
    %c0_i32 = arith.constant 0 : i32
    return %arg0, %arg1 : i32, i32
  }
}

module attributes {stable_mosaic.version = 11 : i64} {
  func.func @_linear_kernel(%arg0: i32, %arg1: i32, %arg2: i32, %arg3: memref<16x128xf32, #tpu.memory_space<vmem>>, %arg4: memref<128x32xf32, #tpu.memory_space<vmem>>, %arg5: memref<1x32xf32, #tpu.memory_space<vmem>>, %arg6: memref<16x32xf32, #tpu.memory_space<vmem>>, %arg7: memref<16x32xf32, #tpu.memory_space<vmem>>, %arg8: memref<16x32xf32, #tpu.memory_space<vmem>>) attributes {dimension_semantics = [#tpu.dimension_semantics<parallel>, #tpu.dimension_semantics<parallel>, #tpu.dimension_semantics<arbitrary>], iteration_bounds = array<i64: 1, 1, 1>, scalar_prefetch = 0 : i64, scratch_operands = 1 : i64, tpu.core_type = #tpu.core_type<tc>, window_params = [{transform_indices = @transform_0, window_bounds = array<i64: 16, 128>}, {transform_indices = @transform_1, window_bounds = array<i64: 128, 32>}, {transform_indices = @transform_2, window_bounds = array<i64: 1, 32>}, {transform_indices = @transform_3, window_bounds = array<i64: 16, 32>}, {transform_indices = @transform_4, window_bounds = array<i64: 16, 32>}]} {
    %c0_i32 = arith.constant 0 : i32
    %0 = arith.cmpi eq, %arg2, %c0_i32 : i32
    %1 = arith.extui %0 : i1 to i32
    %c0_i32_0 = arith.constant 0 : i32
    %2 = arith.cmpi ne, %1, %c0_i32_0 : i32
    scf.if %2 {
      %cst_10 = arith.constant 0.000000e+00 : f32
      %12 = vector.broadcast %cst_10 : f32 to vector<16x32xf32>
      %c0_11 = arith.constant 0 : index
      %c0_12 = arith.constant 0 : index
      %13 = vector.load %arg8[%c0_11, %c0_12] : memref<16x32xf32, #tpu.memory_space<vmem>>, vector<16x32xf32>
      tpu.vector_store %arg8[%c0_11, %c0_12], %12 {strides = array<i32>} : memref<16x32xf32, #tpu.memory_space<vmem>>, vector<16x32xf32>,
    } else {
    }
    %c0 = arith.constant 0 : index
    %c0_1 = arith.constant 0 : index
    %3 = vector.load %arg8[%c0, %c0_1] : memref<16x32xf32, #tpu.memory_space<vmem>>, vector<16x32xf32>
    %c0_2 = arith.constant 0 : index
    %c0_3 = arith.constant 0 : index
    %4 = vector.load %arg3[%c0_2, %c0_3] : memref<16x128xf32, #tpu.memory_space<vmem>>, vector<16x128xf32>
    %c0_4 = arith.constant 0 : index
    %c0_5 = arith.constant 0 : index
    %5 = vector.load %arg4[%c0_4, %c0_5] : memref<128x32xf32, #tpu.memory_space<vmem>>, vector<128x32xf32>
    %cst = arith.constant dense<0.000000e+00> : vector<16x32xf32>
    %6 = tpu.matmul %4, %5, %cst {dimension_numbers = #tpu.dot_dimension_numbers<[1], [0], [0], [1], [0, 0, 1, 1], [], []>} : vector<16x128xf32>, vector<128x32xf32>, vector<16x32xf32> -> vector<16x32xf32>
    %7 = arith.addf %3, %6 : vector<16x32xf32>
    %c0_6 = arith.constant 0 : index
    %c0_7 = arith.constant 0 : index
    %8 = vector.load %arg8[%c0_6, %c0_7] : memref<16x32xf32, #tpu.memory_space<vmem>>, vector<16x32xf32>
    tpu.vector_store %arg8[%c0_6, %c0_7], %7 {strides = array<i32>} : memref<16x32xf32, #tpu.memory_space<vmem>>, vector<16x32xf32>,
    %c0_i32_8 = arith.constant 0 : i32
    %9 = arith.cmpi eq, %arg2, %c0_i32_8 : i32
    %10 = arith.extui %9 : i1 to i32
    %c0_i32_9 = arith.constant 0 : i32
    %11 = arith.cmpi ne, %10, %c0_i32_9 : i32
    scf.if %11 {
      %c0_10 = arith.constant 0 : index
      %c0_11 = arith.constant 0 : index
      %12 = vector.load %arg8[%c0_10, %c0_11] : memref<16x32xf32, #tpu.memory_space<vmem>>, vector<16x32xf32>
      %c0_12 = arith.constant 0 : index
      %c0_13 = arith.constant 0 : index
      %13 = vector.load %arg5[%c0_12, %c0_13] : memref<1x32xf32, #tpu.memory_space<vmem>>, vector<1x32xf32>
      %14 = vector.broadcast %13 : vector<1x32xf32> to vector<16x32xf32>
      %15 = arith.addf %12, %14 : vector<16x32xf32>
      %c0_14 = arith.constant 0 : index
      %c0_15 = arith.constant 0 : index
      %16 = vector.load %arg6[%c0_14, %c0_15] : memref<16x32xf32, #tpu.memory_space<vmem>>, vector<16x32xf32>
      %17 = arith.addf %15, %16 : vector<16x32xf32>
      %c0_16 = arith.constant 0 : index
      %c0_17 = arith.constant 0 : index
      %18 = vector.load %arg7[%c0_16, %c0_17] : memref<16x32xf32, #tpu.memory_space<vmem>>, vector<16x32xf32>
      tpu.vector_store %arg7[%c0_16, %c0_17], %17 {strides = array<i32>} : memref<16x32xf32, #tpu.memory_space<vmem>>, vector<16x32xf32>,
    } else {
    }
    return
  }
  func.func @transform_0(%arg0: i32, %arg1: i32, %arg2: i32) -> (i32, i32) {
    %c0_i32 = arith.constant 0 : i32
    return %arg0, %arg2 : i32, i32
  }
  func.func @transform_1(%arg0: i32, %arg1: i32, %arg2: i32) -> (i32, i32) {
    %c0_i32 = arith.constant 0 : i32
    return %arg2, %arg1 : i32, i32
  }
  func.func @transform_2(%arg0: i32, %arg1: i32, %arg2: i32) -> (i32, i32) {
    %c0_i32 = arith.constant 0 : i32
    %c0_i32_0 = arith.constant 0 : i32
    return %c0_i32, %arg1 : i32, i32
  }
  func.func @transform_3(%arg0: i32, %arg1: i32, %arg2: i32) -> (i32, i32) {
    %c0_i32 = arith.constant 0 : i32
    return %arg0, %arg1 : i32, i32
  }
  func.func @transform_4(%arg0: i32, %arg1: i32, %arg2: i32) -> (i32, i32) {
    %c0_i32 = arith.constant 0 : i32
    return %arg0, %arg1 : i32, i32
  }
}

module attributes {stable_mosaic.version = 11 : i64} {
  func.func @_geglu_kernel(%arg0: i32, %arg1: i32, %arg2: i32, %arg3: memref<16x32xf32, #tpu.memory_space<vmem>>, %arg4: memref<32x128xf32, #tpu.memory_space<vmem>>, %arg5: memref<32x128xf32, #tpu.memory_space<vmem>>, %arg6: memref<1x128xf32, #tpu.memory_space<vmem>>, %arg7: memref<1x128xf32, #tpu.memory_space<vmem>>, %arg8: memref<16x128xf32, #tpu.memory_space<vmem>>, %arg9: memref<16x128xf32, #tpu.memory_space<vmem>>, %arg10: memref<16x128xf32, #tpu.memory_space<vmem>>) attributes {dimension_semantics = [#tpu.dimension_semantics<parallel>, #tpu.dimension_semantics<parallel>, #tpu.dimension_semantics<arbitrary>], iteration_bounds = array<i64: 1, 1, 1>, scalar_prefetch = 0 : i64, scratch_operands = 2 : i64, tpu.core_type = #tpu.core_type<tc>, window_params = [{transform_indices = @transform_0, window_bounds = array<i64: 16, 32>}, {transform_indices = @transform_1, window_bounds = array<i64: 32, 128>}, {transform_indices = @transform_2, window_bounds = array<i64: 32, 128>}, {transform_indices = @transform_3, window_bounds = array<i64: 1, 128>}, {transform_indices = @transform_4, window_bounds = array<i64: 1, 128>}, {transform_indices = @transform_5, window_bounds = array<i64: 16, 128>}]} {
    %c0_i32 = arith.constant 0 : i32
    %0 = arith.cmpi eq, %arg2, %c0_i32 : i32
    %1 = arith.extui %0 : i1 to i32
    %c0_i32_0 = arith.constant 0 : i32
    %2 = arith.cmpi ne, %1, %c0_i32_0 : i32
    scf.if %2 {
      %cst_17 = arith.constant 0.000000e+00 : f32
      %17 = vector.broadcast %cst_17 : f32 to vector<16x128xf32>
      %c0_18 = arith.constant 0 : index
      %c0_19 = arith.constant 0 : index
      %18 = vector.load %arg9[%c0_18, %c0_19] : memref<16x128xf32, #tpu.memory_space<vmem>>, vector<16x128xf32>
      tpu.vector_store %arg9[%c0_18, %c0_19], %17 {strides = array<i32>} : memref<16x128xf32, #tpu.memory_space<vmem>>, vector<16x128xf32>,
      %cst_20 = arith.constant 0.000000e+00 : f32
      %19 = vector.broadcast %cst_20 : f32 to vector<16x128xf32>
      %c0_21 = arith.constant 0 : index
      %c0_22 = arith.constant 0 : index
      %20 = vector.load %arg10[%c0_21, %c0_22] : memref<16x128xf32, #tpu.memory_space<vmem>>, vector<16x128xf32>
      tpu.vector_store %arg10[%c0_21, %c0_22], %19 {strides = array<i32>} : memref<16x128xf32, #tpu.memory_space<vmem>>, vector<16x128xf32>,
    } else {
    }
    %c0 = arith.constant 0 : index
    %c0_1 = arith.constant 0 : index
    %3 = vector.load %arg3[%c0, %c0_1] : memref<16x32xf32, #tpu.memory_space<vmem>>, vector<16x32xf32>
    %c0_2 = arith.constant 0 : index
    %c0_3 = arith.constant 0 : index
    %4 = vector.load %arg9[%c0_2, %c0_3] : memref<16x128xf32, #tpu.memory_space<vmem>>, vector<16x128xf32>
    %c0_4 = arith.constant 0 : index
    %c0_5 = arith.constant 0 : index
    %5 = vector.load %arg4[%c0_4, %c0_5] : memref<32x128xf32, #tpu.memory_space<vmem>>, vector<32x128xf32>
    %cst = arith.constant dense<0.000000e+00> : vector<16x128xf32>
    %6 = tpu.matmul %3, %5, %cst {dimension_numbers = #tpu.dot_dimension_numbers<[1], [0], [0], [1], [0, 0, 1, 1], [], []>} : vector<16x32xf32>, vector<32x128xf32>, vector<16x128xf32> -> vector<16x128xf32>
    %7 = arith.addf %4, %6 : vector<16x128xf32>
    %c0_6 = arith.constant 0 : index
    %c0_7 = arith.constant 0 : index
    %8 = vector.load %arg9[%c0_6, %c0_7] : memref<16x128xf32, #tpu.memory_space<vmem>>, vector<16x128xf32>
    tpu.vector_store %arg9[%c0_6, %c0_7], %7 {strides = array<i32>} : memref<16x128xf32, #tpu.memory_space<vmem>>, vector<16x128xf32>,
    %c0_8 = arith.constant 0 : index
    %c0_9 = arith.constant 0 : index
    %9 = vector.load %arg10[%c0_8, %c0_9] : memref<16x128xf32, #tpu.memory_space<vmem>>, vector<16x128xf32>
    %c0_10 = arith.constant 0 : index
    %c0_11 = arith.constant 0 : index
    %10 = vector.load %arg5[%c0_10, %c0_11] : memref<32x128xf32, #tpu.memory_space<vmem>>, vector<32x128xf32>
    %cst_12 = arith.constant dense<0.000000e+00> : vector<16x128xf32>
    %11 = tpu.matmul %3, %10, %cst_12 {dimension_numbers = #tpu.dot_dimension_numbers<[1], [0], [0], [1], [0, 0, 1, 1], [], []>} : vector<16x32xf32>, vector<32x128xf32>, vector<16x128xf32> -> vector<16x128xf32>
    %12 = arith.addf %9, %11 : vector<16x128xf32>
    %c0_13 = arith.constant 0 : index
    %c0_14 = arith.constant 0 : index
    %13 = vector.load %arg10[%c0_13, %c0_14] : memref<16x128xf32, #tpu.memory_space<vmem>>, vector<16x128xf32>
    tpu.vector_store %arg10[%c0_13, %c0_14], %12 {strides = array<i32>} : memref<16x128xf32, #tpu.memory_space<vmem>>, vector<16x128xf32>,
    %c0_i32_15 = arith.constant 0 : i32
    %14 = arith.cmpi eq, %arg2, %c0_i32_15 : i32
    %15 = arith.extui %14 : i1 to i32
    %c0_i32_16 = arith.constant 0 : i32
    %16 = arith.cmpi ne, %15, %c0_i32_16 : i32
    scf.if %16 {
      %c0_17 = arith.constant 0 : index
      %c0_18 = arith.constant 0 : index
      %17 = vector.load %arg9[%c0_17, %c0_18] : memref<16x128xf32, #tpu.memory_space<vmem>>, vector<16x128xf32>
      %c0_19 = arith.constant 0 : index
      %c0_20 = arith.constant 0 : index
      %18 = vector.load %arg6[%c0_19, %c0_20] : memref<1x128xf32, #tpu.memory_space<vmem>>, vector<1x128xf32>
      %19 = vector.broadcast %18 : vector<1x128xf32> to vector<16x128xf32>
      %20 = arith.addf %17, %19 : vector<16x128xf32>
      %c0_21 = arith.constant 0 : index
      %c0_22 = arith.constant 0 : index
      %21 = vector.load %arg10[%c0_21, %c0_22] : memref<16x128xf32, #tpu.memory_space<vmem>>, vector<16x128xf32>
      %c0_23 = arith.constant 0 : index
      %c0_24 = arith.constant 0 : index
      %22 = vector.load %arg7[%c0_23, %c0_24] : memref<1x128xf32, #tpu.memory_space<vmem>>, vector<1x128xf32>
      %23 = vector.broadcast %22 : vector<1x128xf32> to vector<16x128xf32>
      %24 = arith.addf %21, %23 : vector<16x128xf32>
      %cst_25 = arith.constant 5.000000e-01 : f32
      %25 = vector.broadcast %cst_25 : f32 to vector<16x128xf32>
      %26 = arith.mulf %25, %24 : vector<16x128xf32>
      %cst_26 = arith.constant 0.707106769 : f32
      %27 = vector.broadcast %cst_26 : f32 to vector<16x128xf32>
      %28 = arith.mulf %24, %27 : vector<16x128xf32>
      %29 = math.erf %28 : vector<16x128xf32>
      %cst_27 = arith.constant 1.000000e+00 : f32
      %30 = vector.broadcast %cst_27 : f32 to vector<16x128xf32>
      %31 = arith.addf %30, %29 : vector<16x128xf32>
      %32 = arith.mulf %26, %31 : vector<16x128xf32>
      %33 = arith.mulf %20, %32 : vector<16x128xf32>
      %c0_28 = arith.constant 0 : index
      %c0_29 = arith.constant 0 : index
      %34 = vector.load %arg8[%c0_28, %c0_29] : memref<16x128xf32, #tpu.memory_space<vmem>>, vector<16x128xf32>
      tpu.vector_store %arg8[%c0_28, %c0_29], %33 {strides = array<i32>} : memref<16x128xf32, #tpu.memory_space<vmem>>, vector<16x128xf32>,
    } else {
    }
    return
  }
  func.func @transform_0(%arg0: i32, %arg1: i32, %arg2: i32) -> (i32, i32) {
    %c0_i32 = arith.constant 0 : i32
    return %arg0, %arg2 : i32, i32
  }
  func.func @transform_1(%arg0: i32, %arg1: i32, %arg2: i32) -> (i32, i32) {
    %c0_i32 = arith.constant 0 : i32
    return %arg2, %arg1 : i32, i32
  }
  func.func @transform_2(%arg0: i32, %arg1: i32, %arg2: i32) -> (i32, i32) {
    %c0_i32 = arith.constant 0 : i32
    return %arg2, %arg1 : i32, i32
  }
  func.func @transform_3(%arg0: i32, %arg1: i32, %arg2: i32) -> (i32, i32) {
    %c0_i32 = arith.constant 0 : i32
    %c0_i32_0 = arith.constant 0 : i32
    return %c0_i32, %arg1 : i32, i32
  }
  func.func @transform_4(%arg0: i32, %arg1: i32, %arg2: i32) -> (i32, i32) {
    %c0_i32 = arith.constant 0 : i32
    %c0_i32_0 = arith.constant 0 : i32
    return %c0_i32, %arg1 : i32, i32
  }
  func.func @transform_5(%arg0: i32, %arg1: i32, %arg2: i32) -> (i32, i32) {
    %c0_i32 = arith.constant 0 : i32
    return %arg0, %arg1 : i32, i32
  }
}

</mosaic_0001>

<llo_original>
// kernel: basic_transformer_block.18
$region0: #{basic_transformer_block.18}
  #allocation0 [shape = 'u32[]', space=smem, size = 0x4, offset = 0x4, fixed_abs, tag = 'smem constant byte address 0x4 - core index']
  #allocation1 [shape = 'u32[144,128]{1,0:T(1,128)}', space=vmem, size = 0x12000, scoped, tag = 'internal scratch']
  #allocation2 [shape = 'f32[16,32]{1,0:T(8,128)}', space=vmem, size = 0x2000, scoped, tag = 'scratch operand']
  %s0 = inlined_call_operand.vmem [shape: f32[16,32], index: 0, kind: input, shape index: {}]
  %s1 = inlined_call_operand.vmem [shape: f32[32,32], index: 1, kind: input, shape index: {}]
  %s2 = inlined_call_operand.vmem [shape: f32[16,32], index: 2, kind: output, shape index: {}]
  %s3 = sld [smem:[#allocation0]]
  $region26: #{basic_transformer_block.18} parent=0
    _
  %s5 = ssub.s32 1, %s3
  %s6 = scalar_select 0, %s5, %s3
  // Predicated region
  $region2: #{basic_transformer_block.18} parent=0 // pred_check
    _
  $region3: #{basic_transformer_block.18} parent=0 // pred_check_branch
    %8 = sbr.rel (0) target = $region5
  $region4: #{basic_transformer_block.18} parent=0 // pred_region
    _
  $region5: #{basic_transformer_block.18} parent=0 // pred_fallthru
    _
  // Predicated region
  $region6: #{basic_transformer_block.18} parent=0 // pred_check
    _
  $region7: #{basic_transformer_block.18} parent=0 // pred_check_branch
    %10 = sbr.rel (0) target = $region9
  $region8: #{basic_transformer_block.18} parent=0 // pred_region
    _
  $region9: #{basic_transformer_block.18} parent=0 // pred_fallthru
    _
  %p11 = scmp.eq.s32.totalorder 0, 0
  // Predicated region
  $region10: #{basic_transformer_block.18} parent=0 // pred_check
    %p12 = pneg %p11
  $region11: #{basic_transformer_block.18} parent=0 // pred_check_branch
    %14 = sbr.rel (%p12) target = $region13
  $region12: #{basic_transformer_block.18} parent=0 // pred_region
    %vm15 = vcmask 261120
    %16 = vst.msk [vmem:[#allocation2] sm:$0xff] %vm15, 0.0
    %17 = vst.msk [vmem:[#allocation2 + $0x8] sm:$0xff] %vm15, 0.0
  $region13: #{basic_transformer_block.18} parent=0 // pred_fallthru
    _
  %v18 = vld [vmem:[#allocation2] sm:$0xff]
  %v19 = vld [vmem:[#allocation2 + $0x8] sm:$0xff]
  %v20 = vld [vmem:[%s0] sm:$0xff]
  %v21 = vld [vmem:[%s0 + $0x8] sm:$0xff]
  %v22 = vld [vmem:[%s1] sm:$0xff]
  %v23 = vld [vmem:[%s1 + $0x8] sm:$0xff]
  %v24 = vld [vmem:[%s1 + $0x10] sm:$0xff]
  %v25 = vld [vmem:[%s1 + $0x18] sm:$0xff]
  %vm26 = vcmask 261120
  %v28 = vsel %vm26, %v20, 0
  %v31 = vsel %vm26, %v21, 0
  %33 = vmatprep.subr.mxu0 0.0
  %34 = vmatpush1.msra.mxu0 %v22
  %35 = vmatprep.subr.mxu0 0.0
  %36 = vmatpush1.msra.mxu0 %v23
  %37 = vmatprep.subr.mxu0 0.0
  %38 = vmatpush1.msra.mxu0 %v24
  %39 = vmatprep.subr.mxu0 0.0
  %40 = vmatpush1.msra.mxu0 %v25
  %41 = vmatprep.subr.mxu0 0.0
  %42 = vmatpush1.msra.mxu0 0.0
  %43 = vmatprep.subr.mxu0 0.0
  %44 = vmatpush1.msra.mxu0 0.0
  %45 = vmatprep.subr.mxu0 0.0
  %46 = vmatpush1.msra.mxu0 0.0
  %47 = vmatprep.subr.mxu0 0.0
  %48 = vmatpush1.msra.mxu0 0.0
  %49 = vmatprep.subr.mxu0 0.0
  %50 = vmatpush1.msra.mxu0 0.0
  %51 = vmatprep.subr.mxu0 0.0
  %52 = vmatpush1.msra.mxu0 0.0
  %53 = vmatprep.subr.mxu0 0.0
  %54 = vmatpush1.msra.mxu0 0.0
  %55 = vmatprep.subr.mxu0 0.0
  %56 = vmatpush1.msra.mxu0 0.0
  %57 = vmatprep.subr.mxu0 0.0
  %58 = vmatpush1.msra.mxu0 0.0
  %59 = vmatprep.subr.mxu0 0.0
  %60 = vmatpush1.msra.mxu0 0.0
  %61 = vmatprep.subr.mxu0 0.0
  %62 = vmatpush1.msra.mxu0 0.0
  %63 = vmatprep.subr.mxu0 0.0
  %64 = vmatpush1.msra.mxu0 0.0
  %65 = vmatprep.subr.mxu0 0.0
  %66 = vmatpush1.msra.mxu0 0.0
  %67 = vmatprep.subr.mxu0 0.0
  %68 = vmatpush1.msra.mxu0 0.0
  %69 = vmatprep.subr.mxu0 0.0
  %70 = vmatpush1.msra.mxu0 0.0
  %71 = vmatprep.subr.mxu0 0.0
  %72 = vmatpush1.msra.mxu0 0.0
  %73 = vmatprep.subr.mxu0 0.0
  %74 = vmatpush1.msra.mxu0 0.0
  %75 = vmatprep.subr.mxu0 0.0
  %76 = vmatpush1.msra.mxu0 0.0
  %77 = vmatprep.subr.mxu0 0.0
  %78 = vmatpush1.msra.mxu0 0.0
  %79 = vmatprep.subr.mxu0 0.0
  %80 = vmatpush1.msra.mxu0 0.0
  %81 = vmatprep.subr.mxu0 0.0
  %82 = vmatpush1.msra.mxu0 0.0
  %83 = vmatprep.subr.mxu0 0.0
  %84 = vmatpush1.msra.mxu0 0.0
  %85 = vmatprep.subr.mxu0 0.0
  %86 = vmatpush1.msra.mxu0 0.0
  %87 = vmatprep.subr.mxu0 0.0
  %88 = vmatpush1.msra.mxu0 0.0
  %89 = vmatprep.subr.mxu0 0.0
  %90 = vmatpush1.msra.mxu0 0.0
  %91 = vmatprep.subr.mxu0 0.0
  %92 = vmatpush1.msra.mxu0 0.0
  %93 = vmatprep.subr.mxu0 0.0
  %94 = vmatpush1.msra.mxu0 0.0
  %95 = vmatprep.subr.mxu0 0.0
  %96 = vmatpush1.msra.mxu0 0.0
  %97 = vmatprep.mubr.f32.mxu0 0.0
  %98 = vmatmul.mubr.f32.gmra.mrb[0].mxu0 %v28
  %v99 = vpop.f32.mrb[0].mxu0
  %v100 = vadd.f32 0.0, %v99
  %v101 = vpop.f32.mrb[0].mxu0
  %102 = vmatprep.mubr.f32.mxu0 0.0
  %103 = vmatmul.mubr.f32.gmra.mrb[0].mxu0 %v31
  %v104 = vpop.f32.mrb[0].mxu0
  %v105 = vadd.f32 0.0, %v104
  %v106 = vpop.f32.mrb[0].mxu0
  %107 = vdwg.mxu0
  %v108 = vadd.f32 %v18, %v100
  %v109 = vadd.f32 %v19, %v105
  %110 = vst.msk [vmem:[#allocation2] sm:$0xff] %vm26, %v108
  %111 = vst.msk [vmem:[#allocation2 + $0x8] sm:$0xff] %vm26, %v109
  // Predicated region
  $region14: #{basic_transformer_block.18} parent=0 // pred_check
    %p112 = pneg %p11
  $region15: #{basic_transformer_block.18} parent=0 // pred_check_branch
    %114 = sbr.rel (%p112) target = $region17
  $region16: #{basic_transformer_block.18} parent=0 // pred_region
    %v115 = vld [vmem:[#allocation2] sm:$0xff]
    %v116 = vld [vmem:[#allocation2 + $0x8] sm:$0xff]
    %117 = vst.msk [vmem:[%s2] sm:$0xff] %vm26, %v115
    %118 = vst.msk [vmem:[%s2 + $0x8] sm:$0xff] %vm26, %v116
  $region17: #{basic_transformer_block.18} parent=0 // pred_fallthru
    _
  // Predicated region
  $region18: #{basic_transformer_block.18} parent=0 // pred_check
    _
  $region19: #{basic_transformer_block.18} parent=0 // pred_check_branch
    %120 = sbr.rel (0) target = $region21
  $region20: #{basic_transformer_block.18} parent=0 // pred_region
    _
  $region21: #{basic_transformer_block.18} parent=0 // pred_fallthru
    _
  // Predicated region
  $region22: #{basic_transformer_block.18} parent=0 // pred_check
    _
  $region23: #{basic_transformer_block.18} parent=0 // pred_check_branch
    %122 = sbr.rel (0) target = $region25
  $region24: #{basic_transformer_block.18} parent=0 // pred_region
    _
  $region25: #{basic_transformer_block.18} parent=0 // pred_fallthru
    _

// kernel: basic_transformer_block.15
$region0: #{basic_transformer_block.15}
  #allocation0 [shape = 'u32[]', space=smem, size = 0x4, offset = 0x4, fixed_abs, tag = 'smem constant byte address 0x4 - core index']
  #allocation1 [shape = 'u32[144,128]{1,0:T(1,128)}', space=vmem, size = 0x12000, scoped, tag = 'internal scratch']
  %s0 = inlined_call_operand.vmem [shape: f32[16,32], index: 0, kind: input, shape index: {}]
  %s1 = inlined_call_operand.vmem [shape: f32[1,32], index: 1, kind: input, shape index: {}]
  %s2 = inlined_call_operand.vmem [shape: f32[1,32], index: 2, kind: input, shape index: {}]
  %s3 = inlined_call_operand.vmem [shape: f32[16,32], index: 3, kind: output, shape index: {}]
  %s4 = sld [smem:[#allocation0]]
  $region22: #{basic_transformer_block.15} parent=0
    _
  %s6 = ssub.s32 1, %s4
  %s7 = scalar_select 0, %s6, %s4
  // Predicated region
  $region2: #{basic_transformer_block.15} parent=0 // pred_check
    _
  $region3: #{basic_transformer_block.15} parent=0 // pred_check_branch
    %9 = sbr.rel (0) target = $region5
  $region4: #{basic_transformer_block.15} parent=0 // pred_region
    _
  $region5: #{basic_transformer_block.15} parent=0 // pred_fallthru
    _
  // Predicated region
  $region6: #{basic_transformer_block.15} parent=0 // pred_check
    _
  $region7: #{basic_transformer_block.15} parent=0 // pred_check_branch
    %11 = sbr.rel (0) target = $region9
  $region8: #{basic_transformer_block.15} parent=0 // pred_region
    _
  $region9: #{basic_transformer_block.15} parent=0 // pred_fallthru
    _
  // Predicated region
  $region10: #{basic_transformer_block.15} parent=0 // pred_check
    _
  $region11: #{basic_transformer_block.15} parent=0 // pred_check_branch
    %13 = sbr.rel (0) target = $region13
  $region12: #{basic_transformer_block.15} parent=0 // pred_region
    _
  $region13: #{basic_transformer_block.15} parent=0 // pred_fallthru
    _
  %v14 = vld [vmem:[%s0] sm:$0xff]
  %v15 = vld [vmem:[%s0 + $0x8] sm:$0xff]
  %vm16 = vcmask 261120
  %v17 = vsel %vm16, %v14, 0.0
  %18 = vadd.xlane.f32.xlu0 %v17
  %v19 = vpop.xlane.xlu0 %18
  %v20 = vsel %vm16, %v15, 0.0
  %21 = vadd.xlane.f32.xlu0 %v20
  %v22 = vpop.xlane.xlu0 %21
  %v23 = vrcp.pop 32.0
  %v24 = vmul.f32 %v19, %v23
  %v25 = vmul.f32 %v22, %v23
  %v26 = vsub.f32 %v14, %v24
  %v27 = vsub.f32 %v15, %v25
  %v28 = vmul.f32 %v26, %v26
  %v29 = vmul.f32 %v27, %v27
  %v30 = vsel %vm16, %v28, 0.0
  %31 = vadd.xlane.f32.xlu0 %v30
  %v32 = vpop.xlane.xlu0 %31
  %v33 = vsel %vm16, %v29, 0.0
  %34 = vadd.xlane.f32.xlu0 %v33
  %v35 = vpop.xlane.xlu0 %34
  %v36 = vmul.f32 %v32, %v23
  %v37 = vmul.f32 %v35, %v23
  %v38 = vadd.f32 %v36, 1e-05
  %v39 = vadd.f32 %v37, 1e-05
  %v40 = vrsqrt.pop %v38
  %v41 = vrsqrt.pop %v39
  %v42 = vmul.f32 %v26, %v40
  %v43 = vmul.f32 %v27, %v41
  %v44 = vld [vmem:[%s1] sm:$0x1]
  %v46 = vlaneseq
  %v47 = vshrl.u32 %v46, 7
  %v48 = vsub.s32 0, %v47
  %v49 = vrot.slane %v44, %v48
  %v51 = vmul.f32 %v42, %v49
  %v52 = vmul.f32 %v43, %v49
  %v53 = vld [vmem:[%s2] sm:$0x1]
  %v55 = vlaneseq
  %v56 = vshrl.u32 %v55, 7
  %v57 = vsub.s32 0, %v56
  %v58 = vrot.slane %v53, %v57
  %v60 = vadd.f32 %v51, %v58
  %v61 = vadd.f32 %v52, %v58
  %62 = vst.msk [vmem:[%s3] sm:$0xff] %vm16, %v60
  %63 = vst.msk [vmem:[%s3 + $0x8] sm:$0xff] %vm16, %v61
  // Predicated region
  $region14: #{basic_transformer_block.15} parent=0 // pred_check
    _
  $region15: #{basic_transformer_block.15} parent=0 // pred_check_branch
    %65 = sbr.rel (0) target = $region17
  $region16: #{basic_transformer_block.15} parent=0 // pred_region
    _
  $region17: #{basic_transformer_block.15} parent=0 // pred_fallthru
    _
  // Predicated region
  $region18: #{basic_transformer_block.15} parent=0 // pred_check
    _
  $region19: #{basic_transformer_block.15} parent=0 // pred_check_branch
    %67 = sbr.rel (0) target = $region21
  $region20: #{basic_transformer_block.15} parent=0 // pred_region
    _
  $region21: #{basic_transformer_block.15} parent=0 // pred_fallthru
    _

// kernel: basic_transformer_block.20
$region0: #{basic_transformer_block.20}
  #allocation0 [shape = 'u32[]', space=smem, size = 0x4, offset = 0x4, fixed_abs, tag = 'smem constant byte address 0x4 - core index']
  #allocation1 [shape = 'u32[144,128]{1,0:T(1,128)}', space=vmem, size = 0x12000, scoped, tag = 'internal scratch']
  #allocation2 [shape = 'f32[16,32]{1,0:T(8,128)}', space=vmem, size = 0x2000, scoped, tag = 'scratch operand']
  %s0 = inlined_call_operand.vmem [shape: f32[16,32], index: 0, kind: input, shape index: {}]
  %s1 = inlined_call_operand.vmem [shape: f32[32,32], index: 1, kind: input, shape index: {}]
  %s2 = inlined_call_operand.vmem [shape: f32[1,32], index: 2, kind: input, shape index: {}]
  %s3 = inlined_call_operand.vmem [shape: f32[16,32], index: 3, kind: input, shape index: {}]
  %s4 = inlined_call_operand.vmem [shape: f32[16,32], index: 4, kind: output, shape index: {}]
  %s5 = sld [smem:[#allocation0]]
  $region34: #{basic_transformer_block.20} parent=0
    _
  %s7 = ssub.s32 1, %s5
  %s8 = scalar_select 0, %s7, %s5
  // Predicated region
  $region2: #{basic_transformer_block.20} parent=0 // pred_check
    _
  $region3: #{basic_transformer_block.20} parent=0 // pred_check_branch
    %10 = sbr.rel (0) target = $region5
  $region4: #{basic_transformer_block.20} parent=0 // pred_region
    _
  $region5: #{basic_transformer_block.20} parent=0 // pred_fallthru
    _
  // Predicated region
  $region6: #{basic_transformer_block.20} parent=0 // pred_check
    _
  $region7: #{basic_transformer_block.20} parent=0 // pred_check_branch
    %12 = sbr.rel (0) target = $region9
  $region8: #{basic_transformer_block.20} parent=0 // pred_region
    _
  $region9: #{basic_transformer_block.20} parent=0 // pred_fallthru
    _
  // Predicated region
  $region10: #{basic_transformer_block.20} parent=0 // pred_check
    _
  $region11: #{basic_transformer_block.20} parent=0 // pred_check_branch
    %14 = sbr.rel (0) target = $region13
  $region12: #{basic_transformer_block.20} parent=0 // pred_region
    _
  $region13: #{basic_transformer_block.20} parent=0 // pred_fallthru
    _
  // Predicated region
  $region14: #{basic_transformer_block.20} parent=0 // pred_check
    _
  $region15: #{basic_transformer_block.20} parent=0 // pred_check_branch
    %16 = sbr.rel (0) target = $region17
  $region16: #{basic_transformer_block.20} parent=0 // pred_region
    _
  $region17: #{basic_transformer_block.20} parent=0 // pred_fallthru
    _
  %p17 = scmp.eq.s32.totalorder 0, 0
  // Predicated region
  $region18: #{basic_transformer_block.20} parent=0 // pred_check
    %p18 = pneg %p17
  $region19: #{basic_transformer_block.20} parent=0 // pred_check_branch
    %20 = sbr.rel (%p18) target = $region21
  $region20: #{basic_transformer_block.20} parent=0 // pred_region
    %vm21 = vcmask 261120
    %22 = vst.msk [vmem:[#allocation2] sm:$0xff] %vm21, 0.0
    %23 = vst.msk [vmem:[#allocation2 + $0x8] sm:$0xff] %vm21, 0.0
  $region21: #{basic_transformer_block.20} parent=0 // pred_fallthru
    _
  %v24 = vld [vmem:[#allocation2] sm:$0xff]
  %v25 = vld [vmem:[#allocation2 + $0x8] sm:$0xff]
  %v26 = vld [vmem:[%s0] sm:$0xff]
  %v27 = vld [vmem:[%s0 + $0x8] sm:$0xff]
  %v28 = vld [vmem:[%s1] sm:$0xff]
  %v29 = vld [vmem:[%s1 + $0x8] sm:$0xff]
  %v30 = vld [vmem:[%s1 + $0x10] sm:$0xff]
  %v31 = vld [vmem:[%s1 + $0x18] sm:$0xff]
  %vm32 = vcmask 261120
  %v34 = vsel %vm32, %v26, 0
  %v37 = vsel %vm32, %v27, 0
  %39 = vmatprep.subr.mxu0 0.0
  %40 = vmatpush1.msra.mxu0 %v28
  %41 = vmatprep.subr.mxu0 0.0
  %42 = vmatpush1.msra.mxu0 %v29
  %43 = vmatprep.subr.mxu0 0.0
  %44 = vmatpush1.msra.mxu0 %v30
  %45 = vmatprep.subr.mxu0 0.0
  %46 = vmatpush1.msra.mxu0 %v31
  %47 = vmatprep.subr.mxu0 0.0
  %48 = vmatpush1.msra.mxu0 0.0
  %49 = vmatprep.subr.mxu0 0.0
  %50 = vmatpush1.msra.mxu0 0.0
  %51 = vmatprep.subr.mxu0 0.0
  %52 = vmatpush1.msra.mxu0 0.0
  %53 = vmatprep.subr.mxu0 0.0
  %54 = vmatpush1.msra.mxu0 0.0
  %55 = vmatprep.subr.mxu0 0.0
  %56 = vmatpush1.msra.mxu0 0.0
  %57 = vmatprep.subr.mxu0 0.0
  %58 = vmatpush1.msra.mxu0 0.0
  %59 = vmatprep.subr.mxu0 0.0
  %60 = vmatpush1.msra.mxu0 0.0
  %61 = vmatprep.subr.mxu0 0.0
  %62 = vmatpush1.msra.mxu0 0.0
  %63 = vmatprep.subr.mxu0 0.0
  %64 = vmatpush1.msra.mxu0 0.0
  %65 = vmatprep.subr.mxu0 0.0
  %66 = vmatpush1.msra.mxu0 0.0
  %67 = vmatprep.subr.mxu0 0.0
  %68 = vmatpush1.msra.mxu0 0.0
  %69 = vmatprep.subr.mxu0 0.0
  %70 = vmatpush1.msra.mxu0 0.0
  %71 = vmatprep.subr.mxu0 0.0
  %72 = vmatpush1.msra.mxu0 0.0
  %73 = vmatprep.subr.mxu0 0.0
  %74 = vmatpush1.msra.mxu0 0.0
  %75 = vmatprep.subr.mxu0 0.0
  %76 = vmatpush1.msra.mxu0 0.0
  %77 = vmatprep.subr.mxu0 0.0
  %78 = vmatpush1.msra.mxu0 0.0
  %79 = vmatprep.subr.mxu0 0.0
  %80 = vmatpush1.msra.mxu0 0.0
  %81 = vmatprep.subr.mxu0 0.0
  %82 = vmatpush1.msra.mxu0 0.0
  %83 = vmatprep.subr.mxu0 0.0
  %84 = vmatpush1.msra.mxu0 0.0
  %85 = vmatprep.subr.mxu0 0.0
  %86 = vmatpush1.msra.mxu0 0.0
  %87 = vmatprep.subr.mxu0 0.0
  %88 = vmatpush1.msra.mxu0 0.0
  %89 = vmatprep.subr.mxu0 0.0
  %90 = vmatpush1.msra.mxu0 0.0
  %91 = vmatprep.subr.mxu0 0.0
  %92 = vmatpush1.msra.mxu0 0.0
  %93 = vmatprep.subr.mxu0 0.0
  %94 = vmatpush1.msra.mxu0 0.0
  %95 = vmatprep.subr.mxu0 0.0
  %96 = vmatpush1.msra.mxu0 0.0
  %97 = vmatprep.subr.mxu0 0.0
  %98 = vmatpush1.msra.mxu0 0.0
  %99 = vmatprep.subr.mxu0 0.0
  %100 = vmatpush1.msra.mxu0 0.0
  %101 = vmatprep.subr.mxu0 0.0
  %102 = vmatpush1.msra.mxu0 0.0
  %103 = vmatprep.mubr.f32.mxu0 0.0
  %104 = vmatmul.mubr.f32.gmra.mrb[0].mxu0 %v34
  %v105 = vpop.f32.mrb[0].mxu0
  %v106 = vadd.f32 0.0, %v105
  %v107 = vpop.f32.mrb[0].mxu0
  %108 = vmatprep.mubr.f32.mxu0 0.0
  %109 = vmatmul.mubr.f32.gmra.mrb[0].mxu0 %v37
  %v110 = vpop.f32.mrb[0].mxu0
  %v111 = vadd.f32 0.0, %v110
  %v112 = vpop.f32.mrb[0].mxu0
  %113 = vdwg.mxu0
  %v114 = vadd.f32 %v24, %v106
  %v115 = vadd.f32 %v25, %v111
  %116 = vst.msk [vmem:[#allocation2] sm:$0xff] %vm32, %v114
  %117 = vst.msk [vmem:[#allocation2 + $0x8] sm:$0xff] %vm32, %v115
  // Predicated region
  $region22: #{basic_transformer_block.20} parent=0 // pred_check
    %p118 = pneg %p17
  $region23: #{basic_transformer_block.20} parent=0 // pred_check_branch
    %120 = sbr.rel (%p118) target = $region25
  $region24: #{basic_transformer_block.20} parent=0 // pred_region
    %v121 = vld [vmem:[#allocation2] sm:$0xff]
    %v122 = vld [vmem:[#allocation2 + $0x8] sm:$0xff]
    %v123 = vld [vmem:[%s2] sm:$0x1]
    %v125 = vlaneseq
    %v126 = vshrl.u32 %v125, 7
    %v127 = vsub.s32 0, %v126
    %v128 = vrot.slane %v123, %v127
    %v130 = vadd.f32 %v121, %v128
    %v131 = vadd.f32 %v122, %v128
    %v132 = vld [vmem:[%s3] sm:$0xff]
    %v133 = vld [vmem:[%s3 + $0x8] sm:$0xff]
    %v134 = vadd.f32 %v130, %v132
    %v135 = vadd.f32 %v131, %v133
    %136 = vst.msk [vmem:[%s4] sm:$0xff] %vm32, %v134
    %137 = vst.msk [vmem:[%s4 + $0x8] sm:$0xff] %vm32, %v135
  $region25: #{basic_transformer_block.20} parent=0 // pred_fallthru
    _
  // Predicated region
  $region26: #{basic_transformer_block.20} parent=0 // pred_check
    _
  $region27: #{basic_transformer_block.20} parent=0 // pred_check_branch
    %139 = sbr.rel (0) target = $region29
  $region28: #{basic_transformer_block.20} parent=0 // pred_region
    _
  $region29: #{basic_transformer_block.20} parent=0 // pred_fallthru
    _
  // Predicated region
  $region30: #{basic_transformer_block.20} parent=0 // pred_check
    _
  $region31: #{basic_transformer_block.20} parent=0 // pred_check_branch
    %141 = sbr.rel (0) target = $region33
  $region32: #{basic_transformer_block.20} parent=0 // pred_region
    _
  $region33: #{basic_transformer_block.20} parent=0 // pred_fallthru
    _

// kernel: basic_transformer_block.19
$region0: #{basic_transformer_block.19}
  #allocation0 [shape = 'u32[]', space=smem, size = 0x4, offset = 0x4, fixed_abs, tag = 'smem constant byte address 0x4 - core index']
  #allocation1 [shape = 'u32[144,128]{1,0:T(1,128)}', space=vmem, size = 0x12000, scoped, tag = 'internal scratch']
  #allocation2 [shape = 'f32[4,8,1]{2,1,0:T(8,128)}', space=vmem, size = 0x4000, scoped, tag = 'scratch operand']
  #allocation3 [shape = 'f32[4,8,1]{2,1,0:T(8,128)}', space=vmem, size = 0x4000, scoped, tag = 'scratch operand']
  #allocation4 [shape = 'f32[4,8,8]{2,1,0:T(8,128)}', space=vmem, size = 0x4000, scoped, tag = 'scratch operand']
  %s0 = inlined_call_operand.vmem [shape: f32[2,8,32], index: 0, kind: input, shape index: {}]
  %s1 = inlined_call_operand.vmem [shape: f32[2,8,32], index: 1, kind: input, shape index: {}]
  %s2 = inlined_call_operand.vmem [shape: f32[2,8,32], index: 2, kind: input, shape index: {}]
  %s3 = inlined_call_operand.vmem [shape: f32[2,8,32], index: 3, kind: output, shape index: {}]
  %s4 = sld [smem:[#allocation0]]
  $region53: #{basic_transformer_block.19} parent=0
    _
  %s6 = ssub.s32 1, %s4
  %s7 = scalar_select 0, %s6, %s4
  loop: start=0, step=1, limit=4
  $region2: #{basic_transformer_block.19} parent=0 // loop_pre_header
    _
  $region3: #{basic_transformer_block.19} parent=0 // loop_header
    %s9 = sphi 0, %s13
    %p10 = scmp.ge.s32.totalorder %s9, 4
    %s16 = sphi 0, %s35
    %s17 = sphi 0, %s31
    %s18 = sphi 0, %s27
    %s19 = sphi 0, %s16
    %s20 = sphi 0, %s17
    %s21 = sphi 0, %s18
    %s22 = sphi 0, %s19
    %s23 = sphi 0, %s20
    %s24 = sphi 0, %s21
    %s40 = sphi 0, %s42
    %s43 = sphi 0, %s40
    %s44 = sphi 0, %s43
    %s60 = sphi 0, %s44
    %s68 = sphi 0, %s70
    %s71 = sphi 0, %s68
    %s72 = sphi 0, %s71
    %s88 = sphi 0, %s72
    %s96 = sphi 0, %s98
    %s99 = sphi 0, %s96
    %s100 = sphi 0, %s99
    %s116 = sphi 0, %s100
    %s124 = sphi 0, %s126
    %s127 = sphi 0, %s124
    %s128 = sphi 0, %s127
    %s144 = sphi 0, %s128
  $region4: #{basic_transformer_block.19} parent=0 // loop_header_branch
    %12 = sbr.rel (%p10) target = $region8
  $region5: #{basic_transformer_block.19} parent=0 // loop_body
    %s14 = ssub.s32 %s9, 1
    %s15 = ssub.s32 %s9, 2
    %s25 = sadd.s32 1, %s18
    %p26 = scmp.ge.s32.totalorder %s25, 1
    %s27 = scalar_select %p26, 0, %s25
    %s28 = sadd.s32 1, %s17
    %s29 = scalar_select %p26, %s28, %s17
    %p30 = scmp.ge.s32.totalorder %s29, 1
    %s31 = scalar_select %p30, 0, %s29
    %s32 = sadd.s32 1, %s16
    %s33 = scalar_select %p30, %s32, %s16
    %p34 = scmp.ge.s32.totalorder %s33, 2
    %s35 = scalar_select %p34, 0, %s33
    %s36 = ssub.s32 %s16, %s35
    %s37 = ssub.s32 %s17, %s31
    %s38 = sor.u32 %s36, %s37
    %p39 = scmp.eq.s32.totalorder %s38, 0
    %s41 = sadd.s32 %s40, 1
    %s42 = scalar_select %p39, %s40, %s41
    %p45 = pneg %p39
    %p46 = scmp.eq.s32.totalorder %s9, 1
    %p47 = por %p45, %p46
    %p48 = scmp.ne.s32.totalorder %s40, %s43
    %p49 = scmp.eq.s32.totalorder %s9, 0
    %p50 = por %p48, %p49
    %p51 = scmp.ne.s32.totalorder %s40, %s43
    %p52 = scmp.eq.s32.totalorder %s14, 1
    %p53 = por %p51, %p52
    %p54 = scmp.ne.s32.totalorder %s43, %s44
    %p55 = scmp.eq.s32.totalorder %s14, 0
    %p56 = por %p54, %p55
    %p57 = scmp.ne.s32.totalorder %s43, %s44
    %p58 = scmp.eq.s32.totalorder %s15, 1
    %p59 = por %p57, %p58
    %p61 = scmp.ne.s32.totalorder %s44, %s60
    %p62 = scmp.eq.s32.totalorder %s15, 0
    %p63 = por %p61, %p62
    %s64 = ssub.s32 %s16, %s35
    %s65 = ssub.s32 %s18, %s27
    %s66 = sor.u32 %s64, %s65
    %p67 = scmp.eq.s32.totalorder %s66, 0
    %s69 = sadd.s32 %s68, 1
    %s70 = scalar_select %p67, %s68, %s69
    %p73 = pneg %p67
    %p74 = scmp.eq.s32.totalorder %s9, 1
    %p75 = por %p73, %p74
    %p76 = scmp.ne.s32.totalorder %s68, %s71
    %p77 = scmp.eq.s32.totalorder %s9, 0
    %p78 = por %p76, %p77
    %p79 = scmp.ne.s32.totalorder %s68, %s71
    %p80 = scmp.eq.s32.totalorder %s14, 1
    %p81 = por %p79, %p80
    %p82 = scmp.ne.s32.totalorder %s71, %s72
    %p83 = scmp.eq.s32.totalorder %s14, 0
    %p84 = por %p82, %p83
    %p85 = scmp.ne.s32.totalorder %s71, %s72
    %p86 = scmp.eq.s32.totalorder %s15, 1
    %p87 = por %p85, %p86
    %p89 = scmp.ne.s32.totalorder %s72, %s88
    %p90 = scmp.eq.s32.totalorder %s15, 0
    %p91 = por %p89, %p90
    %s92 = ssub.s32 %s16, %s35
    %s93 = ssub.s32 %s18, %s27
    %s94 = sor.u32 %s92, %s93
    %p95 = scmp.eq.s32.totalorder %s94, 0
    %s97 = sadd.s32 %s96, 1
    %s98 = scalar_select %p95, %s96, %s97
    %p101 = pneg %p95
    %p102 = scmp.eq.s32.totalorder %s9, 1
    %p103 = por %p101, %p102
    %p104 = scmp.ne.s32.totalorder %s96, %s99
    %p105 = scmp.eq.s32.totalorder %s9, 0
    %p106 = por %p104, %p105
    %p107 = scmp.ne.s32.totalorder %s96, %s99
    %p108 = scmp.eq.s32.totalorder %s14, 1
    %p109 = por %p107, %p108
    %p110 = scmp.ne.s32.totalorder %s99, %s100
    %p111 = scmp.eq.s32.totalorder %s14, 0
    %p112 = por %p110, %p111
    %p113 = scmp.ne.s32.totalorder %s99, %s100
    %p114 = scmp.eq.s32.totalorder %s15, 1
    %p115 = por %p113, %p114
    %p117 = scmp.ne.s32.totalorder %s100, %s116
    %p118 = scmp.eq.s32.totalorder %s15, 0
    %p119 = por %p117, %p118
    %s120 = ssub.s32 %s16, %s35
    %s121 = ssub.s32 %s17, %s31
    %s122 = sor.u32 %s120, %s121
    %p123 = scmp.eq.s32.totalorder %s122, 0
    %s125 = sadd.s32 %s124, 1
    %s126 = scalar_select %p123, %s124, %s125
    %p129 = pneg %p123
    %p130 = scmp.eq.s32.totalorder %s9, 1
    %p131 = por %p129, %p130
    %p132 = scmp.ne.s32.totalorder %s124, %s127
    %p133 = scmp.eq.s32.totalorder %s9, 0
    %p134 = por %p132, %p133
    %p135 = scmp.ne.s32.totalorder %s124, %s127
    %p136 = scmp.eq.s32.totalorder %s14, 1
    %p137 = por %p135, %p136
    %p138 = scmp.ne.s32.totalorder %s127, %s128
    %p139 = scmp.eq.s32.totalorder %s14, 0
    %p140 = por %p138, %p139
    %p141 = scmp.ne.s32.totalorder %s127, %s128
    %p142 = scmp.eq.s32.totalorder %s15, 1
    %p143 = por %p141, %p142
    %p145 = scmp.ne.s32.totalorder %s128, %s144
    %p146 = scmp.eq.s32.totalorder %s15, 0
    %p147 = por %p145, %p146
    %p148 = scmp.le.s32.totalorder 1, %s9
    %p149 = scmp.lt.s32.totalorder %s9, 3
    %p150 = pnand %p148, %p149
    %p151 = pneg %p150
    // Predicated region
    $region9: #{basic_transformer_block.19} parent=5 // pred_check
      _
    $region10: #{basic_transformer_block.19} parent=5 // pred_check_branch
      %153 = sbr.rel (%p150) target = $region12
    $region11: #{basic_transformer_block.19} parent=5 // pred_region
      %s154 = ssub.s32 %s9, 1
    $region12: #{basic_transformer_block.19} parent=5 // pred_fallthru
      _
    %p155 = scmp.lt.s32.totalorder %s9, 2
    // Predicated region
    $region13: #{basic_transformer_block.19} parent=5 // pred_check
      %p156 = pneg %p155
    $region14: #{basic_transformer_block.19} parent=5 // pred_check_branch
      %158 = sbr.rel (%p156) target = $region16
    $region15: #{basic_transformer_block.19} parent=5 // pred_region
      // Predicated region
      $region17: #{basic_transformer_block.19} parent=15 // pred_check
        %p159 = pneg %p50
      $region18: #{basic_transformer_block.19} parent=15 // pred_check_branch
        %161 = sbr.rel (%p159) target = $region20
      $region19: #{basic_transformer_block.19} parent=15 // pred_region
        %p162 = scmp.lt.s32.totalorder %s16, 1
        %s163 = scalar_select %p162, %s16, 1
        %p164 = scmp.lt.s32.totalorder %s17, 0
        %s165 = scalar_select %p164, %s17, 0
        %s166 = sadd.s32 %s165, %s163
        %s167 = smul.addr %s166, 8
        %s168 = scalar_lea.vmem %s0, %s167
      $region20: #{basic_transformer_block.19} parent=15 // pred_fallthru
        _
      // Predicated region
      $region21: #{basic_transformer_block.19} parent=15 // pred_check
        %p169 = pneg %p78
      $region22: #{basic_transformer_block.19} parent=15 // pred_check_branch
        %171 = sbr.rel (%p169) target = $region24
      $region23: #{basic_transformer_block.19} parent=15 // pred_region
        %p172 = scmp.lt.s32.totalorder %s16, 1
        %s173 = scalar_select %p172, %s16, 1
        %p174 = scmp.lt.s32.totalorder %s18, 0
        %s175 = scalar_select %p174, %s18, 0
        %s176 = sadd.s32 %s175, %s173
        %s177 = smul.addr %s176, 8
        %s178 = scalar_lea.vmem %s1, %s177
      $region24: #{basic_transformer_block.19} parent=15 // pred_fallthru
        _
      // Predicated region
      $region25: #{basic_transformer_block.19} parent=15 // pred_check
        %p179 = pneg %p106
      $region26: #{basic_transformer_block.19} parent=15 // pred_check_branch
        %181 = sbr.rel (%p179) target = $region28
      $region27: #{basic_transformer_block.19} parent=15 // pred_region
        %p182 = scmp.lt.s32.totalorder %s16, 1
        %s183 = scalar_select %p182, %s16, 1
        %p184 = scmp.lt.s32.totalorder %s18, 0
        %s185 = scalar_select %p184, %s18, 0
        %s186 = sadd.s32 %s185, %s183
        %s187 = smul.addr %s186, 8
        %s188 = scalar_lea.vmem %s2, %s187
      $region28: #{basic_transformer_block.19} parent=15 // pred_fallthru
        _
    $region16: #{basic_transformer_block.19} parent=5 // pred_fallthru
      _
    %p189 = scmp.le.s32.totalorder 1, %s9
    %p190 = scmp.lt.s32.totalorder %s9, 3
    %p191 = pnand %p189, %p190
    %p192 = pneg %p191
    // Predicated region
    $region29: #{basic_transformer_block.19} parent=5 // pred_check
      _
    $region30: #{basic_transformer_block.19} parent=5 // pred_check_branch
      %194 = sbr.rel (%p191) target = $region32
    $region31: #{basic_transformer_block.19} parent=5 // pred_region
      %s195 = ssub.s32 %s9, 1
      %p196 = scmp.lt.s32.totalorder %s19, 1
      %s197 = scalar_select %p196, %s19, 1
      %p198 = scmp.lt.s32.totalorder %s20, 0
      %s199 = scalar_select %p198, %s20, 0
      %s200 = sadd.s32 %s199, %s197
      %s201 = smul.addr %s200, 8
      %s202 = scalar_lea.vmem %s0, %s201
      %p203 = pneg %p56
      %p204 = pneg %p53
      %p205 = scmp.lt.s32.totalorder %s19, 1
      %s206 = scalar_select %p205, %s19, 1
      %p207 = scmp.lt.s32.totalorder %s21, 0
      %s208 = scalar_select %p207, %s21, 0
      %s209 = sadd.s32 %s208, %s206
      %s210 = smul.addr %s209, 8
      %s211 = scalar_lea.vmem %s1, %s210
      %p212 = pneg %p84
      %p213 = pneg %p81
      %p214 = scmp.lt.s32.totalorder %s19, 1
      %s215 = scalar_select %p214, %s19, 1
      %p216 = scmp.lt.s32.totalorder %s21, 0
      %s217 = scalar_select %p216, %s21, 0
      %s218 = sadd.s32 %s217, %s215
      %s219 = smul.addr %s218, 8
      %s220 = scalar_lea.vmem %s2, %s219
      %p221 = pneg %p112
      %p222 = pneg %p109
      %p223 = pneg %p140
      %p224 = pneg %p137
      %p225 = scmp.lt.s32.totalorder %s19, 1
      %s226 = scalar_select %p225, %s19, 1
      %p227 = scmp.lt.s32.totalorder %s20, 0
      %s228 = scalar_select %p227, %s20, 0
      %s229 = sadd.s32 %s228, %s226
      %s230 = smul.addr %s229, 8
      %s231 = scalar_lea.vmem %s3, %s230
      %p232 = scmp.lt.s32.totalorder %s19, 1
      %s233 = scalar_select %p232, %s19, 1
      %p234 = scmp.lt.s32.totalorder %s20, 0
      %s235 = scalar_select %p234, %s20, 0
      %s236 = sadd.s32 %s235, %s233
      %s237 = smul.addr %s236, 8
      %s238 = scalar_lea.vmem %s0, %s237
      %p239 = scmp.lt.s32.totalorder %s19, 1
      %s240 = scalar_select %p239, %s19, 1
      %p241 = scmp.lt.s32.totalorder %s21, 0
      %s242 = scalar_select %p241, %s21, 0
      %s243 = sadd.s32 %s242, %s240
      %s244 = smul.addr %s243, 8
      %s245 = scalar_lea.vmem %s1, %s244
      %p246 = scmp.lt.s32.totalorder %s19, 1
      %s247 = scalar_select %p246, %s19, 1
      %p248 = scmp.lt.s32.totalorder %s21, 0
      %s249 = scalar_select %p248, %s21, 0
      %s250 = sadd.s32 %s249, %s247
      %s251 = smul.addr %s250, 8
      %s252 = scalar_lea.vmem %s2, %s251
      %p253 = scmp.lt.s32.totalorder %s19, 1
      %s254 = scalar_select %p253, %s19, 1
      %p255 = scmp.lt.s32.totalorder %s20, 0
      %s256 = scalar_select %p255, %s20, 0
      %s257 = sadd.s32 %s256, %s254
      %s258 = smul.addr %s257, 8
      %s259 = scalar_lea.vmem %s3, %s258
      %p260 = scmp.eq.s32.totalorder %s21, 0
      // Predicated region
      $region33: #{basic_transformer_block.19} parent=31 // pred_check
        %p261 = pneg %p260
      $region34: #{basic_transformer_block.19} parent=31 // pred_check_branch
        %263 = sbr.rel (%p261) target = $region36
      $region35: #{basic_transformer_block.19} parent=31 // pred_region
        %vm264 = vcmask 7168
        %265 = vst.msk [vmem:[#allocation2] sm:$0xff] %vm264, -inf
        %266 = vst.msk [vmem:[#allocation2 + $0x8] sm:$0xff] %vm264, -inf
        %267 = vst.msk [vmem:[#allocation2 + $0x10] sm:$0xff] %vm264, -inf
        %268 = vst.msk [vmem:[#allocation2 + $0x18] sm:$0xff] %vm264, -inf
        %269 = vst.msk [vmem:[#allocation3] sm:$0xff] %vm264, 0.0
        %270 = vst.msk [vmem:[#allocation3 + $0x8] sm:$0xff] %vm264, 0.0
        %271 = vst.msk [vmem:[#allocation3 + $0x10] sm:$0xff] %vm264, 0.0
        %272 = vst.msk [vmem:[#allocation3 + $0x18] sm:$0xff] %vm264, 0.0
        %vm273 = vcmask 64512
        %274 = vst.msk [vmem:[#allocation4] sm:$0xff] %vm273, 0.0
        %275 = vst.msk [vmem:[#allocation4 + $0x8] sm:$0xff] %vm273, 0.0
        %276 = vst.msk [vmem:[#allocation4 + $0x10] sm:$0xff] %vm273, 0.0
        %277 = vst.msk [vmem:[#allocation4 + $0x18] sm:$0xff] %vm273, 0.0
      $region36: #{basic_transformer_block.19} parent=31 // pred_fallthru
        _
      %v278 = vld [vmem:[%s238] sm:$0xff]
      %v279 = vmul.f32 %v278, 0.35355338
      %v280 = vld [vmem:[%s245] sm:$0xff]
      %v281 = vld [vmem:[%s252] sm:$0xff]
      %vm282 = vcmask 64512
      %v284 = vsel %vm282, %v279, 0
      %v287 = vsel %vm282, %v280, 0
      %289 = vmatprep.subr.mxu0 0.0
      %290 = vmatpush1.xpose.msra.mxu0 %v287
      %291 = vmatprep.subr.mxu0 0.0
      %292 = vmatpush1.xpose.msra.mxu0 0.0
      %293 = vmatprep.subr.mxu0 0.0
      %294 = vmatpush1.xpose.msra.mxu0 0.0
      %295 = vmatprep.subr.mxu0 0.0
      %296 = vmatpush1.xpose.msra.mxu0 0.0
      %297 = vmatprep.subr.mxu0 0.0
      %298 = vmatpush1.xpose.msra.mxu0 0.0
      %299 = vmatprep.subr.mxu0 0.0
      %300 = vmatpush1.xpose.msra.mxu0 0.0
      %301 = vmatprep.subr.mxu0 0.0
      %302 = vmatpush1.xpose.msra.mxu0 0.0
      %303 = vmatprep.subr.mxu0 0.0
      %304 = vmatpush1.xpose.msra.mxu0 0.0
      %305 = vmatprep.subr.mxu0 0.0
      %306 = vmatpush1.xpose.msra.mxu0 0.0
      %307 = vmatprep.subr.mxu0 0.0
      %308 = vmatpush1.xpose.msra.mxu0 0.0
      %309 = vmatprep.subr.mxu0 0.0
      %310 = vmatpush1.xpose.msra.mxu0 0.0
      %311 = vmatprep.subr.mxu0 0.0
      %312 = vmatpush1.xpose.msra.mxu0 0.0
      %313 = vmatprep.subr.mxu0 0.0
      %314 = vmatpush1.xpose.msra.mxu0 0.0
      %315 = vmatprep.subr.mxu0 0.0
      %316 = vmatpush1.xpose.msra.mxu0 0.0
      %317 = vmatprep.subr.mxu0 0.0
      %318 = vmatpush1.xpose.msra.mxu0 0.0
      %319 = vmatprep.subr.mxu0 0.0
      %320 = vmatpush1.xpose.msra.mxu0 0.0
      %321 = vmatprep.subr.mxu0 0.0
      %322 = vmatpush1.xpose.msra.mxu0 0.0
      %323 = vmatprep.subr.mxu0 0.0
      %324 = vmatpush1.xpose.msra.mxu0 0.0
      %325 = vmatprep.subr.mxu0 0.0
      %326 = vmatpush1.xpose.msra.mxu0 0.0
      %327 = vmatprep.subr.mxu0 0.0
      %328 = vmatpush1.xpose.msra.mxu0 0.0
      %329 = vmatprep.subr.mxu0 0.0
      %330 = vmatpush1.xpose.msra.mxu0 0.0
      %331 = vmatprep.subr.mxu0 0.0
      %332 = vmatpush1.xpose.msra.mxu0 0.0
      %333 = vmatprep.subr.mxu0 0.0
      %334 = vmatpush1.xpose.msra.mxu0 0.0
      %335 = vmatprep.subr.mxu0 0.0
      %336 = vmatpush1.xpose.msra.mxu0 0.0
      %337 = vmatprep.subr.mxu0 0.0
      %338 = vmatpush1.xpose.msra.mxu0 0.0
      %339 = vmatprep.subr.mxu0 0.0
      %340 = vmatpush1.xpose.msra.mxu0 0.0
      %341 = vmatprep.subr.mxu0 0.0
      %342 = vmatpush1.xpose.msra.mxu0 0.0
      %343 = vmatprep.subr.mxu0 0.0
      %344 = vmatpush1.xpose.msra.mxu0 0.0
      %345 = vmatprep.subr.mxu0 0.0
      %346 = vmatpush1.xpose.msra.mxu0 0.0
      %347 = vmatprep.subr.mxu0 0.0
      %348 = vmatpush1.xpose.msra.mxu0 0.0
      %349 = vmatprep.subr.mxu0 0.0
      %350 = vmatpush1.xpose.msra.mxu0 0.0
      %351 = vmatprep.subr.mxu0 0.0
      %352 = vmatpush1.xpose.msra.mxu0 0.0
      %353 = vmatprep.mubr.f32.mxu0 0.0
      %354 = vmatmul.mubr.f32.gmra.mrb[0].mxu0 %v284
      %v355 = vpop.f32.mrb[0].mxu0
      %v356 = vadd.f32 0.0, %v355
      %v357 = vpop.f32.mrb[0].mxu0
      %358 = vdwg.mxu0
      %v359 = vld [vmem:[#allocation2] sm:$0xff]
      %v360 = vsel %vm282, %v356, -inf
      %361 = vmax.xlane.f32.xlu0 %v360
      %v362 = vpop.xlane.xlu0 %361
      %v363 = vmax.f32 %v359, %v362
      %v364 = vsub.f32 %v359, %v363
      %v365 = vmul.f32 %v364, 1.442695
      %v366 = vpow.pop %v365
      %368 = vset.pattern.permute.xlu0 0
      %369 = vperm.xlu0 %368, %v363
      %v370 = vpop.permute.xlu0 %369
      %v372 = vsub.f32 %v356, %v370
      %v373 = vmul.f32 %v372, 1.442695
      %v374 = vpow.pop %v373
      %v375 = vld [vmem:[#allocation3] sm:$0xff]
      %v376 = vmul.f32 %v366, %v375
      %v377 = vsel %vm282, %v374, 0.0
      %378 = vadd.xlane.f32.xlu0 %v377
      %v379 = vpop.xlane.xlu0 %378
      %v380 = vadd.f32 %v376, %v379
      %vm381 = vcmask 7168
      %382 = vst.msk [vmem:[#allocation3] sm:$0xff] %vm381, %v380
      %v383 = vld [vmem:[#allocation4] sm:$0xff]
      %385 = vset.pattern.permute.xlu0 0
      %386 = vperm.xlu0 %385, %v366
      %v387 = vpop.permute.xlu0 %386
      %v389 = vmul.f32 %v387, %v383
      %v391 = vsel %vm282, %v374, 0
      %393 = vmatprep.subr.mxu0 0.0
      %394 = vmatpush1.msra.mxu0 %v281
      %395 = vmatprep.subr.mxu0 0.0
      %396 = vmatpush1.msra.mxu0 0.0
      %397 = vmatprep.subr.mxu0 0.0
      %398 = vmatpush1.msra.mxu0 0.0
      %399 = vmatprep.subr.mxu0 0.0
      %400 = vmatpush1.msra.mxu0 0.0
      %401 = vmatprep.subr.mxu0 0.0
      %402 = vmatpush1.msra.mxu0 0.0
      %403 = vmatprep.subr.mxu0 0.0
      %404 = vmatpush1.msra.mxu0 0.0
      %405 = vmatprep.subr.mxu0 0.0
      %406 = vmatpush1.msra.mxu0 0.0
      %407 = vmatprep.subr.mxu0 0.0
      %408 = vmatpush1.msra.mxu0 0.0
      %409 = vmatprep.subr.mxu0 0.0
      %410 = vmatpush1.msra.mxu0 0.0
      %411 = vmatprep.subr.mxu0 0.0
      %412 = vmatpush1.msra.mxu0 0.0
      %413 = vmatprep.subr.mxu0 0.0
      %414 = vmatpush1.msra.mxu0 0.0
      %415 = vmatprep.subr.mxu0 0.0
      %416 = vmatpush1.msra.mxu0 0.0
      %417 = vmatprep.subr.mxu0 0.0
      %418 = vmatpush1.msra.mxu0 0.0
      %419 = vmatprep.subr.mxu0 0.0
      %420 = vmatpush1.msra.mxu0 0.0
      %421 = vmatprep.subr.mxu0 0.0
      %422 = vmatpush1.msra.mxu0 0.0
      %423 = vmatprep.subr.mxu0 0.0
      %424 = vmatpush1.msra.mxu0 0.0
      %425 = vmatprep.subr.mxu0 0.0
      %426 = vmatpush1.msra.mxu0 0.0
      %427 = vmatprep.subr.mxu0 0.0
      %428 = vmatpush1.msra.mxu0 0.0
      %429 = vmatprep.subr.mxu0 0.0
      %430 = vmatpush1.msra.mxu0 0.0
      %431 = vmatprep.subr.mxu0 0.0
      %432 = vmatpush1.msra.mxu0 0.0
      %433 = vmatprep.subr.mxu0 0.0
      %434 = vmatpush1.msra.mxu0 0.0
      %435 = vmatprep.subr.mxu0 0.0
      %436 = vmatpush1.msra.mxu0 0.0
      %437 = vmatprep.subr.mxu0 0.0
      %438 = vmatpush1.msra.mxu0 0.0
      %439 = vmatprep.subr.mxu0 0.0
      %440 = vmatpush1.msra.mxu0 0.0
      %441 = vmatprep.subr.mxu0 0.0
      %442 = vmatpush1.msra.mxu0 0.0
      %443 = vmatprep.subr.mxu0 0.0
      %444 = vmatpush1.msra.mxu0 0.0
      %445 = vmatprep.subr.mxu0 0.0
      %446 = vmatpush1.msra.mxu0 0.0
      %447 = vmatprep.subr.mxu0 0.0
      %448 = vmatpush1.msra.mxu0 0.0
      %449 = vmatprep.subr.mxu0 0.0
      %450 = vmatpush1.msra.mxu0 0.0
      %451 = vmatprep.subr.mxu0 0.0
      %452 = vmatpush1.msra.mxu0 0.0
      %453 = vmatprep.subr.mxu0 0.0
      %454 = vmatpush1.msra.mxu0 0.0
      %455 = vmatprep.subr.mxu0 0.0
      %456 = vmatpush1.msra.mxu0 0.0
      %457 = vmatprep.mubr.f32.mxu0 0.0
      %458 = vmatmul.mubr.f32.gmra.mrb[0].mxu0 %v391
      %v459 = vpop.f32.mrb[0].mxu0
      %v460 = vadd.f32 0.0, %v459
      %v461 = vpop.f32.mrb[0].mxu0
      %462 = vdwg.mxu0
      %v463 = vadd.f32 %v389, %v460
      %464 = vst.msk [vmem:[#allocation4] sm:$0xff] %vm282, %v463
      %465 = vst.msk [vmem:[#allocation2] sm:$0xff] %vm381, %v363
      %v466 = vld [vmem:[%s238] sm:$0xff]
      %v467 = vmul.f32 %v466, 0.35355338
      %v468 = vld [vmem:[%s245] sm:$0xff]
      %v469 = vld [vmem:[%s252] sm:$0xff]
      %471 = vrot.lane.b32.xlu0 %v467, 120
      %v472 = vpop.permute.xlu0 %471
      %474 = vrot.lane.b32.xlu0 %v468, 120
      %v475 = vpop.permute.xlu0 %474
      %v476 = vsel %vm282, %v472, 0
      %v478 = vsel %vm282, %v475, 0
      %480 = vmatprep.subr.mxu0 0.0
      %481 = vmatpush1.xpose.msra.mxu0 %v478
      %482 = vmatprep.subr.mxu0 0.0
      %483 = vmatpush1.xpose.msra.mxu0 0.0
      %484 = vmatprep.subr.mxu0 0.0
      %485 = vmatpush1.xpose.msra.mxu0 0.0
      %486 = vmatprep.subr.mxu0 0.0
      %487 = vmatpush1.xpose.msra.mxu0 0.0
      %488 = vmatprep.subr.mxu0 0.0
      %489 = vmatpush1.xpose.msra.mxu0 0.0
      %490 = vmatprep.subr.mxu0 0.0
      %491 = vmatpush1.xpose.msra.mxu0 0.0
      %492 = vmatprep.subr.mxu0 0.0
      %493 = vmatpush1.xpose.msra.mxu0 0.0
      %494 = vmatprep.subr.mxu0 0.0
      %495 = vmatpush1.xpose.msra.mxu0 0.0
      %496 = vmatprep.subr.mxu0 0.0
      %497 = vmatpush1.xpose.msra.mxu0 0.0
      %498 = vmatprep.subr.mxu0 0.0
      %499 = vmatpush1.xpose.msra.mxu0 0.0
      %500 = vmatprep.subr.mxu0 0.0
      %501 = vmatpush1.xpose.msra.mxu0 0.0
      %502 = vmatprep.subr.mxu0 0.0
      %503 = vmatpush1.xpose.msra.mxu0 0.0
      %504 = vmatprep.subr.mxu0 0.0
      %505 = vmatpush1.xpose.msra.mxu0 0.0
      %506 = vmatprep.subr.mxu0 0.0
      %507 = vmatpush1.xpose.msra.mxu0 0.0
      %508 = vmatprep.subr.mxu0 0.0
      %509 = vmatpush1.xpose.msra.mxu0 0.0
      %510 = vmatprep.subr.mxu0 0.0
      %511 = vmatpush1.xpose.msra.mxu0 0.0
      %512 = vmatprep.subr.mxu0 0.0
      %513 = vmatpush1.xpose.msra.mxu0 0.0
      %514 = vmatprep.subr.mxu0 0.0
      %515 = vmatpush1.xpose.msra.mxu0 0.0
      %516 = vmatprep.subr.mxu0 0.0
      %517 = vmatpush1.xpose.msra.mxu0 0.0
      %518 = vmatprep.subr.mxu0 0.0
      %519 = vmatpush1.xpose.msra.mxu0 0.0
      %520 = vmatprep.subr.mxu0 0.0
      %521 = vmatpush1.xpose.msra.mxu0 0.0
      %522 = vmatprep.subr.mxu0 0.0
      %523 = vmatpush1.xpose.msra.mxu0 0.0
      %524 = vmatprep.subr.mxu0 0.0
      %525 = vmatpush1.xpose.msra.mxu0 0.0
      %526 = vmatprep.subr.mxu0 0.0
      %527 = vmatpush1.xpose.msra.mxu0 0.0
      %528 = vmatprep.subr.mxu0 0.0
      %529 = vmatpush1.xpose.msra.mxu0 0.0
      %530 = vmatprep.subr.mxu0 0.0
      %531 = vmatpush1.xpose.msra.mxu0 0.0
      %532 = vmatprep.subr.mxu0 0.0
      %533 = vmatpush1.xpose.msra.mxu0 0.0
      %534 = vmatprep.subr.mxu0 0.0
      %535 = vmatpush1.xpose.msra.mxu0 0.0
      %536 = vmatprep.subr.mxu0 0.0
      %537 = vmatpush1.xpose.msra.mxu0 0.0
      %538 = vmatprep.subr.mxu0 0.0
      %539 = vmatpush1.xpose.msra.mxu0 0.0
      %540 = vmatprep.subr.mxu0 0.0
      %541 = vmatpush1.xpose.msra.mxu0 0.0
      %542 = vmatprep.subr.mxu0 0.0
      %543 = vmatpush1.xpose.msra.mxu0 0.0
      %544 = vmatprep.mubr.f32.mxu0 0.0
      %545 = vmatmul.mubr.f32.gmra.mrb[0].mxu0 %v476
      %v546 = vpop.f32.mrb[0].mxu0
      %v547 = vadd.f32 0.0, %v546
      %v548 = vpop.f32.mrb[0].mxu0
      %549 = vdwg.mxu0
      %s550 = scalar_lea.vmem [#allocation2], 8
      %v551 = vld [vmem:[%s550] sm:$0xff]
      %v552 = vsel %vm282, %v547, -inf
      %553 = vmax.xlane.f32.xlu0 %v552
      %v554 = vpop.xlane.xlu0 %553
      %v555 = vmax.f32 %v551, %v554
      %v556 = vsub.f32 %v551, %v555
      %v557 = vmul.f32 %v556, 1.442695
      %v558 = vpow.pop %v557
      %560 = vset.pattern.permute.xlu0 0
      %561 = vperm.xlu0 %560, %v555
      %v562 = vpop.permute.xlu0 %561
      %v564 = vsub.f32 %v547, %v562
      %v565 = vmul.f32 %v564, 1.442695
      %v566 = vpow.pop %v565
      %s567 = scalar_lea.vmem [#allocation3], 8
      %v568 = vld [vmem:[%s567] sm:$0xff]
      %v569 = vmul.f32 %v558, %v568
      %v570 = vsel %vm282, %v566, 0.0
      %571 = vadd.xlane.f32.xlu0 %v570
      %v572 = vpop.xlane.xlu0 %571
      %v573 = vadd.f32 %v569, %v572
      %574 = vst.msk [vmem:[%s567] sm:$0xff] %vm381, %v573
      %s575 = scalar_lea.vmem [#allocation4], 8
      %v576 = vld [vmem:[%s575] sm:$0xff]
      %578 = vset.pattern.permute.xlu0 0
      %579 = vperm.xlu0 %578, %v558
      %v580 = vpop.permute.xlu0 %579
      %v582 = vmul.f32 %v580, %v576
      %584 = vrot.lane.b32.xlu0 %v469, 120
      %v585 = vpop.permute.xlu0 %584
      %v588 = vsel %vm282, %v566, 0
      %590 = vmatprep.subr.mxu0 0.0
      %591 = vmatpush1.msra.mxu0 %v585
      %592 = vmatprep.subr.mxu0 0.0
      %593 = vmatpush1.msra.mxu0 0.0
      %594 = vmatprep.subr.mxu0 0.0
      %595 = vmatpush1.msra.mxu0 0.0
      %596 = vmatprep.subr.mxu0 0.0
      %597 = vmatpush1.msra.mxu0 0.0
      %598 = vmatprep.subr.mxu0 0.0
      %599 = vmatpush1.msra.mxu0 0.0
      %600 = vmatprep.subr.mxu0 0.0
      %601 = vmatpush1.msra.mxu0 0.0
      %602 = vmatprep.subr.mxu0 0.0
      %603 = vmatpush1.msra.mxu0 0.0
      %604 = vmatprep.subr.mxu0 0.0
      %605 = vmatpush1.msra.mxu0 0.0
      %606 = vmatprep.subr.mxu0 0.0
      %607 = vmatpush1.msra.mxu0 0.0
      %608 = vmatprep.subr.mxu0 0.0
      %609 = vmatpush1.msra.mxu0 0.0
      %610 = vmatprep.subr.mxu0 0.0
      %611 = vmatpush1.msra.mxu0 0.0
      %612 = vmatprep.subr.mxu0 0.0
      %613 = vmatpush1.msra.mxu0 0.0
      %614 = vmatprep.subr.mxu0 0.0
      %615 = vmatpush1.msra.mxu0 0.0
      %616 = vmatprep.subr.mxu0 0.0
      %617 = vmatpush1.msra.mxu0 0.0
      %618 = vmatprep.subr.mxu0 0.0
      %619 = vmatpush1.msra.mxu0 0.0
      %620 = vmatprep.subr.mxu0 0.0
      %621 = vmatpush1.msra.mxu0 0.0
      %622 = vmatprep.subr.mxu0 0.0
      %623 = vmatpush1.msra.mxu0 0.0
      %624 = vmatprep.subr.mxu0 0.0
      %625 = vmatpush1.msra.mxu0 0.0
      %626 = vmatprep.subr.mxu0 0.0
      %627 = vmatpush1.msra.mxu0 0.0
      %628 = vmatprep.subr.mxu0 0.0
      %629 = vmatpush1.msra.mxu0 0.0
      %630 = vmatprep.subr.mxu0 0.0
      %631 = vmatpush1.msra.mxu0 0.0
      %632 = vmatprep.subr.mxu0 0.0
      %633 = vmatpush1.msra.mxu0 0.0
      %634 = vmatprep.subr.mxu0 0.0
      %635 = vmatpush1.msra.mxu0 0.0
      %636 = vmatprep.subr.mxu0 0.0
      %637 = vmatpush1.msra.mxu0 0.0
      %638 = vmatprep.subr.mxu0 0.0
      %639 = vmatpush1.msra.mxu0 0.0
      %640 = vmatprep.subr.mxu0 0.0
      %641 = vmatpush1.msra.mxu0 0.0
      %642 = vmatprep.subr.mxu0 0.0
      %643 = vmatpush1.msra.mxu0 0.0
      %644 = vmatprep.subr.mxu0 0.0
      %645 = vmatpush1.msra.mxu0 0.0
      %646 = vmatprep.subr.mxu0 0.0
      %647 = vmatpush1.msra.mxu0 0.0
      %648 = vmatprep.subr.mxu0 0.0
      %649 = vmatpush1.msra.mxu0 0.0
      %650 = vmatprep.subr.mxu0 0.0
      %651 = vmatpush1.msra.mxu0 0.0
      %652 = vmatprep.subr.mxu0 0.0
      %653 = vmatpush1.msra.mxu0 0.0
      %654 = vmatprep.mubr.f32.mxu0 0.0
      %655 = vmatmul.mubr.f32.gmra.mrb[0].mxu0 %v588
      %v656 = vpop.f32.mrb[0].mxu0
      %v657 = vadd.f32 0.0, %v656
      %v658 = vpop.f32.mrb[0].mxu0
      %659 = vdwg.mxu0
      %v660 = vadd.f32 %v582, %v657
      %661 = vst.msk [vmem:[%s575] sm:$0xff] %vm282, %v660
      %662 = vst.msk [vmem:[%s550] sm:$0xff] %vm381, %v555
      %v663 = vld [vmem:[%s238] sm:$0xff]
      %v664 = vmul.f32 %v663, 0.35355338
      %v665 = vld [vmem:[%s245] sm:$0xff]
      %v666 = vld [vmem:[%s252] sm:$0xff]
      %668 = vrot.lane.b32.xlu0 %v664, 112
      %v669 = vpop.permute.xlu0 %668
      %671 = vrot.lane.b32.xlu0 %v665, 112
      %v672 = vpop.permute.xlu0 %671
      %v673 = vsel %vm282, %v669, 0
      %v675 = vsel %vm282, %v672, 0
      %677 = vmatprep.subr.mxu0 0.0
      %678 = vmatpush1.xpose.msra.mxu0 %v675
      %679 = vmatprep.subr.mxu0 0.0
      %680 = vmatpush1.xpose.msra.mxu0 0.0
      %681 = vmatprep.subr.mxu0 0.0
      %682 = vmatpush1.xpose.msra.mxu0 0.0
      %683 = vmatprep.subr.mxu0 0.0
      %684 = vmatpush1.xpose.msra.mxu0 0.0
      %685 = vmatprep.subr.mxu0 0.0
      %686 = vmatpush1.xpose.msra.mxu0 0.0
      %687 = vmatprep.subr.mxu0 0.0
      %688 = vmatpush1.xpose.msra.mxu0 0.0
      %689 = vmatprep.subr.mxu0 0.0
      %690 = vmatpush1.xpose.msra.mxu0 0.0
      %691 = vmatprep.subr.mxu0 0.0
      %692 = vmatpush1.xpose.msra.mxu0 0.0
      %693 = vmatprep.subr.mxu0 0.0
      %694 = vmatpush1.xpose.msra.mxu0 0.0
      %695 = vmatprep.subr.mxu0 0.0
      %696 = vmatpush1.xpose.msra.mxu0 0.0
      %697 = vmatprep.subr.mxu0 0.0
      %698 = vmatpush1.xpose.msra.mxu0 0.0
      %699 = vmatprep.subr.mxu0 0.0
      %700 = vmatpush1.xpose.msra.mxu0 0.0
      %701 = vmatprep.subr.mxu0 0.0
      %702 = vmatpush1.xpose.msra.mxu0 0.0
      %703 = vmatprep.subr.mxu0 0.0
      %704 = vmatpush1.xpose.msra.mxu0 0.0
      %705 = vmatprep.subr.mxu0 0.0
      %706 = vmatpush1.xpose.msra.mxu0 0.0
      %707 = vmatprep.subr.mxu0 0.0
      %708 = vmatpush1.xpose.msra.mxu0 0.0
      %709 = vmatprep.subr.mxu0 0.0
      %710 = vmatpush1.xpose.msra.mxu0 0.0
      %711 = vmatprep.subr.mxu0 0.0
      %712 = vmatpush1.xpose.msra.mxu0 0.0
      %713 = vmatprep.subr.mxu0 0.0
      %714 = vmatpush1.xpose.msra.mxu0 0.0
      %715 = vmatprep.subr.mxu0 0.0
      %716 = vmatpush1.xpose.msra.mxu0 0.0
      %717 = vmatprep.subr.mxu0 0.0
      %718 = vmatpush1.xpose.msra.mxu0 0.0
      %719 = vmatprep.subr.mxu0 0.0
      %720 = vmatpush1.xpose.msra.mxu0 0.0
      %721 = vmatprep.subr.mxu0 0.0
      %722 = vmatpush1.xpose.msra.mxu0 0.0
      %723 = vmatprep.subr.mxu0 0.0
      %724 = vmatpush1.xpose.msra.mxu0 0.0
      %725 = vmatprep.subr.mxu0 0.0
      %726 = vmatpush1.xpose.msra.mxu0 0.0
      %727 = vmatprep.subr.mxu0 0.0
      %728 = vmatpush1.xpose.msra.mxu0 0.0
      %729 = vmatprep.subr.mxu0 0.0
      %730 = vmatpush1.xpose.msra.mxu0 0.0
      %731 = vmatprep.subr.mxu0 0.0
      %732 = vmatpush1.xpose.msra.mxu0 0.0
      %733 = vmatprep.subr.mxu0 0.0
      %734 = vmatpush1.xpose.msra.mxu0 0.0
      %735 = vmatprep.subr.mxu0 0.0
      %736 = vmatpush1.xpose.msra.mxu0 0.0
      %737 = vmatprep.subr.mxu0 0.0
      %738 = vmatpush1.xpose.msra.mxu0 0.0
      %739 = vmatprep.subr.mxu0 0.0
      %740 = vmatpush1.xpose.msra.mxu0 0.0
      %741 = vmatprep.mubr.f32.mxu0 0.0
      %742 = vmatmul.mubr.f32.gmra.mrb[0].mxu0 %v673
      %v743 = vpop.f32.mrb[0].mxu0
      %v744 = vadd.f32 0.0, %v743
      %v745 = vpop.f32.mrb[0].mxu0
      %746 = vdwg.mxu0
      %s747 = scalar_lea.vmem [#allocation2], 16
      %v748 = vld [vmem:[%s747] sm:$0xff]
      %v749 = vsel %vm282, %v744, -inf
      %750 = vmax.xlane.f32.xlu0 %v749
      %v751 = vpop.xlane.xlu0 %750
      %v752 = vmax.f32 %v748, %v751
      %v753 = vsub.f32 %v748, %v752
      %v754 = vmul.f32 %v753, 1.442695
      %v755 = vpow.pop %v754
      %757 = vset.pattern.permute.xlu0 0
      %758 = vperm.xlu0 %757, %v752
      %v759 = vpop.permute.xlu0 %758
      %v761 = vsub.f32 %v744, %v759
      %v762 = vmul.f32 %v761, 1.442695
      %v763 = vpow.pop %v762
      %s764 = scalar_lea.vmem [#allocation3], 16
      %v765 = vld [vmem:[%s764] sm:$0xff]
      %v766 = vmul.f32 %v755, %v765
      %v767 = vsel %vm282, %v763, 0.0
      %768 = vadd.xlane.f32.xlu0 %v767
      %v769 = vpop.xlane.xlu0 %768
      %v770 = vadd.f32 %v766, %v769
      %771 = vst.msk [vmem:[%s764] sm:$0xff] %vm381, %v770
      %s772 = scalar_lea.vmem [#allocation4], 16
      %v773 = vld [vmem:[%s772] sm:$0xff]
      %775 = vset.pattern.permute.xlu0 0
      %776 = vperm.xlu0 %775, %v755
      %v777 = vpop.permute.xlu0 %776
      %v779 = vmul.f32 %v777, %v773
      %781 = vrot.lane.b32.xlu0 %v666, 112
      %v782 = vpop.permute.xlu0 %781
      %v785 = vsel %vm282, %v763, 0
      %787 = vmatprep.subr.mxu0 0.0
      %788 = vmatpush1.msra.mxu0 %v782
      %789 = vmatprep.subr.mxu0 0.0
      %790 = vmatpush1.msra.mxu0 0.0
      %791 = vmatprep.subr.mxu0 0.0
      %792 = vmatpush1.msra.mxu0 0.0
      %793 = vmatprep.subr.mxu0 0.0
      %794 = vmatpush1.msra.mxu0 0.0
      %795 = vmatprep.subr.mxu0 0.0
      %796 = vmatpush1.msra.mxu0 0.0
      %797 = vmatprep.subr.mxu0 0.0
      %798 = vmatpush1.msra.mxu0 0.0
      %799 = vmatprep.subr.mxu0 0.0
      %800 = vmatpush1.msra.mxu0 0.0
      %801 = vmatprep.subr.mxu0 0.0
      %802 = vmatpush1.msra.mxu0 0.0
      %803 = vmatprep.subr.mxu0 0.0
      %804 = vmatpush1.msra.mxu0 0.0
      %805 = vmatprep.subr.mxu0 0.0
      %806 = vmatpush1.msra.mxu0 0.0
      %807 = vmatprep.subr.mxu0 0.0
      %808 = vmatpush1.msra.mxu0 0.0
      %809 = vmatprep.subr.mxu0 0.0
      %810 = vmatpush1.msra.mxu0 0.0
      %811 = vmatprep.subr.mxu0 0.0
      %812 = vmatpush1.msra.mxu0 0.0
      %813 = vmatprep.subr.mxu0 0.0
      %814 = vmatpush1.msra.mxu0 0.0
      %815 = vmatprep.subr.mxu0 0.0
      %816 = vmatpush1.msra.mxu0 0.0
      %817 = vmatprep.subr.mxu0 0.0
      %818 = vmatpush1.msra.mxu0 0.0
      %819 = vmatprep.subr.mxu0 0.0
      %820 = vmatpush1.msra.mxu0 0.0
      %821 = vmatprep.subr.mxu0 0.0
      %822 = vmatpush1.msra.mxu0 0.0
      %823 = vmatprep.subr.mxu0 0.0
      %824 = vmatpush1.msra.mxu0 0.0
      %825 = vmatprep.subr.mxu0 0.0
      %826 = vmatpush1.msra.mxu0 0.0
      %827 = vmatprep.subr.mxu0 0.0
      %828 = vmatpush1.msra.mxu0 0.0
      %829 = vmatprep.subr.mxu0 0.0
      %830 = vmatpush1.msra.mxu0 0.0
      %831 = vmatprep.subr.mxu0 0.0
      %832 = vmatpush1.msra.mxu0 0.0
      %833 = vmatprep.subr.mxu0 0.0
      %834 = vmatpush1.msra.mxu0 0.0
      %835 = vmatprep.subr.mxu0 0.0
      %836 = vmatpush1.msra.mxu0 0.0
      %837 = vmatprep.subr.mxu0 0.0
      %838 = vmatpush1.msra.mxu0 0.0
      %839 = vmatprep.subr.mxu0 0.0
      %840 = vmatpush1.msra.mxu0 0.0
      %841 = vmatprep.subr.mxu0 0.0
      %842 = vmatpush1.msra.mxu0 0.0
      %843 = vmatprep.subr.mxu0 0.0
      %844 = vmatpush1.msra.mxu0 0.0
      %845 = vmatprep.subr.mxu0 0.0
      %846 = vmatpush1.msra.mxu0 0.0
      %847 = vmatprep.subr.mxu0 0.0
      %848 = vmatpush1.msra.mxu0 0.0
      %849 = vmatprep.subr.mxu0 0.0
      %850 = vmatpush1.msra.mxu0 0.0
      %851 = vmatprep.mubr.f32.mxu0 0.0
      %852 = vmatmul.mubr.f32.gmra.mrb[0].mxu0 %v785
      %v853 = vpop.f32.mrb[0].mxu0
      %v854 = vadd.f32 0.0, %v853
      %v855 = vpop.f32.mrb[0].mxu0
      %856 = vdwg.mxu0
      %v857 = vadd.f32 %v779, %v854
      %858 = vst.msk [vmem:[%s772] sm:$0xff] %vm282, %v857
      %859 = vst.msk [vmem:[%s747] sm:$0xff] %vm381, %v752
      %v860 = vld [vmem:[%s238] sm:$0xff]
      %v861 = vmul.f32 %v860, 0.35355338
      %v862 = vld [vmem:[%s245] sm:$0xff]
      %v863 = vld [vmem:[%s252] sm:$0xff]
      %865 = vrot.lane.b32.xlu0 %v861, 104
      %v866 = vpop.permute.xlu0 %865
      %868 = vrot.lane.b32.xlu0 %v862, 104
      %v869 = vpop.permute.xlu0 %868
      %v870 = vsel %vm282, %v866, 0
      %v872 = vsel %vm282, %v869, 0
      %874 = vmatprep.subr.mxu0 0.0
      %875 = vmatpush1.xpose.msra.mxu0 %v872
      %876 = vmatprep.subr.mxu0 0.0
      %877 = vmatpush1.xpose.msra.mxu0 0.0
      %878 = vmatprep.subr.mxu0 0.0
      %879 = vmatpush1.xpose.msra.mxu0 0.0
      %880 = vmatprep.subr.mxu0 0.0
      %881 = vmatpush1.xpose.msra.mxu0 0.0
      %882 = vmatprep.subr.mxu0 0.0
      %883 = vmatpush1.xpose.msra.mxu0 0.0
      %884 = vmatprep.subr.mxu0 0.0
      %885 = vmatpush1.xpose.msra.mxu0 0.0
      %886 = vmatprep.subr.mxu0 0.0
      %887 = vmatpush1.xpose.msra.mxu0 0.0
      %888 = vmatprep.subr.mxu0 0.0
      %889 = vmatpush1.xpose.msra.mxu0 0.0
      %890 = vmatprep.subr.mxu0 0.0
      %891 = vmatpush1.xpose.msra.mxu0 0.0
      %892 = vmatprep.subr.mxu0 0.0
      %893 = vmatpush1.xpose.msra.mxu0 0.0
      %894 = vmatprep.subr.mxu0 0.0
      %895 = vmatpush1.xpose.msra.mxu0 0.0
      %896 = vmatprep.subr.mxu0 0.0
      %897 = vmatpush1.xpose.msra.mxu0 0.0
      %898 = vmatprep.subr.mxu0 0.0
      %899 = vmatpush1.xpose.msra.mxu0 0.0
      %900 = vmatprep.subr.mxu0 0.0
      %901 = vmatpush1.xpose.msra.mxu0 0.0
      %902 = vmatprep.subr.mxu0 0.0
      %903 = vmatpush1.xpose.msra.mxu0 0.0
      %904 = vmatprep.subr.mxu0 0.0
      %905 = vmatpush1.xpose.msra.mxu0 0.0
      %906 = vmatprep.subr.mxu0 0.0
      %907 = vmatpush1.xpose.msra.mxu0 0.0
      %908 = vmatprep.subr.mxu0 0.0
      %909 = vmatpush1.xpose.msra.mxu0 0.0
      %910 = vmatprep.subr.mxu0 0.0
      %911 = vmatpush1.xpose.msra.mxu0 0.0
      %912 = vmatprep.subr.mxu0 0.0
      %913 = vmatpush1.xpose.msra.mxu0 0.0
      %914 = vmatprep.subr.mxu0 0.0
      %915 = vmatpush1.xpose.msra.mxu0 0.0
      %916 = vmatprep.subr.mxu0 0.0
      %917 = vmatpush1.xpose.msra.mxu0 0.0
      %918 = vmatprep.subr.mxu0 0.0
      %919 = vmatpush1.xpose.msra.mxu0 0.0
      %920 = vmatprep.subr.mxu0 0.0
      %921 = vmatpush1.xpose.msra.mxu0 0.0
      %922 = vmatprep.subr.mxu0 0.0
      %923 = vmatpush1.xpose.msra.mxu0 0.0
      %924 = vmatprep.subr.mxu0 0.0
      %925 = vmatpush1.xpose.msra.mxu0 0.0
      %926 = vmatprep.subr.mxu0 0.0
      %927 = vmatpush1.xpose.msra.mxu0 0.0
      %928 = vmatprep.subr.mxu0 0.0
      %929 = vmatpush1.xpose.msra.mxu0 0.0
      %930 = vmatprep.subr.mxu0 0.0
      %931 = vmatpush1.xpose.msra.mxu0 0.0
      %932 = vmatprep.subr.mxu0 0.0
      %933 = vmatpush1.xpose.msra.mxu0 0.0
      %934 = vmatprep.subr.mxu0 0.0
      %935 = vmatpush1.xpose.msra.mxu0 0.0
      %936 = vmatprep.subr.mxu0 0.0
      %937 = vmatpush1.xpose.msra.mxu0 0.0
      %938 = vmatprep.mubr.f32.mxu0 0.0
      %939 = vmatmul.mubr.f32.gmra.mrb[0].mxu0 %v870
      %v940 = vpop.f32.mrb[0].mxu0
      %v941 = vadd.f32 0.0, %v940
      %v942 = vpop.f32.mrb[0].mxu0
      %943 = vdwg.mxu0
      %s944 = scalar_lea.vmem [#allocation2], 24
      %v945 = vld [vmem:[%s944] sm:$0xff]
      %v946 = vsel %vm282, %v941, -inf
      %947 = vmax.xlane.f32.xlu0 %v946
      %v948 = vpop.xlane.xlu0 %947
      %v949 = vmax.f32 %v945, %v948
      %v950 = vsub.f32 %v945, %v949
      %v951 = vmul.f32 %v950, 1.442695
      %v952 = vpow.pop %v951
      %954 = vset.pattern.permute.xlu0 0
      %955 = vperm.xlu0 %954, %v949
      %v956 = vpop.permute.xlu0 %955
      %v958 = vsub.f32 %v941, %v956
      %v959 = vmul.f32 %v958, 1.442695
      %v960 = vpow.pop %v959
      %s961 = scalar_lea.vmem [#allocation3], 24
      %v962 = vld [vmem:[%s961] sm:$0xff]
      %v963 = vmul.f32 %v952, %v962
      %v964 = vsel %vm282, %v960, 0.0
      %965 = vadd.xlane.f32.xlu0 %v964
      %v966 = vpop.xlane.xlu0 %965
      %v967 = vadd.f32 %v963, %v966
      %968 = vst.msk [vmem:[%s961] sm:$0xff] %vm381, %v967
      %s969 = scalar_lea.vmem [#allocation4], 24
      %v970 = vld [vmem:[%s969] sm:$0xff]
      %972 = vset.pattern.permute.xlu0 0
      %973 = vperm.xlu0 %972, %v952
      %v974 = vpop.permute.xlu0 %973
      %v976 = vmul.f32 %v974, %v970
      %978 = vrot.lane.b32.xlu0 %v863, 104
      %v979 = vpop.permute.xlu0 %978
      %v982 = vsel %vm282, %v960, 0
      %984 = vmatprep.subr.mxu0 0.0
      %985 = vmatpush1.msra.mxu0 %v979
      %986 = vmatprep.subr.mxu0 0.0
      %987 = vmatpush1.msra.mxu0 0.0
      %988 = vmatprep.subr.mxu0 0.0
      %989 = vmatpush1.msra.mxu0 0.0
      %990 = vmatprep.subr.mxu0 0.0
      %991 = vmatpush1.msra.mxu0 0.0
      %992 = vmatprep.subr.mxu0 0.0
      %993 = vmatpush1.msra.mxu0 0.0
      %994 = vmatprep.subr.mxu0 0.0
      %995 = vmatpush1.msra.mxu0 0.0
      %996 = vmatprep.subr.mxu0 0.0
      %997 = vmatpush1.msra.mxu0 0.0
      %998 = vmatprep.subr.mxu0 0.0
      %999 = vmatpush1.msra.mxu0 0.0
      %1000 = vmatprep.subr.mxu0 0.0
      %1001 = vmatpush1.msra.mxu0 0.0
      %1002 = vmatprep.subr.mxu0 0.0
      %1003 = vmatpush1.msra.mxu0 0.0
      %1004 = vmatprep.subr.mxu0 0.0
      %1005 = vmatpush1.msra.mxu0 0.0
      %1006 = vmatprep.subr.mxu0 0.0
      %1007 = vmatpush1.msra.mxu0 0.0
      %1008 = vmatprep.subr.mxu0 0.0
      %1009 = vmatpush1.msra.mxu0 0.0
      %1010 = vmatprep.subr.mxu0 0.0
      %1011 = vmatpush1.msra.mxu0 0.0
      %1012 = vmatprep.subr.mxu0 0.0
      %1013 = vmatpush1.msra.mxu0 0.0
      %1014 = vmatprep.subr.mxu0 0.0
      %1015 = vmatpush1.msra.mxu0 0.0
      %1016 = vmatprep.subr.mxu0 0.0
      %1017 = vmatpush1.msra.mxu0 0.0
      %1018 = vmatprep.subr.mxu0 0.0
      %1019 = vmatpush1.msra.mxu0 0.0
      %1020 = vmatprep.subr.mxu0 0.0
      %1021 = vmatpush1.msra.mxu0 0.0
      %1022 = vmatprep.subr.mxu0 0.0
      %1023 = vmatpush1.msra.mxu0 0.0
      %1024 = vmatprep.subr.mxu0 0.0
      %1025 = vmatpush1.msra.mxu0 0.0
      %1026 = vmatprep.subr.mxu0 0.0
      %1027 = vmatpush1.msra.mxu0 0.0
      %1028 = vmatprep.subr.mxu0 0.0
      %1029 = vmatpush1.msra.mxu0 0.0
      %1030 = vmatprep.subr.mxu0 0.0
      %1031 = vmatpush1.msra.mxu0 0.0
      %1032 = vmatprep.subr.mxu0 0.0
      %1033 = vmatpush1.msra.mxu0 0.0
      %1034 = vmatprep.subr.mxu0 0.0
      %1035 = vmatpush1.msra.mxu0 0.0
      %1036 = vmatprep.subr.mxu0 0.0
      %1037 = vmatpush1.msra.mxu0 0.0
      %1038 = vmatprep.subr.mxu0 0.0
      %1039 = vmatpush1.msra.mxu0 0.0
      %1040 = vmatprep.subr.mxu0 0.0
      %1041 = vmatpush1.msra.mxu0 0.0
      %1042 = vmatprep.subr.mxu0 0.0
      %1043 = vmatpush1.msra.mxu0 0.0
      %1044 = vmatprep.subr.mxu0 0.0
      %1045 = vmatpush1.msra.mxu0 0.0
      %1046 = vmatprep.subr.mxu0 0.0
      %1047 = vmatpush1.msra.mxu0 0.0
      %1048 = vmatprep.mubr.f32.mxu0 0.0
      %1049 = vmatmul.mubr.f32.gmra.mrb[0].mxu0 %v982
      %v1050 = vpop.f32.mrb[0].mxu0
      %v1051 = vadd.f32 0.0, %v1050
      %v1052 = vpop.f32.mrb[0].mxu0
      %1053 = vdwg.mxu0
      %v1054 = vadd.f32 %v976, %v1051
      %1055 = vst.msk [vmem:[%s969] sm:$0xff] %vm282, %v1054
      %1056 = vst.msk [vmem:[%s944] sm:$0xff] %vm381, %v949
      // Predicated region
      $region37: #{basic_transformer_block.19} parent=31 // pred_check
        %p1057 = pneg %p260
      $region38: #{basic_transformer_block.19} parent=31 // pred_check_branch
        %1059 = sbr.rel (%p1057) target = $region40
      $region39: #{basic_transformer_block.19} parent=31 // pred_region
        %v1060 = vld [vmem:[#allocation3] sm:$0xff]
        %v1061 = vrcp.pop %v1060
        %v1062 = vld [vmem:[#allocation4] sm:$0xff]
        %1064 = vset.pattern.permute.xlu0 0
        %1065 = vperm.xlu0 %1064, %v1061
        %v1066 = vpop.permute.xlu0 %1065
        %v1068 = vmul.f32 %v1062, %v1066
        %1069 = vst.msk [vmem:[%s259] sm:$0xff] %vm282, %v1068
        %v1070 = vld [vmem:[%s567] sm:$0xff]
        %v1071 = vrcp.pop %v1070
        %v1072 = vld [vmem:[%s575] sm:$0xff]
        %1074 = vset.pattern.permute.xlu0 0
        %1075 = vperm.xlu0 %1074, %v1071
        %v1076 = vpop.permute.xlu0 %1075
        %v1078 = vmul.f32 %v1072, %v1076
        %1080 = vrot.lane.b32.xlu0 %v1078, 8
        %v1081 = vpop.permute.xlu0 %1080
        %vm1083 = vcmask 130112
        %1084 = vst.msk [vmem:[%s259] sm:$0xff] %vm1083, %v1081
        %v1085 = vld [vmem:[%s764] sm:$0xff]
        %v1086 = vrcp.pop %v1085
        %v1087 = vld [vmem:[%s772] sm:$0xff]
        %1089 = vset.pattern.permute.xlu0 0
        %1090 = vperm.xlu0 %1089, %v1086
        %v1091 = vpop.permute.xlu0 %1090
        %v1093 = vmul.f32 %v1087, %v1091
        %1095 = vrot.lane.b32.xlu0 %v1093, 16
        %v1096 = vpop.permute.xlu0 %1095
        %vm1098 = vcmask 195712
        %1099 = vst.msk [vmem:[%s259] sm:$0xff] %vm1098, %v1096
        %v1100 = vld [vmem:[%s961] sm:$0xff]
        %v1101 = vrcp.pop %v1100
        %v1102 = vld [vmem:[%s969] sm:$0xff]
        %1104 = vset.pattern.permute.xlu0 0
        %1105 = vperm.xlu0 %1104, %v1101
        %v1106 = vpop.permute.xlu0 %1105
        %v1108 = vmul.f32 %v1102, %v1106
        %1110 = vrot.lane.b32.xlu0 %v1108, 24
        %v1111 = vpop.permute.xlu0 %1110
        %vm1113 = vcmask 261312
        %1114 = vst.msk [vmem:[%s259] sm:$0xff] %vm1113, %v1111
      $region40: #{basic_transformer_block.19} parent=31 // pred_fallthru
        _
      %p1115 = scmp.lt.s32.totalorder %s19, 1
      %s1116 = scalar_select %p1115, %s19, 1
      %p1117 = scmp.lt.s32.totalorder %s20, 0
      %s1118 = scalar_select %p1117, %s20, 0
      %s1119 = sadd.s32 %s1118, %s1116
      %s1120 = smul.addr %s1119, 8
      %s1121 = scalar_lea.vmem %s3, %s1120
      // Predicated region
      $region41: #{basic_transformer_block.19} parent=31 // pred_check
        %p1122 = pneg %p137
      $region42: #{basic_transformer_block.19} parent=31 // pred_check_branch
        %1124 = sbr.rel (%p1122) target = $region44
      $region43: #{basic_transformer_block.19} parent=31 // pred_region
        _
      $region44: #{basic_transformer_block.19} parent=31 // pred_fallthru
        _
    $region32: #{basic_transformer_block.19} parent=5 // pred_fallthru
      _
    %p1125 = scmp.le.s32.totalorder 2, %s9
    // Predicated region
    $region45: #{basic_transformer_block.19} parent=5 // pred_check
      %p1126 = pneg %p1125
    $region46: #{basic_transformer_block.19} parent=5 // pred_check_branch
      %1128 = sbr.rel (%p1126) target = $region48
    $region47: #{basic_transformer_block.19} parent=5 // pred_region
      %s1129 = ssub.s32 %s9, 2
      // Predicated region
      $region49: #{basic_transformer_block.19} parent=47 // pred_check
        %p1130 = pneg %p143
      $region50: #{basic_transformer_block.19} parent=47 // pred_check_branch
        %1132 = sbr.rel (%p1130) target = $region52
      $region51: #{basic_transformer_block.19} parent=47 // pred_region
        %p1133 = scmp.lt.s32.totalorder %s22, 1
        %s1134 = scalar_select %p1133, %s22, 1
        %p1135 = scmp.lt.s32.totalorder %s23, 0
        %s1136 = scalar_select %p1135, %s23, 0
        %s1137 = sadd.s32 %s1136, %s1134
        %s1138 = smul.addr %s1137, 8
        %s1139 = scalar_lea.vmem %s3, %s1138
      $region52: #{basic_transformer_block.19} parent=47 // pred_fallthru
        _
    $region48: #{basic_transformer_block.19} parent=5 // pred_fallthru
      _
  $region6: #{basic_transformer_block.19} parent=0 // loop_footer
    %s13 = sadd.s32 1, %s9
  $region7: #{basic_transformer_block.19} parent=0 // loop_footer_branch
    %8 = sbr.rel target = $region3
  $region8: #{basic_transformer_block.19} parent=0 // loop_exit
    _

// kernel: basic_transformer_block.29
$region0: #{basic_transformer_block.29}
  #allocation0 [shape = 'u32[]', space=smem, size = 0x4, offset = 0x4, fixed_abs, tag = 'smem constant byte address 0x4 - core index']
  #allocation1 [shape = 'u32[144,128]{1,0:T(1,128)}', space=vmem, size = 0x12000, scoped, tag = 'internal scratch']
  #allocation2 [shape = 'f32[16,32]{1,0:T(8,128)}', space=vmem, size = 0x2000, scoped, tag = 'scratch operand']
  %s0 = inlined_call_operand.vmem [shape: f32[16,128], index: 0, kind: input, shape index: {}]
  %s1 = inlined_call_operand.vmem [shape: f32[128,32], index: 1, kind: input, shape index: {}]
  %s2 = inlined_call_operand.vmem [shape: f32[1,32], index: 2, kind: input, shape index: {}]
  %s3 = inlined_call_operand.vmem [shape: f32[16,32], index: 3, kind: input, shape index: {}]
  %s4 = inlined_call_operand.hbm [shape: f32[16,32], index: 4, kind: output, shape index: {}]
  %s5 = sld [smem:[#allocation0]]
  $region34: #{basic_transformer_block.29} parent=0
    _
  %s7 = ssub.s32 1, %s5
  %s8 = scalar_select 0, %s7, %s5
  $region1: #{basic_transformer_block.29} parent=0
    #allocation3 [shape = 'u8[8192]{0}', space=vmem, size = 0x2000, scoped, tag = 'output window, operand 0, single buffered']
    #allocation4 [shape = 's32[1]{0}', space=sflag, size = 0x4, scoped, tag = 'scoped memory for basic_transformer_block.29']
    %9 = vsyncpa [#allocation4], 0
    // Predicated region
    $region2: #{basic_transformer_block.29} parent=1 // pred_check
      _
    $region3: #{basic_transformer_block.29} parent=1 // pred_check_branch
      %11 = sbr.rel (0) target = $region5
    $region4: #{basic_transformer_block.29} parent=1 // pred_region
      _
    $region5: #{basic_transformer_block.29} parent=1 // pred_fallthru
      _
    // Predicated region
    $region6: #{basic_transformer_block.29} parent=1 // pred_check
      _
    $region7: #{basic_transformer_block.29} parent=1 // pred_check_branch
      %13 = sbr.rel (0) target = $region9
    $region8: #{basic_transformer_block.29} parent=1 // pred_region
      _
    $region9: #{basic_transformer_block.29} parent=1 // pred_fallthru
      _
    // Predicated region
    $region10: #{basic_transformer_block.29} parent=1 // pred_check
      _
    $region11: #{basic_transformer_block.29} parent=1 // pred_check_branch
      %15 = sbr.rel (0) target = $region13
    $region12: #{basic_transformer_block.29} parent=1 // pred_region
      _
    $region13: #{basic_transformer_block.29} parent=1 // pred_fallthru
      _
    // Predicated region
    $region14: #{basic_transformer_block.29} parent=1 // pred_check
      _
    $region15: #{basic_transformer_block.29} parent=1 // pred_check_branch
      %17 = sbr.rel (0) target = $region17
    $region16: #{basic_transformer_block.29} parent=1 // pred_region
      _
    $region17: #{basic_transformer_block.29} parent=1 // pred_fallthru
      _
    %p18 = scmp.eq.s32.totalorder 0, 0
    // Predicated region
    $region18: #{basic_transformer_block.29} parent=1 // pred_check
      %p19 = pneg %p18
    $region19: #{basic_transformer_block.29} parent=1 // pred_check_branch
      %21 = sbr.rel (%p19) target = $region21
    $region20: #{basic_transformer_block.29} parent=1 // pred_region
      %vm22 = vcmask 261120
      %23 = vst.msk [vmem:[#allocation2] sm:$0xff] %vm22, 0.0
      %24 = vst.msk [vmem:[#allocation2 + $0x8] sm:$0xff] %vm22, 0.0
    $region21: #{basic_transformer_block.29} parent=1 // pred_fallthru
      _
    %v25 = vld [vmem:[#allocation2] sm:$0xff]
    %v26 = vld [vmem:[#allocation2 + $0x8] sm:$0xff]
    %v27 = vld [vmem:[%s0] sm:$0xff]
    %v28 = vld [vmem:[%s0 + $0x8] sm:$0xff]
    %v29 = vld [vmem:[%s1] sm:$0xff]
    %v30 = vld [vmem:[%s1 + $0x8] sm:$0xff]
    %v31 = vld [vmem:[%s1 + $0x10] sm:$0xff]
    %v32 = vld [vmem:[%s1 + $0x18] sm:$0xff]
    %v33 = vld [vmem:[%s1 + $0x20] sm:$0xff]
    %v34 = vld [vmem:[%s1 + $0x28] sm:$0xff]
    %v35 = vld [vmem:[%s1 + $0x30] sm:$0xff]
    %v36 = vld [vmem:[%s1 + $0x38] sm:$0xff]
    %v37 = vld [vmem:[%s1 + $0x40] sm:$0xff]
    %v38 = vld [vmem:[%s1 + $0x48] sm:$0xff]
    %v39 = vld [vmem:[%s1 + $0x50] sm:$0xff]
    %v40 = vld [vmem:[%s1 + $0x58] sm:$0xff]
    %v41 = vld [vmem:[%s1 + $0x60] sm:$0xff]
    %v42 = vld [vmem:[%s1 + $0x68] sm:$0xff]
    %v43 = vld [vmem:[%s1 + $0x70] sm:$0xff]
    %v44 = vld [vmem:[%s1 + $0x78] sm:$0xff]
    %45 = vmatprep.subr.mxu0 0.0
    %46 = vmatpush1.msra.mxu0 %v29
    %47 = vmatprep.subr.mxu0 0.0
    %48 = vmatpush1.msra.mxu0 %v30
    %49 = vmatprep.subr.mxu0 0.0
    %50 = vmatpush1.msra.mxu0 %v31
    %51 = vmatprep.subr.mxu0 0.0
    %52 = vmatpush1.msra.mxu0 %v32
    %53 = vmatprep.subr.mxu0 0.0
    %54 = vmatpush1.msra.mxu0 %v33
    %55 = vmatprep.subr.mxu0 0.0
    %56 = vmatpush1.msra.mxu0 %v34
    %57 = vmatprep.subr.mxu0 0.0
    %58 = vmatpush1.msra.mxu0 %v35
    %59 = vmatprep.subr.mxu0 0.0
    %60 = vmatpush1.msra.mxu0 %v36
    %61 = vmatprep.subr.mxu0 0.0
    %62 = vmatpush1.msra.mxu0 %v37
    %63 = vmatprep.subr.mxu0 0.0
    %64 = vmatpush1.msra.mxu0 %v38
    %65 = vmatprep.subr.mxu0 0.0
    %66 = vmatpush1.msra.mxu0 %v39
    %67 = vmatprep.subr.mxu0 0.0
    %68 = vmatpush1.msra.mxu0 %v40
    %69 = vmatprep.subr.mxu0 0.0
    %70 = vmatpush1.msra.mxu0 %v41
    %71 = vmatprep.subr.mxu0 0.0
    %72 = vmatpush1.msra.mxu0 %v42
    %73 = vmatprep.subr.mxu0 0.0
    %74 = vmatpush1.msra.mxu0 %v43
    %75 = vmatprep.subr.mxu0 0.0
    %76 = vmatpush1.msra.mxu0 %v44
    %77 = vmatprep.subr.mxu0 0.0
    %78 = vmatpush1.msra.mxu0 0.0
    %79 = vmatprep.subr.mxu0 0.0
    %80 = vmatpush1.msra.mxu0 0.0
    %81 = vmatprep.subr.mxu0 0.0
    %82 = vmatpush1.msra.mxu0 0.0
    %83 = vmatprep.subr.mxu0 0.0
    %84 = vmatpush1.msra.mxu0 0.0
    %85 = vmatprep.subr.mxu0 0.0
    %86 = vmatpush1.msra.mxu0 0.0
    %87 = vmatprep.subr.mxu0 0.0
    %88 = vmatpush1.msra.mxu0 0.0
    %89 = vmatprep.subr.mxu0 0.0
    %90 = vmatpush1.msra.mxu0 0.0
    %91 = vmatprep.subr.mxu0 0.0
    %92 = vmatpush1.msra.mxu0 0.0
    %93 = vmatprep.subr.mxu0 0.0
    %94 = vmatpush1.msra.mxu0 0.0
    %95 = vmatprep.subr.mxu0 0.0
    %96 = vmatpush1.msra.mxu0 0.0
    %97 = vmatprep.subr.mxu0 0.0
    %98 = vmatpush1.msra.mxu0 0.0
    %99 = vmatprep.subr.mxu0 0.0
    %100 = vmatpush1.msra.mxu0 0.0
    %101 = vmatprep.subr.mxu0 0.0
    %102 = vmatpush1.msra.mxu0 0.0
    %103 = vmatprep.subr.mxu0 0.0
    %104 = vmatpush1.msra.mxu0 0.0
    %105 = vmatprep.subr.mxu0 0.0
    %106 = vmatpush1.msra.mxu0 0.0
    %107 = vmatprep.subr.mxu0 0.0
    %108 = vmatpush1.msra.mxu0 0.0
    %109 = vmatprep.mubr.f32.mxu0 0.0
    %110 = vmatmul.mubr.f32.gmra.mrb[0].mxu0 %v27
    %v111 = vpop.f32.mrb[0].mxu0
    %v112 = vadd.f32 0.0, %v111
    %v113 = vpop.f32.mrb[0].mxu0
    %114 = vmatprep.mubr.f32.mxu0 0.0
    %115 = vmatmul.mubr.f32.gmra.mrb[0].mxu0 %v28
    %v116 = vpop.f32.mrb[0].mxu0
    %v117 = vadd.f32 0.0, %v116
    %v118 = vpop.f32.mrb[0].mxu0
    %119 = vdwg.mxu0
    %v120 = vadd.f32 %v25, %v112
    %v121 = vadd.f32 %v26, %v117
    %vm122 = vcmask 261120
    %123 = vst.msk [vmem:[#allocation2] sm:$0xff] %vm122, %v120
    %124 = vst.msk [vmem:[#allocation2 + $0x8] sm:$0xff] %vm122, %v121
    // Predicated region
    $region22: #{basic_transformer_block.29} parent=1 // pred_check
      %p125 = pneg %p18
    $region23: #{basic_transformer_block.29} parent=1 // pred_check_branch
      %127 = sbr.rel (%p125) target = $region25
    $region24: #{basic_transformer_block.29} parent=1 // pred_region
      %v128 = vld [vmem:[#allocation2] sm:$0xff]
      %v129 = vld [vmem:[#allocation2 + $0x8] sm:$0xff]
      %v130 = vld [vmem:[%s2] sm:$0x1]
      %v132 = vlaneseq
      %v133 = vshrl.u32 %v132, 7
      %v134 = vsub.s32 0, %v133
      %v135 = vrot.slane %v130, %v134
      %v137 = vadd.f32 %v128, %v135
      %v138 = vadd.f32 %v129, %v135
      %v139 = vld [vmem:[%s3] sm:$0xff]
      %v140 = vld [vmem:[%s3 + $0x8] sm:$0xff]
      %v141 = vadd.f32 %v137, %v139
      %v142 = vadd.f32 %v138, %v140
      %143 = vst.msk [vmem:[#allocation3] sm:$0xff] %vm122, %v141
      %144 = vst.msk [vmem:[#allocation3 + $0x8] sm:$0xff] %vm122, %v142
    $region25: #{basic_transformer_block.29} parent=1 // pred_fallthru
      _
    // Predicated region
    $region26: #{basic_transformer_block.29} parent=1 // pred_check
      _
    $region27: #{basic_transformer_block.29} parent=1 // pred_check_branch
      %146 = sbr.rel (0) target = $region29
    $region28: #{basic_transformer_block.29} parent=1 // pred_region
      %s148 = ssub.s32 256, 256
      %149 = vsyncadd [#allocation4], %s148
      %s150 = sshll.u32 [#allocation3], 4
      %s151 = int_to_ptr.vmem [resolvable:$true] %s150
      %156 = dma.vmem_to_hbm [thread:$0]  %s151, 256, %s4, [#allocation4], 128, 128, 8
    $region29: #{basic_transformer_block.29} parent=1 // pred_fallthru
      _
    // Predicated region
    $region30: #{basic_transformer_block.29} parent=1 // pred_check
      _
    $region31: #{basic_transformer_block.29} parent=1 // pred_check_branch
      %158 = sbr.rel (0) target = $region33
    $region32: #{basic_transformer_block.29} parent=1 // pred_region
      %159 = dma.done [#allocation4], 256
    $region33: #{basic_transformer_block.29} parent=1 // pred_fallthru
      _
    %160 = vsyncpa [#allocation4], 1

// kernel: basic_transformer_block.28
$region0: #{basic_transformer_block.28}
  #allocation0 [shape = 'u32[]', space=smem, size = 0x4, offset = 0x4, fixed_abs, tag = 'smem constant byte address 0x4 - core index']
  #allocation1 [shape = 'u32[144,128]{1,0:T(1,128)}', space=vmem, size = 0x12000, scoped, tag = 'internal scratch']
  #allocation2 [shape = 'f32[16,128]{1,0:T(8,128)}', space=vmem, size = 0x2000, scoped, tag = 'scratch operand']
  #allocation3 [shape = 'f32[16,128]{1,0:T(8,128)}', space=vmem, size = 0x2000, scoped, tag = 'scratch operand']
  %s0 = inlined_call_operand.vmem [shape: f32[16,32], index: 0, kind: input, shape index: {}]
  %s1 = inlined_call_operand.vmem [shape: f32[32,128], index: 1, kind: input, shape index: {}]
  %s2 = inlined_call_operand.vmem [shape: f32[32,128], index: 2, kind: input, shape index: {}]
  %s3 = inlined_call_operand.vmem [shape: f32[1,128], index: 3, kind: input, shape index: {}]
  %s4 = inlined_call_operand.vmem [shape: f32[1,128], index: 4, kind: input, shape index: {}]
  %s5 = inlined_call_operand.vmem [shape: f32[16,128], index: 5, kind: output, shape index: {}]
  %s6 = sld [smem:[#allocation0]]
  $region38: #{basic_transformer_block.28} parent=0
    _
  %s8 = ssub.s32 1, %s6
  %s9 = scalar_select 0, %s8, %s6
  // Predicated region
  $region2: #{basic_transformer_block.28} parent=0 // pred_check
    _
  $region3: #{basic_transformer_block.28} parent=0 // pred_check_branch
    %11 = sbr.rel (0) target = $region5
  $region4: #{basic_transformer_block.28} parent=0 // pred_region
    _
  $region5: #{basic_transformer_block.28} parent=0 // pred_fallthru
    _
  // Predicated region
  $region6: #{basic_transformer_block.28} parent=0 // pred_check
    _
  $region7: #{basic_transformer_block.28} parent=0 // pred_check_branch
    %13 = sbr.rel (0) target = $region9
  $region8: #{basic_transformer_block.28} parent=0 // pred_region
    _
  $region9: #{basic_transformer_block.28} parent=0 // pred_fallthru
    _
  // Predicated region
  $region10: #{basic_transformer_block.28} parent=0 // pred_check
    _
  $region11: #{basic_transformer_block.28} parent=0 // pred_check_branch
    %15 = sbr.rel (0) target = $region13
  $region12: #{basic_transformer_block.28} parent=0 // pred_region
    _
  $region13: #{basic_transformer_block.28} parent=0 // pred_fallthru
    _
  // Predicated region
  $region14: #{basic_transformer_block.28} parent=0 // pred_check
    _
  $region15: #{basic_transformer_block.28} parent=0 // pred_check_branch
    %17 = sbr.rel (0) target = $region17
  $region16: #{basic_transformer_block.28} parent=0 // pred_region
    _
  $region17: #{basic_transformer_block.28} parent=0 // pred_fallthru
    _
  // Predicated region
  $region18: #{basic_transformer_block.28} parent=0 // pred_check
    _
  $region19: #{basic_transformer_block.28} parent=0 // pred_check_branch
    %19 = sbr.rel (0) target = $region21
  $region20: #{basic_transformer_block.28} parent=0 // pred_region
    _
  $region21: #{basic_transformer_block.28} parent=0 // pred_fallthru
    _
  %p20 = scmp.eq.s32.totalorder 0, 0
  // Predicated region
  $region22: #{basic_transformer_block.28} parent=0 // pred_check
    %p21 = pneg %p20
  $region23: #{basic_transformer_block.28} parent=0 // pred_check_branch
    %23 = sbr.rel (%p21) target = $region25
  $region24: #{basic_transformer_block.28} parent=0 // pred_region
    %24 = vst [vmem:[#allocation2] sm:$0xff] 0.0
    %25 = vst [vmem:[#allocation2 + $0x8] sm:$0xff] 0.0
    %26 = vst [vmem:[#allocation3] sm:$0xff] 0.0
    %27 = vst [vmem:[#allocation3 + $0x8] sm:$0xff] 0.0
  $region25: #{basic_transformer_block.28} parent=0 // pred_fallthru
    _
  %v28 = vld [vmem:[%s0] sm:$0xff]
  %v29 = vld [vmem:[%s0 + $0x8] sm:$0xff]
  %v30 = vld [vmem:[#allocation2] sm:$0xff]
  %v31 = vld [vmem:[#allocation2 + $0x8] sm:$0xff]
  %v32 = vld [vmem:[%s1] sm:$0xff]
  %v33 = vld [vmem:[%s1 + $0x8] sm:$0xff]
  %v34 = vld [vmem:[%s1 + $0x10] sm:$0xff]
  %v35 = vld [vmem:[%s1 + $0x18] sm:$0xff]
  %vm36 = vcmask 261120
  %v38 = vsel %vm36, %v28, 0
  %v41 = vsel %vm36, %v29, 0
  %43 = vmatprep.subr.mxu0 0.0
  %44 = vmatpush1.msra.mxu0 %v32
  %45 = vmatprep.subr.mxu0 0.0
  %46 = vmatpush1.msra.mxu0 %v33
  %47 = vmatprep.subr.mxu0 0.0
  %48 = vmatpush1.msra.mxu0 %v34
  %49 = vmatprep.subr.mxu0 0.0
  %50 = vmatpush1.msra.mxu0 %v35
  %51 = vmatprep.subr.mxu0 0.0
  %52 = vmatpush1.msra.mxu0 0.0
  %53 = vmatprep.subr.mxu0 0.0
  %54 = vmatpush1.msra.mxu0 0.0
  %55 = vmatprep.subr.mxu0 0.0
  %56 = vmatpush1.msra.mxu0 0.0
  %57 = vmatprep.subr.mxu0 0.0
  %58 = vmatpush1.msra.mxu0 0.0
  %59 = vmatprep.subr.mxu0 0.0
  %60 = vmatpush1.msra.mxu0 0.0
  %61 = vmatprep.subr.mxu0 0.0
  %62 = vmatpush1.msra.mxu0 0.0
  %63 = vmatprep.subr.mxu0 0.0
  %64 = vmatpush1.msra.mxu0 0.0
  %65 = vmatprep.subr.mxu0 0.0
  %66 = vmatpush1.msra.mxu0 0.0
  %67 = vmatprep.subr.mxu0 0.0
  %68 = vmatpush1.msra.mxu0 0.0
  %69 = vmatprep.subr.mxu0 0.0
  %70 = vmatpush1.msra.mxu0 0.0
  %71 = vmatprep.subr.mxu0 0.0
  %72 = vmatpush1.msra.mxu0 0.0
  %73 = vmatprep.subr.mxu0 0.0
  %74 = vmatpush1.msra.mxu0 0.0
  %75 = vmatprep.subr.mxu0 0.0
  %76 = vmatpush1.msra.mxu0 0.0
  %77 = vmatprep.subr.mxu0 0.0
  %78 = vmatpush1.msra.mxu0 0.0
  %79 = vmatprep.subr.mxu0 0.0
  %80 = vmatpush1.msra.mxu0 0.0
  %81 = vmatprep.subr.mxu0 0.0
  %82 = vmatpush1.msra.mxu0 0.0
  %83 = vmatprep.subr.mxu0 0.0
  %84 = vmatpush1.msra.mxu0 0.0
  %85 = vmatprep.subr.mxu0 0.0
  %86 = vmatpush1.msra.mxu0 0.0
  %87 = vmatprep.subr.mxu0 0.0
  %88 = vmatpush1.msra.mxu0 0.0
  %89 = vmatprep.subr.mxu0 0.0
  %90 = vmatpush1.msra.mxu0 0.0
  %91 = vmatprep.subr.mxu0 0.0
  %92 = vmatpush1.msra.mxu0 0.0
  %93 = vmatprep.subr.mxu0 0.0
  %94 = vmatpush1.msra.mxu0 0.0
  %95 = vmatprep.subr.mxu0 0.0
  %96 = vmatpush1.msra.mxu0 0.0
  %97 = vmatprep.subr.mxu0 0.0
  %98 = vmatpush1.msra.mxu0 0.0
  %99 = vmatprep.subr.mxu0 0.0
  %100 = vmatpush1.msra.mxu0 0.0
  %101 = vmatprep.subr.mxu0 0.0
  %102 = vmatpush1.msra.mxu0 0.0
  %103 = vmatprep.subr.mxu0 0.0
  %104 = vmatpush1.msra.mxu0 0.0
  %105 = vmatprep.subr.mxu0 0.0
  %106 = vmatpush1.msra.mxu0 0.0
  %107 = vmatprep.mubr.f32.mxu0 0.0
  %108 = vmatmul.mubr.f32.gmra.mrb[0].mxu0 %v38
  %v109 = vpop.f32.mrb[0].mxu0
  %v110 = vadd.f32 0.0, %v109
  %v111 = vpop.f32.mrb[0].mxu0
  %112 = vmatprep.mubr.f32.mxu0 0.0
  %113 = vmatmul.mubr.f32.gmra.mrb[0].mxu0 %v41
  %v114 = vpop.f32.mrb[0].mxu0
  %v115 = vadd.f32 0.0, %v114
  %v116 = vpop.f32.mrb[0].mxu0
  %117 = vdwg.mxu0
  %v118 = vadd.f32 %v30, %v110
  %v119 = vadd.f32 %v31, %v115
  %120 = vst [vmem:[#allocation2] sm:$0xff] %v118
  %121 = vst [vmem:[#allocation2 + $0x8] sm:$0xff] %v119
  %v122 = vld [vmem:[#allocation3] sm:$0xff]
  %v123 = vld [vmem:[#allocation3 + $0x8] sm:$0xff]
  %v124 = vld [vmem:[%s2] sm:$0xff]
  %v125 = vld [vmem:[%s2 + $0x8] sm:$0xff]
  %v126 = vld [vmem:[%s2 + $0x10] sm:$0xff]
  %v127 = vld [vmem:[%s2 + $0x18] sm:$0xff]
  %128 = vmatprep.subr.mxu0 0.0
  %129 = vmatpush1.msra.mxu0 %v124
  %130 = vmatprep.subr.mxu0 0.0
  %131 = vmatpush1.msra.mxu0 %v125
  %132 = vmatprep.subr.mxu0 0.0
  %133 = vmatpush1.msra.mxu0 %v126
  %134 = vmatprep.subr.mxu0 0.0
  %135 = vmatpush1.msra.mxu0 %v127
  %136 = vmatprep.subr.mxu0 0.0
  %137 = vmatpush1.msra.mxu0 0.0
  %138 = vmatprep.subr.mxu0 0.0
  %139 = vmatpush1.msra.mxu0 0.0
  %140 = vmatprep.subr.mxu0 0.0
  %141 = vmatpush1.msra.mxu0 0.0
  %142 = vmatprep.subr.mxu0 0.0
  %143 = vmatpush1.msra.mxu0 0.0
  %144 = vmatprep.subr.mxu0 0.0
  %145 = vmatpush1.msra.mxu0 0.0
  %146 = vmatprep.subr.mxu0 0.0
  %147 = vmatpush1.msra.mxu0 0.0
  %148 = vmatprep.subr.mxu0 0.0
  %149 = vmatpush1.msra.mxu0 0.0
  %150 = vmatprep.subr.mxu0 0.0
  %151 = vmatpush1.msra.mxu0 0.0
  %152 = vmatprep.subr.mxu0 0.0
  %153 = vmatpush1.msra.mxu0 0.0
  %154 = vmatprep.subr.mxu0 0.0
  %155 = vmatpush1.msra.mxu0 0.0
  %156 = vmatprep.subr.mxu0 0.0
  %157 = vmatpush1.msra.mxu0 0.0
  %158 = vmatprep.subr.mxu0 0.0
  %159 = vmatpush1.msra.mxu0 0.0
  %160 = vmatprep.subr.mxu0 0.0
  %161 = vmatpush1.msra.mxu0 0.0
  %162 = vmatprep.subr.mxu0 0.0
  %163 = vmatpush1.msra.mxu0 0.0
  %164 = vmatprep.subr.mxu0 0.0
  %165 = vmatpush1.msra.mxu0 0.0
  %166 = vmatprep.subr.mxu0 0.0
  %167 = vmatpush1.msra.mxu0 0.0
  %168 = vmatprep.subr.mxu0 0.0
  %169 = vmatpush1.msra.mxu0 0.0
  %170 = vmatprep.subr.mxu0 0.0
  %171 = vmatpush1.msra.mxu0 0.0
  %172 = vmatprep.subr.mxu0 0.0
  %173 = vmatpush1.msra.mxu0 0.0
  %174 = vmatprep.subr.mxu0 0.0
  %175 = vmatpush1.msra.mxu0 0.0
  %176 = vmatprep.subr.mxu0 0.0
  %177 = vmatpush1.msra.mxu0 0.0
  %178 = vmatprep.subr.mxu0 0.0
  %179 = vmatpush1.msra.mxu0 0.0
  %180 = vmatprep.subr.mxu0 0.0
  %181 = vmatpush1.msra.mxu0 0.0
  %182 = vmatprep.subr.mxu0 0.0
  %183 = vmatpush1.msra.mxu0 0.0
  %184 = vmatprep.subr.mxu0 0.0
  %185 = vmatpush1.msra.mxu0 0.0
  %186 = vmatprep.subr.mxu0 0.0
  %187 = vmatpush1.msra.mxu0 0.0
  %188 = vmatprep.subr.mxu0 0.0
  %189 = vmatpush1.msra.mxu0 0.0
  %190 = vmatprep.subr.mxu0 0.0
  %191 = vmatpush1.msra.mxu0 0.0
  %192 = vmatprep.mubr.f32.mxu0 0.0
  %193 = vmatmul.mubr.f32.gmra.mrb[0].mxu0 %v38
  %v194 = vpop.f32.mrb[0].mxu0
  %v195 = vadd.f32 0.0, %v194
  %v196 = vpop.f32.mrb[0].mxu0
  %197 = vmatprep.mubr.f32.mxu0 0.0
  %198 = vmatmul.mubr.f32.gmra.mrb[0].mxu0 %v41
  %v199 = vpop.f32.mrb[0].mxu0
  %v200 = vadd.f32 0.0, %v199
  %v201 = vpop.f32.mrb[0].mxu0
  %202 = vdwg.mxu0
  %v203 = vadd.f32 %v122, %v195
  %v204 = vadd.f32 %v123, %v200
  %205 = vst [vmem:[#allocation3] sm:$0xff] %v203
  %206 = vst [vmem:[#allocation3 + $0x8] sm:$0xff] %v204
  // Predicated region
  $region26: #{basic_transformer_block.28} parent=0 // pred_check
    %p207 = pneg %p20
  $region27: #{basic_transformer_block.28} parent=0 // pred_check_branch
    %209 = sbr.rel (%p207) target = $region29
  $region28: #{basic_transformer_block.28} parent=0 // pred_region
    %v210 = vld [vmem:[#allocation2] sm:$0xff]
    %v211 = vld [vmem:[#allocation2 + $0x8] sm:$0xff]
    %v212 = vld [vmem:[%s3] sm:$0x1]
    %v214 = vlaneseq
    %v215 = vshrl.u32 %v214, 7
    %v216 = vsub.s32 0, %v215
    %v217 = vrot.slane %v212, %v216
    %v219 = vadd.f32 %v210, %v217
    %v220 = vadd.f32 %v211, %v217
    %v221 = vld [vmem:[#allocation3] sm:$0xff]
    %v222 = vld [vmem:[#allocation3 + $0x8] sm:$0xff]
    %v223 = vld [vmem:[%s4] sm:$0x1]
    %v225 = vlaneseq
    %v226 = vshrl.u32 %v225, 7
    %v227 = vsub.s32 0, %v226
    %v228 = vrot.slane %v223, %v227
    %v230 = vadd.f32 %v221, %v228
    %v231 = vadd.f32 %v222, %v228
    %v232 = vmul.f32 %v230, 0.5
    %v233 = vmul.f32 %v231, 0.5
    %v234 = vmul.f32 %v230, 0.70710677
    %v235 = vmul.f32 %v231, 0.70710677
    %v236 = verf.f32.pop %v234
    %v237 = verf.f32.pop %v235
    %v238 = vadd.f32 %v236, 1.0
    %v239 = vadd.f32 %v237, 1.0
    %v240 = vmul.f32 %v232, %v238
    %v241 = vmul.f32 %v233, %v239
    %v242 = vmul.f32 %v219, %v240
    %v243 = vmul.f32 %v220, %v241
    %244 = vst [vmem:[%s5] sm:$0xff] %v242
    %245 = vst [vmem:[%s5 + $0x8] sm:$0xff] %v243
  $region29: #{basic_transformer_block.28} parent=0 // pred_fallthru
    _
  // Predicated region
  $region30: #{basic_transformer_block.28} parent=0 // pred_check
    _
  $region31: #{basic_transformer_block.28} parent=0 // pred_check_branch
    %247 = sbr.rel (0) target = $region33
  $region32: #{basic_transformer_block.28} parent=0 // pred_region
    _
  $region33: #{basic_transformer_block.28} parent=0 // pred_fallthru
    _
  // Predicated region
  $region34: #{basic_transformer_block.28} parent=0 // pred_check
    _
  $region35: #{basic_transformer_block.28} parent=0 // pred_check_branch
    %249 = sbr.rel (0) target = $region37
  $region36: #{basic_transformer_block.28} parent=0 // pred_region
    _
  $region37: #{basic_transformer_block.28} parent=0 // pred_fallthru
    _

</llo_original>
